<compile_context>
chip_gen: v6e
topology: v6e:2x2x1
jax: 0.10.0
libtpu: 0.0.40
codegen_flags: <defaults>
</compile_context>

<pallas_src>
import functools
import math

import jax
import jax.numpy as jnp
from jax import lax
from jax.experimental import pallas as pl
from jax.experimental.pallas import tpu as pltpu


def _round_up(a, m):
    return (a + m - 1) // m * m


# ---------------------------------------------------------------------------
# Kernel 1: multi-head self-attention + residual + LayerNorm0 (one batch / grid step)
# ---------------------------------------------------------------------------
def attn_ln_kernel(x_ref, mask_ref, wq_ref, wk_ref, wv_ref, wo_ref,
                   g_ref, b_ref, o_ref, *, n_head, d_qkv):
    x = x_ref[0]                                  # (L, D) f32
    xb = x.astype(jnp.bfloat16)
    m = mask_ref[0]                               # (1, L) f32; 0.0 => padded key
    scale = jnp.float32(1.0 / math.sqrt(d_qkv))

    attn = jnp.zeros(x.shape, jnp.float32)        # sum over heads (matches torch .sum(dim=1))
    for h in range(n_head):                       # static unroll (small n_head)
        q = jnp.dot(xb, wq_ref[h], preferred_element_type=jnp.float32)    # (L, K)
        k = jnp.dot(xb, wk_ref[h], preferred_element_type=jnp.float32)    # (L, K)
        v = jnp.dot(xb, wv_ref[h], preferred_element_type=jnp.float32)    # (L, K)
        s = lax.dot_general(q.astype(jnp.bfloat16), k.astype(jnp.bfloat16),
                            (((1,), (1,)), ((), ())),
                            preferred_element_type=jnp.float32) * scale    # (L, L)
        s = jnp.where(m == 0.0, jnp.float32(-1e9), s)   # mask keys (broadcast over queries)
        s = s - jnp.max(s, axis=-1, keepdims=True)
        p = jnp.exp(s)
        p = p / jnp.sum(p, axis=-1, keepdims=True)      # softmax in f32
        ctx = jnp.dot(p.astype(jnp.bfloat16), v.astype(jnp.bfloat16),
                      preferred_element_type=jnp.float32)                  # (L, K)
        attn = attn + jnp.dot(ctx.astype(jnp.bfloat16), wo_ref[h],
                              preferred_element_type=jnp.float32)          # (L, D)

    # residual (attention dropout = identity at inference) + LayerNorm0 (eps=1e-5)
    y = x + attn
    mu = jnp.mean(y, axis=-1, keepdims=True)
    var = jnp.mean((y - mu) ** 2, axis=-1, keepdims=True)
    yn = (y - mu) * lax.rsqrt(var + 1e-5)
    o_ref[0] = (yn * g_ref[...] + b_ref[...]).astype(o_ref.dtype)


def attention_layernorm(x, mask, wq, wk, wv, wo, gamma, beta):
    """x: [B, L, D] f32; mask: [B, L] (0 = padding). Returns [B, L, D] f32."""
    B, L, D = x.shape
    H, _, K = wq.shape

    mask3 = mask.astype(jnp.float32).reshape(B, 1, L)
    wq_bf = wq.astype(jnp.bfloat16)
    wk_bf = wk.astype(jnp.bfloat16)
    wv_bf = wv.astype(jnp.bfloat16)
    wo_bf = wo.astype(jnp.bfloat16)
    g2 = gamma.reshape(1, D).astype(jnp.float32)
    b2 = beta.reshape(1, D).astype(jnp.float32)

    cost = pl.CostEstimate(
        flops=int(B * H * (3 * 2 * L * D * K + 2 * 2 * L * L * K + 2 * L * K * D)),
        transcendentals=int(B * H * L * L),
        bytes_accessed=int(2 * B * L * D * 4 + 4 * H * D * K * 2 + B * L * 4 + 2 * D * 4),
    )

    kernel = functools.partial(attn_ln_kernel, n_head=H, d_qkv=K)
    return pl.pallas_call(
        kernel,
        out_shape=jax.ShapeDtypeStruct((B, L, D), x.dtype),
        grid_spec=pltpu.PrefetchScalarGridSpec(
            num_scalar_prefetch=0,
            grid=(B,),
            in_specs=[
                pl.BlockSpec((1, L, D), lambda b: (b, 0, 0)),   # x
                pl.BlockSpec((1, 1, L), lambda b: (b, 0, 0)),   # mask
                pl.BlockSpec((H, D, K), lambda b: (0, 0, 0)),   # w_q (bf16)
                pl.BlockSpec((H, D, K), lambda b: (0, 0, 0)),   # w_k (bf16)
                pl.BlockSpec((H, D, K), lambda b: (0, 0, 0)),   # w_v (bf16)
                pl.BlockSpec((H, K, D), lambda b: (0, 0, 0)),   # w_o (bf16)
                pl.BlockSpec((1, D), lambda b: (0, 0)),         # LN0 gamma
                pl.BlockSpec((1, D), lambda b: (0, 0)),         # LN0 beta
            ],
            out_specs=pl.BlockSpec((1, L, D), lambda b: (b, 0, 0)),
        ),
        compiler_params=pltpu.CompilerParams(dimension_semantics=("parallel",)),
        cost_estimate=cost,
    )(x, mask3, wq_bf, wk_bf, wv_bf, wo_bf, g2, b2)


# ---------------------------------------------------------------------------
# Kernel 2: position-wise FFN + residual + LayerNorm1, d_ff tiled with accumulator
# ---------------------------------------------------------------------------
def ffn_ln_kernel(x_ref, w1_ref, b1_ref, w2_ref, b2_ref, g_ref, be_ref,
                  o_ref, acc_ref):
    k = pl.program_id(1)

    @pl.when(k == 0)
    def _init():
        acc_ref[...] = jnp.zeros_like(acc_ref)

    xb = x_ref[...].astype(jnp.bfloat16)                                   # (TM, D)
    h = jnp.dot(xb, w1_ref[...], preferred_element_type=jnp.float32) + b1_ref[...]
    h = jnp.maximum(h, 0.0)                                                # ReLU (f32)
    acc_ref[...] += jnp.dot(h.astype(jnp.bfloat16), w2_ref[...],
                            preferred_element_type=jnp.float32)            # partial (TM, D)

    @pl.when(k == pl.num_programs(1) - 1)
    def _finalize():
        # linear2 bias + residual (FFN dropout = identity at inference) + LayerNorm1
        y = x_ref[...] + acc_ref[...] + b2_ref[...]
        mu = jnp.mean(y, axis=-1, keepdims=True)
        var = jnp.mean((y - mu) ** 2, axis=-1, keepdims=True)
        yn = (y - mu) * lax.rsqrt(var + 1e-5)
        o_ref[...] = (yn * g_ref[...] + be_ref[...]).astype(o_ref.dtype)


def ffn_layernorm(x, w1, b1, w2, b2, gamma, beta, *, max_row_tile=512):
    """x: [B, L, D] f32. Returns LayerNorm1(x + FFN(x)), same shape/dtype."""
    B, L, D = x.shape
    F = w1.shape[1]
    n = B * L
    x2d = x.reshape(n, D)

    # Row tile: as large as possible (<=512, multiple of 8) while keeping the row grid
    # at >=2 steps so the "parallel" axis can shard across 2 TensorCores (v7x megacore).
    row_tile = min(max_row_tile, _round_up(max(8, -(-n // 2)), 8))
    n_pad = _round_up(n, row_tile)
    if n_pad != n:
        x2d = jnp.pad(x2d, ((0, n_pad - n), (0, 0)))   # ragged tail handled by padding

    ff_tile = 512 if F % 512 == 0 else F               # multiple of 128 for real d_ff

    w1_bf = w1.astype(jnp.bfloat16)
    w2_bf = w2.astype(jnp.bfloat16)
    b1_2d = b1.reshape(1, F).astype(jnp.float32)
    b2_2d = b2.reshape(1, D).astype(jnp.float32)
    g2 = gamma.reshape(1, D).astype(jnp.float32)
    be2 = beta.reshape(1, D).astype(jnp.float32)

    grid = (n_pad // row_tile, F // ff_tile)

    # Explicit VMEM budget: double-buffered x/W1/W2/out blocks + f32 accumulator,
    # clamped so the configuration also fits v7x's 64 MiB physical VMEM with headroom.
    est = 2 * (row_tile * D * 4 + D * ff_tile * 2 + ff_tile * 4
               + ff_tile * D * 2 + 3 * D * 4 + row_tile * D * 4) + row_tile * D * 4
    vmem_limit = int(min(48 * 2**20, max(2 * est, 16 * 2**20)))

    cost = pl.CostEstimate(
        flops=int(4 * n_pad * D * F),
        transcendentals=0,
        bytes_accessed=int(2 * n_pad * D * 4 + 2 * D * F * 2 + (F + 3 * D) * 4),
    )

    out = pl.pallas_call(
        ffn_ln_kernel,
        out_shape=jax.ShapeDtypeStruct((n_pad, D), x.dtype),
        grid_spec=pltpu.PrefetchScalarGridSpec(
            num_scalar_prefetch=0,
            grid=grid,
            in_specs=[
                pl.BlockSpec((row_tile, D), lambda i, k: (i, 0)),   # x rows (f32)
                pl.BlockSpec((D, ff_tile), lambda i, k: (0, k)),    # W1 chunk (bf16)
                pl.BlockSpec((1, ff_tile), lambda i, k: (0, k)),    # b1 chunk
                pl.BlockSpec((ff_tile, D), lambda i, k: (k, 0)),    # W2 chunk (bf16)
                pl.BlockSpec((1, D), lambda i, k: (0, 0)),          # b2
                pl.BlockSpec((1, D), lambda i, k: (0, 0)),          # LN1 gamma
                pl.BlockSpec((1, D), lambda i, k: (0, 0)),          # LN1 beta
            ],
            out_specs=pl.BlockSpec((row_tile, D), lambda i, k: (i, 0)),
            scratch_shapes=[pltpu.VMEM((row_tile, D), jnp.float32)],
        ),
        compiler_params=pltpu.CompilerParams(
            dimension_semantics=("parallel", "arbitrary"),
            vmem_limit_bytes=vmem_limit,
        ),
        cost_estimate=cost,
    )(x2d, w1_bf, b1_2d, w2_bf, b2_2d, g2, be2)

    return out[:n].reshape(B, L, D)


# ---------------------------------------------------------------------------
# Full encoder layer (forward only, eval mode)
# ---------------------------------------------------------------------------
def encoder_layer(x, mask, p):
    x1 = attention_layernorm(x, mask, p["wq"], p["wk"], p["wv"], p["wo"],
                             p["ln0_g"], p["ln0_b"])
    return ffn_layernorm(x1, p["w1"], p["b1"], p["w2"], p["b2"],
                         p["ln1_g"], p["ln1_b"])


# ---------------------------------------------------------------------------
# Parameters + pure-JAX f32 reference
# ---------------------------------------------------------------------------
def init_params(key, d_model=256, d_ff=1024, n_head=4, d_qkv=32, dtype=jnp.float32):
    ks = jax.random.split(key, 12)

    def xavier_normal(k, shape):
        rf = 1
        for s in shape[2:]:
            rf *= s
        fan_in, fan_out = shape[1] * rf, shape[0] * rf
        return jax.random.normal(k, shape, dtype) * math.sqrt(2.0 / (fan_in + fan_out))

    bound1 = 1.0 / math.sqrt(d_model)
    bound2 = 1.0 / math.sqrt(d_ff)
    return {
        "wq": xavier_normal(ks[0], (n_head, d_model, d_qkv)),
        "wk": xavier_normal(ks[1], (n_head, d_model, d_qkv)),
        "wv": xavier_normal(ks[2], (n_head, d_model, d_qkv)),
        "wo": xavier_normal(ks[3], (n_head, d_qkv, d_model)),
        # Linear weights stored transposed vs torch.nn.Linear (kernels do x @ W).
        "w1": jax.random.uniform(ks[4], (d_model, d_ff), dtype, -bound1, bound1),
        "b1": jax.random.uniform(ks[5], (d_ff,), dtype, -bound1, bound1),
        "w2": jax.random.uniform(ks[6], (d_ff, d_model), dtype, -bound2, bound2),
        "b2": jax.random.uniform(ks[7], (d_model,), dtype, -bound2, bound2),
        "ln0_g": jax.random.uniform(ks[8], (d_model,), dtype, 0.9, 1.1),
        "ln0_b": jax.random.uniform(ks[9], (d_model,), dtype, -0.1, 0.1),
        "ln1_g": jax.random.uniform(ks[10], (d_model,), dtype, 0.9, 1.1),
        "ln1_b": jax.random.uniform(ks[11], (d_model,), dtype, -0.1, 0.1),
    }


def encoder_layer_ref(x, mask, p):
    def ln(v, g, b, eps=1e-5):
        mu = jnp.mean(v, -1, keepdims=True)
        var = jnp.mean((v - mu) ** 2, -1, keepdims=True)
        return (v - mu) * lax.rsqrt(var + eps) * g + b

    d_qkv = p["wq"].shape[-1]
    q = jnp.einsum("bld,hdk->bhlk", x, p["wq"])
    k = jnp.einsum("bld,hdk->bhlk", x, p["wk"])
    v = jnp.einsum("bld,hdk->bhlk", x, p["wv"])
    s = jnp.einsum("bhlk,bhmk->bhlm", q, k) / math.sqrt(d_qkv)
    s = jnp.where((mask == 0)[:, None, None, :], -1e9, s)
    pa = jax.nn.softmax(s, axis=-1)
    ctx = jnp.einsum("bhlm,bhmk->bhlk", pa, v)
    attn = jnp.einsum("bhlk,hkd->bld", ctx, p["wo"])
    x1 = ln(x + attn, p["ln0_g"], p["ln0_b"])
    h = jnp.maximum(x1 @ p["w1"] + p["b1"], 0.0)
    y = h @ p["w2"] + p["b2"]
    return ln(x1 + y, p["ln1_g"], p["ln1_b"])


if __name__ == "__main__":
    d_model, d_ff, n_head, d_qkv = 256, 1024, 4, 32   # module defaults (small)
    batch, seq = 2, 8

    key = jax.random.PRNGKey(0)
    kx, kp = jax.random.split(key)
    x = jax.random.normal(kx, (batch, seq, d_model), dtype=jnp.float32)
    mask = jnp.ones((batch, seq), dtype=jnp.float32).at[1, seq - 3:].set(0.0)
    params = init_params(kp, d_model, d_ff, n_head, d_qkv)

    y = encoder_layer(x, mask, params)
    y = jax.block_until_ready(y)

    y_ref = encoder_layer_ref(x, mask, params)
    assert y.shape == x.shape and y.dtype == x.dtype
    err = float(jnp.max(jnp.abs(y - y_ref)))
    assert err < 7.5e-2, f"max abs err vs f32 reference: {err}"  # bf16-matmul tolerance

    print("KERNEL_OK")
</pallas_src>

<mosaic_0001>
module attributes {stable_mosaic.version = 11 : i64} {
  func.func @attn_ln_kernel(%arg0: i32, %arg1: memref<1x8x256xf32, #tpu.memory_space<vmem>>, %arg2: memref<1x1x8xf32, #tpu.memory_space<vmem>>, %arg3: memref<4x256x32xbf16, #tpu.memory_space<vmem>>, %arg4: memref<4x256x32xbf16, #tpu.memory_space<vmem>>, %arg5: memref<4x256x32xbf16, #tpu.memory_space<vmem>>, %arg6: memref<4x32x256xbf16, #tpu.memory_space<vmem>>, %arg7: memref<1x256xf32, #tpu.memory_space<vmem>>, %arg8: memref<1x256xf32, #tpu.memory_space<vmem>>, %arg9: memref<1x8x256xf32, #tpu.memory_space<vmem>>) attributes {dimension_semantics = [#tpu.dimension_semantics<parallel>], iteration_bounds = array<i64: 2>, scalar_prefetch = 0 : i64, scratch_operands = 0 : i64, tpu.core_type = #tpu.core_type<tc>, window_params = [{transform_indices = @transform_0, window_bounds = array<i64: 1, 8, 256>}, {transform_indices = @transform_1, window_bounds = array<i64: 1, 1, 8>}, {pipeline_mode = #tpu.pipeline_mode<synchronous>, transform_indices = @transform_2, window_bounds = array<i64: 4, 256, 32>}, {pipeline_mode = #tpu.pipeline_mode<synchronous>, transform_indices = @transform_3, window_bounds = array<i64: 4, 256, 32>}, {pipeline_mode = #tpu.pipeline_mode<synchronous>, transform_indices = @transform_4, window_bounds = array<i64: 4, 256, 32>}, {pipeline_mode = #tpu.pipeline_mode<synchronous>, transform_indices = @transform_5, window_bounds = array<i64: 4, 32, 256>}, {pipeline_mode = #tpu.pipeline_mode<synchronous>, transform_indices = @transform_6, window_bounds = array<i64: 1, 256>}, {pipeline_mode = #tpu.pipeline_mode<synchronous>, transform_indices = @transform_7, window_bounds = array<i64: 1, 256>}, {transform_indices = @transform_8, window_bounds = array<i64: 1, 8, 256>}]} {
    %c0 = arith.constant 0 : index
    %c0_0 = arith.constant 0 : index
    %c0_1 = arith.constant 0 : index
    %0 = vector.load %arg1[%c0, %c0_0, %c0_1] : memref<1x8x256xf32, #tpu.memory_space<vmem>>, vector<1x8x256xf32>
    %1 = vector.shape_cast %0 : vector<1x8x256xf32> to vector<8x256xf32>
    %2 = arith.truncf %1 : vector<8x256xf32> to vector<8x256xbf16>
    %c0_2 = arith.constant 0 : index
    %c0_3 = arith.constant 0 : index
    %c0_4 = arith.constant 0 : index
    %3 = vector.load %arg2[%c0_2, %c0_3, %c0_4] : memref<1x1x8xf32, #tpu.memory_space<vmem>>, vector<1x1x8xf32>
    %4 = vector.shape_cast %3 : vector<1x1x8xf32> to vector<1x8xf32>
    %cst = arith.constant 0.000000e+00 : f32
    %5 = vector.broadcast %cst : f32 to vector<8x256xf32>
    %c0_5 = arith.constant 0 : index
    %c0_6 = arith.constant 0 : index
    %c0_7 = arith.constant 0 : index
    %6 = vector.load %arg3[%c0_5, %c0_6, %c0_7] : memref<4x256x32xbf16, #tpu.memory_space<vmem>>, vector<1x256x32xbf16>
    %7 = vector.shape_cast %6 : vector<1x256x32xbf16> to vector<256x32xbf16>
    %cst_8 = arith.constant dense<0.000000e+00> : vector<8x32xf32>
    %8 = tpu.matmul %2, %7, %cst_8 {dimension_numbers = #tpu.dot_dimension_numbers<[1], [0], [0], [1], [0, 0, 1, 1], [], []>} : vector<8x256xbf16>, vector<256x32xbf16>, vector<8x32xf32> -> vector<8x32xf32>
    %c0_9 = arith.constant 0 : index
    %c0_10 = arith.constant 0 : index
    %c0_11 = arith.constant 0 : index
    %9 = vector.load %arg4[%c0_9, %c0_10, %c0_11] : memref<4x256x32xbf16, #tpu.memory_space<vmem>>, vector<1x256x32xbf16>
    %10 = vector.shape_cast %9 : vector<1x256x32xbf16> to vector<256x32xbf16>
    %cst_12 = arith.constant dense<0.000000e+00> : vector<8x32xf32>
    %11 = tpu.matmul %2, %10, %cst_12 {dimension_numbers = #tpu.dot_dimension_numbers<[1], [0], [0], [1], [0, 0, 1, 1], [], []>} : vector<8x256xbf16>, vector<256x32xbf16>, vector<8x32xf32> -> vector<8x32xf32>
    %c0_13 = arith.constant 0 : index
    %c0_14 = arith.constant 0 : index
    %c0_15 = arith.constant 0 : index
    %12 = vector.load %arg5[%c0_13, %c0_14, %c0_15] : memref<4x256x32xbf16, #tpu.memory_space<vmem>>, vector<1x256x32xbf16>
    %13 = vector.shape_cast %12 : vector<1x256x32xbf16> to vector<256x32xbf16>
    %cst_16 = arith.constant dense<0.000000e+00> : vector<8x32xf32>
    %14 = tpu.matmul %2, %13, %cst_16 {dimension_numbers = #tpu.dot_dimension_numbers<[1], [0], [0], [1], [0, 0, 1, 1], [], []>} : vector<8x256xbf16>, vector<256x32xbf16>, vector<8x32xf32> -> vector<8x32xf32>
    %15 = arith.truncf %8 : vector<8x32xf32> to vector<8x32xbf16>
    %16 = arith.truncf %11 : vector<8x32xf32> to vector<8x32xbf16>
    %cst_17 = arith.constant dense<0.000000e+00> : vector<8x8xf32>
    %17 = tpu.matmul %15, %16, %cst_17 {dimension_numbers = #tpu.dot_dimension_numbers<[1], [1], [0], [0], [0, 0, 1, 0], [], []>} : vector<8x32xbf16>, vector<8x32xbf16>, vector<8x8xf32> -> vector<8x8xf32>
    %cst_18 = arith.constant 0.176776692 : f32
    %18 = vector.broadcast %cst_18 : f32 to vector<8x8xf32>
    %19 = arith.mulf %17, %18 : vector<8x8xf32>
    %cst_19 = arith.constant 0.000000e+00 : f32
    %20 = vector.broadcast %cst_19 : f32 to vector<1x8xf32>
    %21 = arith.cmpf oeq, %4, %20 : vector<1x8xf32>
    %cst_20 = arith.constant -1.000000e+09 : f32
    %22 = vector.shape_cast %21 : vector<1x8xi1> to vector<1x8xi1>
    %23 = vector.broadcast %22 : vector<1x8xi1> to vector<8x8xi1>
    %24 = vector.broadcast %cst_20 : f32 to vector<8x8xf32>
    %25 = arith.select %23, %24, %19 : vector<8x8xi1>, vector<8x8xf32>
    %cst_21 = arith.constant dense<0xFF800000> : vector<8xf32>
    %26 = vector.multi_reduction <maximumf>, %25, %cst_21 [1] : vector<8x8xf32> to vector<8xf32>
    %27 = vector.shape_cast %26 : vector<8xf32> to vector<8x1xf32>
    %28 = vector.broadcast %27 : vector<8x1xf32> to vector<8x8xf32>
    %29 = arith.subf %25, %28 : vector<8x8xf32>
    %30 = math.exp %29 : vector<8x8xf32>
    %cst_22 = arith.constant dense<0.000000e+00> : vector<8xf32>
    %31 = vector.multi_reduction <add>, %30, %cst_22 [1] : vector<8x8xf32> to vector<8xf32>
    %32 = vector.shape_cast %31 : vector<8xf32> to vector<8x1xf32>
    %33 = vector.broadcast %32 : vector<8x1xf32> to vector<8x8xf32>
    %34 = arith.divf %30, %33 : vector<8x8xf32>
    %35 = arith.truncf %34 : vector<8x8xf32> to vector<8x8xbf16>
    %36 = arith.truncf %14 : vector<8x32xf32> to vector<8x32xbf16>
    %cst_23 = arith.constant dense<0.000000e+00> : vector<8x32xf32>
    %37 = tpu.matmul %35, %36, %cst_23 {dimension_numbers = #tpu.dot_dimension_numbers<[1], [0], [0], [1], [0, 0, 1, 1], [], []>} : vector<8x8xbf16>, vector<8x32xbf16>, vector<8x32xf32> -> vector<8x32xf32>
    %38 = arith.truncf %37 : vector<8x32xf32> to vector<8x32xbf16>
    %c0_24 = arith.constant 0 : index
    %c0_25 = arith.constant 0 : index
    %c0_26 = arith.constant 0 : index
    %39 = vector.load %arg6[%c0_24, %c0_25, %c0_26] : memref<4x32x256xbf16, #tpu.memory_space<vmem>>, vector<1x32x256xbf16>
    %40 = vector.shape_cast %39 : vector<1x32x256xbf16> to vector<32x256xbf16>
    %cst_27 = arith.constant dense<0.000000e+00> : vector<8x256xf32>
    %41 = tpu.matmul %38, %40, %cst_27 {dimension_numbers = #tpu.dot_dimension_numbers<[1], [0], [0], [1], [0, 0, 1, 1], [], []>} : vector<8x32xbf16>, vector<32x256xbf16>, vector<8x256xf32> -> vector<8x256xf32>
    %42 = arith.addf %5, %41 : vector<8x256xf32>
    %c1 = arith.constant 1 : index
    %c0_28 = arith.constant 0 : index
    %c0_29 = arith.constant 0 : index
    %43 = vector.load %arg3[%c1, %c0_28, %c0_29] : memref<4x256x32xbf16, #tpu.memory_space<vmem>>, vector<1x256x32xbf16>
    %44 = vector.shape_cast %43 : vector<1x256x32xbf16> to vector<256x32xbf16>
    %cst_30 = arith.constant dense<0.000000e+00> : vector<8x32xf32>
    %45 = tpu.matmul %2, %44, %cst_30 {dimension_numbers = #tpu.dot_dimension_numbers<[1], [0], [0], [1], [0, 0, 1, 1], [], []>} : vector<8x256xbf16>, vector<256x32xbf16>, vector<8x32xf32> -> vector<8x32xf32>
    %c1_31 = arith.constant 1 : index
    %c0_32 = arith.constant 0 : index
    %c0_33 = arith.constant 0 : index
    %46 = vector.load %arg4[%c1_31, %c0_32, %c0_33] : memref<4x256x32xbf16, #tpu.memory_space<vmem>>, vector<1x256x32xbf16>
    %47 = vector.shape_cast %46 : vector<1x256x32xbf16> to vector<256x32xbf16>
    %cst_34 = arith.constant dense<0.000000e+00> : vector<8x32xf32>
    %48 = tpu.matmul %2, %47, %cst_34 {dimension_numbers = #tpu.dot_dimension_numbers<[1], [0], [0], [1], [0, 0, 1, 1], [], []>} : vector<8x256xbf16>, vector<256x32xbf16>, vector<8x32xf32> -> vector<8x32xf32>
    %c1_35 = arith.constant 1 : index
    %c0_36 = arith.constant 0 : index
    %c0_37 = arith.constant 0 : index
    %49 = vector.load %arg5[%c1_35, %c0_36, %c0_37] : memref<4x256x32xbf16, #tpu.memory_space<vmem>>, vector<1x256x32xbf16>
    %50 = vector.shape_cast %49 : vector<1x256x32xbf16> to vector<256x32xbf16>
    %cst_38 = arith.constant dense<0.000000e+00> : vector<8x32xf32>
    %51 = tpu.matmul %2, %50, %cst_38 {dimension_numbers = #tpu.dot_dimension_numbers<[1], [0], [0], [1], [0, 0, 1, 1], [], []>} : vector<8x256xbf16>, vector<256x32xbf16>, vector<8x32xf32> -> vector<8x32xf32>
    %52 = arith.truncf %45 : vector<8x32xf32> to vector<8x32xbf16>
    %53 = arith.truncf %48 : vector<8x32xf32> to vector<8x32xbf16>
    %cst_39 = arith.constant dense<0.000000e+00> : vector<8x8xf32>
    %54 = tpu.matmul %52, %53, %cst_39 {dimension_numbers = #tpu.dot_dimension_numbers<[1], [1], [0], [0], [0, 0, 1, 0], [], []>} : vector<8x32xbf16>, vector<8x32xbf16>, vector<8x8xf32> -> vector<8x8xf32>
    %cst_40 = arith.constant 0.176776692 : f32
    %55 = vector.broadcast %cst_40 : f32 to vector<8x8xf32>
    %56 = arith.mulf %54, %55 : vector<8x8xf32>
    %cst_41 = arith.constant 0.000000e+00 : f32
    %57 = vector.broadcast %cst_41 : f32 to vector<1x8xf32>
    %58 = arith.cmpf oeq, %4, %57 : vector<1x8xf32>
    %cst_42 = arith.constant -1.000000e+09 : f32
    %59 = vector.shape_cast %58 : vector<1x8xi1> to vector<1x8xi1>
    %60 = vector.broadcast %59 : vector<1x8xi1> to vector<8x8xi1>
    %61 = vector.broadcast %cst_42 : f32 to vector<8x8xf32>
    %62 = arith.select %60, %61, %56 : vector<8x8xi1>, vector<8x8xf32>
    %cst_43 = arith.constant dense<0xFF800000> : vector<8xf32>
    %63 = vector.multi_reduction <maximumf>, %62, %cst_43 [1] : vector<8x8xf32> to vector<8xf32>
    %64 = vector.shape_cast %63 : vector<8xf32> to vector<8x1xf32>
    %65 = vector.broadcast %64 : vector<8x1xf32> to vector<8x8xf32>
    %66 = arith.subf %62, %65 : vector<8x8xf32>
    %67 = math.exp %66 : vector<8x8xf32>
    %cst_44 = arith.constant dense<0.000000e+00> : vector<8xf32>
    %68 = vector.multi_reduction <add>, %67, %cst_44 [1] : vector<8x8xf32> to vector<8xf32>
    %69 = vector.shape_cast %68 : vector<8xf32> to vector<8x1xf32>
    %70 = vector.broadcast %69 : vector<8x1xf32> to vector<8x8xf32>
    %71 = arith.divf %67, %70 : vector<8x8xf32>
    %72 = arith.truncf %71 : vector<8x8xf32> to vector<8x8xbf16>
    %73 = arith.truncf %51 : vector<8x32xf32> to vector<8x32xbf16>
    %cst_45 = arith.constant dense<0.000000e+00> : vector<8x32xf32>
    %74 = tpu.matmul %72, %73, %cst_45 {dimension_numbers = #tpu.dot_dimension_numbers<[1], [0], [0], [1], [0, 0, 1, 1], [], []>} : vector<8x8xbf16>, vector<8x32xbf16>, vector<8x32xf32> -> vector<8x32xf32>
    %75 = arith.truncf %74 : vector<8x32xf32> to vector<8x32xbf16>
    %c1_46 = arith.constant 1 : index
    %c0_47 = arith.constant 0 : index
    %c0_48 = arith.constant 0 : index
    %76 = vector.load %arg6[%c1_46, %c0_47, %c0_48] : memref<4x32x256xbf16, #tpu.memory_space<vmem>>, vector<1x32x256xbf16>
    %77 = vector.shape_cast %76 : vector<1x32x256xbf16> to vector<32x256xbf16>
    %cst_49 = arith.constant dense<0.000000e+00> : vector<8x256xf32>
    %78 = tpu.matmul %75, %77, %cst_49 {dimension_numbers = #tpu.dot_dimension_numbers<[1], [0], [0], [1], [0, 0, 1, 1], [], []>} : vector<8x32xbf16>, vector<32x256xbf16>, vector<8x256xf32> -> vector<8x256xf32>
    %79 = arith.addf %42, %78 : vector<8x256xf32>
    %c2 = arith.constant 2 : index
    %c0_50 = arith.constant 0 : index
    %c0_51 = arith.constant 0 : index
    %80 = vector.load %arg3[%c2, %c0_50, %c0_51] : memref<4x256x32xbf16, #tpu.memory_space<vmem>>, vector<1x256x32xbf16>
    %81 = vector.shape_cast %80 : vector<1x256x32xbf16> to vector<256x32xbf16>
    %cst_52 = arith.constant dense<0.000000e+00> : vector<8x32xf32>
    %82 = tpu.matmul %2, %81, %cst_52 {dimension_numbers = #tpu.dot_dimension_numbers<[1], [0], [0], [1], [0, 0, 1, 1], [], []>} : vector<8x256xbf16>, vector<256x32xbf16>, vector<8x32xf32> -> vector<8x32xf32>
    %c2_53 = arith.constant 2 : index
    %c0_54 = arith.constant 0 : index
    %c0_55 = arith.constant 0 : index
    %83 = vector.load %arg4[%c2_53, %c0_54, %c0_55] : memref<4x256x32xbf16, #tpu.memory_space<vmem>>, vector<1x256x32xbf16>
    %84 = vector.shape_cast %83 : vector<1x256x32xbf16> to vector<256x32xbf16>
    %cst_56 = arith.constant dense<0.000000e+00> : vector<8x32xf32>
    %85 = tpu.matmul %2, %84, %cst_56 {dimension_numbers = #tpu.dot_dimension_numbers<[1], [0], [0], [1], [0, 0, 1, 1], [], []>} : vector<8x256xbf16>, vector<256x32xbf16>, vector<8x32xf32> -> vector<8x32xf32>
    %c2_57 = arith.constant 2 : index
    %c0_58 = arith.constant 0 : index
    %c0_59 = arith.constant 0 : index
    %86 = vector.load %arg5[%c2_57, %c0_58, %c0_59] : memref<4x256x32xbf16, #tpu.memory_space<vmem>>, vector<1x256x32xbf16>
    %87 = vector.shape_cast %86 : vector<1x256x32xbf16> to vector<256x32xbf16>
    %cst_60 = arith.constant dense<0.000000e+00> : vector<8x32xf32>
    %88 = tpu.matmul %2, %87, %cst_60 {dimension_numbers = #tpu.dot_dimension_numbers<[1], [0], [0], [1], [0, 0, 1, 1], [], []>} : vector<8x256xbf16>, vector<256x32xbf16>, vector<8x32xf32> -> vector<8x32xf32>
    %89 = arith.truncf %82 : vector<8x32xf32> to vector<8x32xbf16>
    %90 = arith.truncf %85 : vector<8x32xf32> to vector<8x32xbf16>
    %cst_61 = arith.constant dense<0.000000e+00> : vector<8x8xf32>
    %91 = tpu.matmul %89, %90, %cst_61 {dimension_numbers = #tpu.dot_dimension_numbers<[1], [1], [0], [0], [0, 0, 1, 0], [], []>} : vector<8x32xbf16>, vector<8x32xbf16>, vector<8x8xf32> -> vector<8x8xf32>
    %cst_62 = arith.constant 0.176776692 : f32
    %92 = vector.broadcast %cst_62 : f32 to vector<8x8xf32>
    %93 = arith.mulf %91, %92 : vector<8x8xf32>
    %cst_63 = arith.constant 0.000000e+00 : f32
    %94 = vector.broadcast %cst_63 : f32 to vector<1x8xf32>
    %95 = arith.cmpf oeq, %4, %94 : vector<1x8xf32>
    %cst_64 = arith.constant -1.000000e+09 : f32
    %96 = vector.shape_cast %95 : vector<1x8xi1> to vector<1x8xi1>
    %97 = vector.broadcast %96 : vector<1x8xi1> to vector<8x8xi1>
    %98 = vector.broadcast %cst_64 : f32 to vector<8x8xf32>
    %99 = arith.select %97, %98, %93 : vector<8x8xi1>, vector<8x8xf32>
    %cst_65 = arith.constant dense<0xFF800000> : vector<8xf32>
    %100 = vector.multi_reduction <maximumf>, %99, %cst_65 [1] : vector<8x8xf32> to vector<8xf32>
    %101 = vector.shape_cast %100 : vector<8xf32> to vector<8x1xf32>
    %102 = vector.broadcast %101 : vector<8x1xf32> to vector<8x8xf32>
    %103 = arith.subf %99, %102 : vector<8x8xf32>
    %104 = math.exp %103 : vector<8x8xf32>
    %cst_66 = arith.constant dense<0.000000e+00> : vector<8xf32>
    %105 = vector.multi_reduction <add>, %104, %cst_66 [1] : vector<8x8xf32> to vector<8xf32>
    %106 = vector.shape_cast %105 : vector<8xf32> to vector<8x1xf32>
    %107 = vector.broadcast %106 : vector<8x1xf32> to vector<8x8xf32>
    %108 = arith.divf %104, %107 : vector<8x8xf32>
    %109 = arith.truncf %108 : vector<8x8xf32> to vector<8x8xbf16>
    %110 = arith.truncf %88 : vector<8x32xf32> to vector<8x32xbf16>
    %cst_67 = arith.constant dense<0.000000e+00> : vector<8x32xf32>
    %111 = tpu.matmul %109, %110, %cst_67 {dimension_numbers = #tpu.dot_dimension_numbers<[1], [0], [0], [1], [0, 0, 1, 1], [], []>} : vector<8x8xbf16>, vector<8x32xbf16>, vector<8x32xf32> -> vector<8x32xf32>
    %112 = arith.truncf %111 : vector<8x32xf32> to vector<8x32xbf16>
    %c2_68 = arith.constant 2 : index
    %c0_69 = arith.constant 0 : index
    %c0_70 = arith.constant 0 : index
    %113 = vector.load %arg6[%c2_68, %c0_69, %c0_70] : memref<4x32x256xbf16, #tpu.memory_space<vmem>>, vector<1x32x256xbf16>
    %114 = vector.shape_cast %113 : vector<1x32x256xbf16> to vector<32x256xbf16>
    %cst_71 = arith.constant dense<0.000000e+00> : vector<8x256xf32>
    %115 = tpu.matmul %112, %114, %cst_71 {dimension_numbers = #tpu.dot_dimension_numbers<[1], [0], [0], [1], [0, 0, 1, 1], [], []>} : vector<8x32xbf16>, vector<32x256xbf16>, vector<8x256xf32> -> vector<8x256xf32>
    %116 = arith.addf %79, %115 : vector<8x256xf32>
    %c3 = arith.constant 3 : index
    %c0_72 = arith.constant 0 : index
    %c0_73 = arith.constant 0 : index
    %117 = vector.load %arg3[%c3, %c0_72, %c0_73] : memref<4x256x32xbf16, #tpu.memory_space<vmem>>, vector<1x256x32xbf16>
    %118 = vector.shape_cast %117 : vector<1x256x32xbf16> to vector<256x32xbf16>
    %cst_74 = arith.constant dense<0.000000e+00> : vector<8x32xf32>
    %119 = tpu.matmul %2, %118, %cst_74 {dimension_numbers = #tpu.dot_dimension_numbers<[1], [0], [0], [1], [0, 0, 1, 1], [], []>} : vector<8x256xbf16>, vector<256x32xbf16>, vector<8x32xf32> -> vector<8x32xf32>
    %c3_75 = arith.constant 3 : index
    %c0_76 = arith.constant 0 : index
    %c0_77 = arith.constant 0 : index
    %120 = vector.load %arg4[%c3_75, %c0_76, %c0_77] : memref<4x256x32xbf16, #tpu.memory_space<vmem>>, vector<1x256x32xbf16>
    %121 = vector.shape_cast %120 : vector<1x256x32xbf16> to vector<256x32xbf16>
    %cst_78 = arith.constant dense<0.000000e+00> : vector<8x32xf32>
    %122 = tpu.matmul %2, %121, %cst_78 {dimension_numbers = #tpu.dot_dimension_numbers<[1], [0], [0], [1], [0, 0, 1, 1], [], []>} : vector<8x256xbf16>, vector<256x32xbf16>, vector<8x32xf32> -> vector<8x32xf32>
    %c3_79 = arith.constant 3 : index
    %c0_80 = arith.constant 0 : index
    %c0_81 = arith.constant 0 : index
    %123 = vector.load %arg5[%c3_79, %c0_80, %c0_81] : memref<4x256x32xbf16, #tpu.memory_space<vmem>>, vector<1x256x32xbf16>
    %124 = vector.shape_cast %123 : vector<1x256x32xbf16> to vector<256x32xbf16>
    %cst_82 = arith.constant dense<0.000000e+00> : vector<8x32xf32>
    %125 = tpu.matmul %2, %124, %cst_82 {dimension_numbers = #tpu.dot_dimension_numbers<[1], [0], [0], [1], [0, 0, 1, 1], [], []>} : vector<8x256xbf16>, vector<256x32xbf16>, vector<8x32xf32> -> vector<8x32xf32>
    %126 = arith.truncf %119 : vector<8x32xf32> to vector<8x32xbf16>
    %127 = arith.truncf %122 : vector<8x32xf32> to vector<8x32xbf16>
    %cst_83 = arith.constant dense<0.000000e+00> : vector<8x8xf32>
    %128 = tpu.matmul %126, %127, %cst_83 {dimension_numbers = #tpu.dot_dimension_numbers<[1], [1], [0], [0], [0, 0, 1, 0], [], []>} : vector<8x32xbf16>, vector<8x32xbf16>, vector<8x8xf32> -> vector<8x8xf32>
    %cst_84 = arith.constant 0.176776692 : f32
    %129 = vector.broadcast %cst_84 : f32 to vector<8x8xf32>
    %130 = arith.mulf %128, %129 : vector<8x8xf32>
    %cst_85 = arith.constant 0.000000e+00 : f32
    %131 = vector.broadcast %cst_85 : f32 to vector<1x8xf32>
    %132 = arith.cmpf oeq, %4, %131 : vector<1x8xf32>
    %cst_86 = arith.constant -1.000000e+09 : f32
    %133 = vector.shape_cast %132 : vector<1x8xi1> to vector<1x8xi1>
    %134 = vector.broadcast %133 : vector<1x8xi1> to vector<8x8xi1>
    %135 = vector.broadcast %cst_86 : f32 to vector<8x8xf32>
    %136 = arith.select %134, %135, %130 : vector<8x8xi1>, vector<8x8xf32>
    %cst_87 = arith.constant dense<0xFF800000> : vector<8xf32>
    %137 = vector.multi_reduction <maximumf>, %136, %cst_87 [1] : vector<8x8xf32> to vector<8xf32>
    %138 = vector.shape_cast %137 : vector<8xf32> to vector<8x1xf32>
    %139 = vector.broadcast %138 : vector<8x1xf32> to vector<8x8xf32>
    %140 = arith.subf %136, %139 : vector<8x8xf32>
    %141 = math.exp %140 : vector<8x8xf32>
    %cst_88 = arith.constant dense<0.000000e+00> : vector<8xf32>
    %142 = vector.multi_reduction <add>, %141, %cst_88 [1] : vector<8x8xf32> to vector<8xf32>
    %143 = vector.shape_cast %142 : vector<8xf32> to vector<8x1xf32>
    %144 = vector.broadcast %143 : vector<8x1xf32> to vector<8x8xf32>
    %145 = arith.divf %141, %144 : vector<8x8xf32>
    %146 = arith.truncf %145 : vector<8x8xf32> to vector<8x8xbf16>
    %147 = arith.truncf %125 : vector<8x32xf32> to vector<8x32xbf16>
    %cst_89 = arith.constant dense<0.000000e+00> : vector<8x32xf32>
    %148 = tpu.matmul %146, %147, %cst_89 {dimension_numbers = #tpu.dot_dimension_numbers<[1], [0], [0], [1], [0, 0, 1, 1], [], []>} : vector<8x8xbf16>, vector<8x32xbf16>, vector<8x32xf32> -> vector<8x32xf32>
    %149 = arith.truncf %148 : vector<8x32xf32> to vector<8x32xbf16>
    %c3_90 = arith.constant 3 : index
    %c0_91 = arith.constant 0 : index
    %c0_92 = arith.constant 0 : index
    %150 = vector.load %arg6[%c3_90, %c0_91, %c0_92] : memref<4x32x256xbf16, #tpu.memory_space<vmem>>, vector<1x32x256xbf16>
    %151 = vector.shape_cast %150 : vector<1x32x256xbf16> to vector<32x256xbf16>
    %cst_93 = arith.constant dense<0.000000e+00> : vector<8x256xf32>
    %152 = tpu.matmul %149, %151, %cst_93 {dimension_numbers = #tpu.dot_dimension_numbers<[1], [0], [0], [1], [0, 0, 1, 1], [], []>} : vector<8x32xbf16>, vector<32x256xbf16>, vector<8x256xf32> -> vector<8x256xf32>
    %153 = arith.addf %116, %152 : vector<8x256xf32>
    %154 = arith.addf %1, %153 : vector<8x256xf32>
    %cst_94 = arith.constant dense<0.000000e+00> : vector<8xf32>
    %155 = vector.multi_reduction <add>, %154, %cst_94 [1] : vector<8x256xf32> to vector<8xf32>
    %156 = vector.shape_cast %155 : vector<8xf32> to vector<8x1xf32>
    %cst_95 = arith.constant 2.560000e+02 : f32
    %157 = vector.broadcast %cst_95 : f32 to vector<8x1xf32>
    %158 = arith.divf %156, %157 : vector<8x1xf32>
    %159 = vector.broadcast %158 : vector<8x1xf32> to vector<8x256xf32>
    %160 = arith.subf %154, %159 : vector<8x256xf32>
    %161 = arith.mulf %160, %160 : vector<8x256xf32>
    %cst_96 = arith.constant dense<0.000000e+00> : vector<8xf32>
    %162 = vector.multi_reduction <add>, %161, %cst_96 [1] : vector<8x256xf32> to vector<8xf32>
    %163 = vector.shape_cast %162 : vector<8xf32> to vector<8x1xf32>
    %cst_97 = arith.constant 2.560000e+02 : f32
    %164 = vector.broadcast %cst_97 : f32 to vector<8x1xf32>
    %165 = arith.divf %163, %164 : vector<8x1xf32>
    %166 = vector.broadcast %158 : vector<8x1xf32> to vector<8x256xf32>
    %167 = arith.subf %154, %166 : vector<8x256xf32>
    %cst_98 = arith.constant 9.99999974E-6 : f32
    %168 = vector.broadcast %cst_98 : f32 to vector<8x1xf32>
    %169 = arith.addf %165, %168 : vector<8x1xf32>
    %170 = math.rsqrt %169 : vector<8x1xf32>
    %171 = vector.broadcast %170 : vector<8x1xf32> to vector<8x256xf32>
    %172 = arith.mulf %167, %171 : vector<8x256xf32>
    %c0_99 = arith.constant 0 : index
    %c0_100 = arith.constant 0 : index
    %173 = vector.load %arg7[%c0_99, %c0_100] : memref<1x256xf32, #tpu.memory_space<vmem>>, vector<1x256xf32>
    %174 = vector.broadcast %173 : vector<1x256xf32> to vector<8x256xf32>
    %175 = arith.mulf %172, %174 : vector<8x256xf32>
    %c0_101 = arith.constant 0 : index
    %c0_102 = arith.constant 0 : index
    %176 = vector.load %arg8[%c0_101, %c0_102] : memref<1x256xf32, #tpu.memory_space<vmem>>, vector<1x256xf32>
    %177 = vector.broadcast %176 : vector<1x256xf32> to vector<8x256xf32>
    %178 = arith.addf %175, %177 : vector<8x256xf32>
    %c0_103 = arith.constant 0 : index
    %c0_104 = arith.constant 0 : index
    %c0_105 = arith.constant 0 : index
    %179 = vector.load %arg9[%c0_103, %c0_104, %c0_105] : memref<1x8x256xf32, #tpu.memory_space<vmem>>, vector<1x8x256xf32>
    %180 = vector.shape_cast %179 : vector<1x8x256xf32> to vector<8x256xf32>
    %181 = vector.shape_cast %178 : vector<8x256xf32> to vector<1x8x256xf32>
    tpu.vector_store %arg9[%c0_103, %c0_104, %c0_105], %181 {strides = array<i32>} : memref<1x8x256xf32, #tpu.memory_space<vmem>>, vector<1x8x256xf32>,
    return
  }
  func.func @transform_0(%arg0: i32) -> (i32, i32, i32) {
    %c0_i32 = arith.constant 0 : i32
    %c0_i32_0 = arith.constant 0 : i32
    %c0_i32_1 = arith.constant 0 : i32
    return %arg0, %c0_i32, %c0_i32_0 : i32, i32, i32
  }
  func.func @transform_1(%arg0: i32) -> (i32, i32, i32) {
    %c0_i32 = arith.constant 0 : i32
    %c0_i32_0 = arith.constant 0 : i32
    %c0_i32_1 = arith.constant 0 : i32
    return %arg0, %c0_i32, %c0_i32_0 : i32, i32, i32
  }
  func.func @transform_2(%arg0: i32) -> (i32, i32, i32) {
    %c0_i32 = arith.constant 0 : i32
    %c0_i32_0 = arith.constant 0 : i32
    %c0_i32_1 = arith.constant 0 : i32
    %c0_i32_2 = arith.constant 0 : i32
    return %c0_i32, %c0_i32_0, %c0_i32_1 : i32, i32, i32
  }
  func.func @transform_3(%arg0: i32) -> (i32, i32, i32) {
    %c0_i32 = arith.constant 0 : i32
    %c0_i32_0 = arith.constant 0 : i32
    %c0_i32_1 = arith.constant 0 : i32
    %c0_i32_2 = arith.constant 0 : i32
    return %c0_i32, %c0_i32_0, %c0_i32_1 : i32, i32, i32
  }
  func.func @transform_4(%arg0: i32) -> (i32, i32, i32) {
    %c0_i32 = arith.constant 0 : i32
    %c0_i32_0 = arith.constant 0 : i32
    %c0_i32_1 = arith.constant 0 : i32
    %c0_i32_2 = arith.constant 0 : i32
    return %c0_i32, %c0_i32_0, %c0_i32_1 : i32, i32, i32
  }
  func.func @transform_5(%arg0: i32) -> (i32, i32, i32) {
    %c0_i32 = arith.constant 0 : i32
    %c0_i32_0 = arith.constant 0 : i32
    %c0_i32_1 = arith.constant 0 : i32
    %c0_i32_2 = arith.constant 0 : i32
    return %c0_i32, %c0_i32_0, %c0_i32_1 : i32, i32, i32
  }
  func.func @transform_6(%arg0: i32) -> (i32, i32) {
    %c0_i32 = arith.constant 0 : i32
    %c0_i32_0 = arith.constant 0 : i32
    %c0_i32_1 = arith.constant 0 : i32
    return %c0_i32, %c0_i32_0 : i32, i32
  }
  func.func @transform_7(%arg0: i32) -> (i32, i32) {
    %c0_i32 = arith.constant 0 : i32
    %c0_i32_0 = arith.constant 0 : i32
    %c0_i32_1 = arith.constant 0 : i32
    return %c0_i32, %c0_i32_0 : i32, i32
  }
  func.func @transform_8(%arg0: i32) -> (i32, i32, i32) {
    %c0_i32 = arith.constant 0 : i32
    %c0_i32_0 = arith.constant 0 : i32
    %c0_i32_1 = arith.constant 0 : i32
    return %arg0, %c0_i32, %c0_i32_0 : i32, i32, i32
  }
}

</mosaic_0001>

<llo_original>
// kernel: tpu_custom_call.1
$region0: #{tpu_custom_call.1}
  #allocation0 [shape = 'u32[]', space=smem, size = 0x4, offset = 0x4, fixed_abs, tag = 'smem constant byte address 0x4 - core index']
  #allocation1 [shape = 'u32[144,128]{1,0:T(1,128)}', space=vmem, size = 0x12000, scoped, tag = 'internal scratch']
  %s0 = inlined_call_operand.vmem [shape: f32[2,8,256], index: 0, kind: input, shape index: {}]
  %s1 = inlined_call_operand.vmem [shape: f32[2,1,8], index: 1, kind: input, shape index: {}]
  %s2 = inlined_call_operand.vmem [shape: bf16[4,256,32], index: 2, kind: input, shape index: {}]
  %s3 = inlined_call_operand.vmem [shape: bf16[4,256,32], index: 3, kind: input, shape index: {}]
  %s4 = inlined_call_operand.vmem [shape: bf16[4,256,32], index: 4, kind: input, shape index: {}]
  %s5 = inlined_call_operand.vmem [shape: bf16[4,32,256], index: 5, kind: input, shape index: {}]
  %s6 = inlined_call_operand.vmem [shape: f32[1,256], index: 6, kind: input, shape index: {}]
  %s7 = inlined_call_operand.vmem [shape: f32[1,256], index: 7, kind: input, shape index: {}]
  %s8 = inlined_call_operand.hbm [shape: f32[2,8,256], index: 8, kind: output, shape index: {}]
  %s9 = sld [smem:[#allocation0]]
  $region65: #{tpu_custom_call.1} parent=0
    _
  %s11 = ssub.s32 1, %s9
  %s12 = scalar_select 0, %s11, %s9
  $region1: #{tpu_custom_call.1} parent=0
    #allocation2 [shape = 'u8[16384]{0}', space=vmem, size = 0x4000, scoped, tag = 'output window, operand 0']
    #allocation3 [shape = 's32[2]{0}', space=sflag, size = 0x8, scoped, tag = 'scoped memory for tpu_custom_call.1']
    %13 = vsyncpa [#allocation3], 0
    %s14 = scalar_lea.sflag [#allocation3], 1
    %15 = vsyncpa %s14, 0
    loop: start=0, step=1, limit=4
    $region2: #{tpu_custom_call.1} parent=1 // loop_pre_header
      _
    $region3: #{tpu_custom_call.1} parent=1 // loop_header
      %s17 = sphi 0, %s21
      %p18 = scmp.ge.s32.totalorder %s17, 4
      %s27 = sphi 0, %s29
      %s30 = sphi 0, %s27
      %s31 = sphi 0, %s30
      %s47 = sphi 0, %s31
      %s53 = sphi 0, %s55
      %s56 = sphi 0, %s53
      %s57 = sphi 0, %s56
      %s73 = sphi 0, %s57
      %s77 = sphi 0, %s77
      %s79 = sphi 0, %s77
      %s80 = sphi 0, %s79
      %s94 = sphi 0, %s80
      %s98 = sphi 0, %s98
      %s100 = sphi 0, %s98
      %s101 = sphi 0, %s100
      %s115 = sphi 0, %s101
      %s119 = sphi 0, %s119
      %s121 = sphi 0, %s119
      %s122 = sphi 0, %s121
      %s136 = sphi 0, %s122
      %s140 = sphi 0, %s140
      %s142 = sphi 0, %s140
      %s143 = sphi 0, %s142
      %s157 = sphi 0, %s143
      %s161 = sphi 0, %s161
      %s163 = sphi 0, %s161
      %s164 = sphi 0, %s163
      %s178 = sphi 0, %s164
      %s182 = sphi 0, %s182
      %s184 = sphi 0, %s182
      %s185 = sphi 0, %s184
      %s199 = sphi 0, %s185
      %s205 = sphi 0, %s207
      %s208 = sphi 0, %s205
      %s209 = sphi 0, %s208
      %s225 = sphi 0, %s209
    $region4: #{tpu_custom_call.1} parent=1 // loop_header_branch
      %20 = sbr.rel (%p18) target = $region8
    $region5: #{tpu_custom_call.1} parent=1 // loop_body
      %s22 = ssub.s32 %s17, 1
      %s23 = ssub.s32 %s17, 2
      %s24 = sadd.s32 %s17, 1
      %s25 = ssub.s32 %s17, %s24
      %p26 = scmp.eq.s32.totalorder %s25, 0
      %s28 = sadd.s32 %s27, 1
      %s29 = scalar_select %p26, %s27, %s28
      %p32 = pneg %p26
      %p33 = scmp.eq.s32.totalorder %s17, 1
      %p34 = por %p32, %p33
      %p35 = scmp.ne.s32.totalorder %s27, %s30
      %p36 = scmp.eq.s32.totalorder %s17, 0
      %p37 = por %p35, %p36
      %p38 = scmp.ne.s32.totalorder %s27, %s30
      %p39 = scmp.eq.s32.totalorder %s22, 1
      %p40 = por %p38, %p39
      %p41 = scmp.ne.s32.totalorder %s30, %s31
      %p42 = scmp.eq.s32.totalorder %s22, 0
      %p43 = por %p41, %p42
      %p44 = scmp.ne.s32.totalorder %s30, %s31
      %p45 = scmp.eq.s32.totalorder %s23, 1
      %p46 = por %p44, %p45
      %p48 = scmp.ne.s32.totalorder %s31, %s47
      %p49 = scmp.eq.s32.totalorder %s23, 0
      %p50 = por %p48, %p49
      %s51 = ssub.s32 %s17, %s24
      %p52 = scmp.eq.s32.totalorder %s51, 0
      %s54 = sadd.s32 %s53, 1
      %s55 = scalar_select %p52, %s53, %s54
      %p58 = pneg %p52
      %p59 = scmp.eq.s32.totalorder %s17, 1
      %p60 = por %p58, %p59
      %p61 = scmp.ne.s32.totalorder %s53, %s56
      %p62 = scmp.eq.s32.totalorder %s17, 0
      %p63 = por %p61, %p62
      %p64 = scmp.ne.s32.totalorder %s53, %s56
      %p65 = scmp.eq.s32.totalorder %s22, 1
      %p66 = por %p64, %p65
      %p67 = scmp.ne.s32.totalorder %s56, %s57
      %p68 = scmp.eq.s32.totalorder %s22, 0
      %p69 = por %p67, %p68
      %p70 = scmp.ne.s32.totalorder %s56, %s57
      %p71 = scmp.eq.s32.totalorder %s23, 1
      %p72 = por %p70, %p71
      %p74 = scmp.ne.s32.totalorder %s57, %s73
      %p75 = scmp.eq.s32.totalorder %s23, 0
      %p76 = por %p74, %p75
      %s78 = sadd.s32 %s77, 1
      %p81 = scmp.eq.s32.totalorder %s17, 1
      %p82 = scmp.ne.s32.totalorder %s77, %s79
      %p83 = scmp.eq.s32.totalorder %s17, 0
      %p84 = por %p82, %p83
      %p85 = scmp.ne.s32.totalorder %s77, %s79
      %p86 = scmp.eq.s32.totalorder %s22, 1
      %p87 = por %p85, %p86
      %p88 = scmp.ne.s32.totalorder %s79, %s80
      %p89 = scmp.eq.s32.totalorder %s22, 0
      %p90 = por %p88, %p89
      %p91 = scmp.ne.s32.totalorder %s79, %s80
      %p92 = scmp.eq.s32.totalorder %s23, 1
      %p93 = por %p91, %p92
      %p95 = scmp.ne.s32.totalorder %s80, %s94
      %p96 = scmp.eq.s32.totalorder %s23, 0
      %p97 = por %p95, %p96
      %s99 = sadd.s32 %s98, 1
      %p102 = scmp.eq.s32.totalorder %s17, 1
      %p103 = scmp.ne.s32.totalorder %s98, %s100
      %p104 = scmp.eq.s32.totalorder %s17, 0
      %p105 = por %p103, %p104
      %p106 = scmp.ne.s32.totalorder %s98, %s100
      %p107 = scmp.eq.s32.totalorder %s22, 1
      %p108 = por %p106, %p107
      %p109 = scmp.ne.s32.totalorder %s100, %s101
      %p110 = scmp.eq.s32.totalorder %s22, 0
      %p111 = por %p109, %p110
      %p112 = scmp.ne.s32.totalorder %s100, %s101
      %p113 = scmp.eq.s32.totalorder %s23, 1
      %p114 = por %p112, %p113
      %p116 = scmp.ne.s32.totalorder %s101, %s115
      %p117 = scmp.eq.s32.totalorder %s23, 0
      %p118 = por %p116, %p117
      %s120 = sadd.s32 %s119, 1
      %p123 = scmp.eq.s32.totalorder %s17, 1
      %p124 = scmp.ne.s32.totalorder %s119, %s121
      %p125 = scmp.eq.s32.totalorder %s17, 0
      %p126 = por %p124, %p125
      %p127 = scmp.ne.s32.totalorder %s119, %s121
      %p128 = scmp.eq.s32.totalorder %s22, 1
      %p129 = por %p127, %p128
      %p130 = scmp.ne.s32.totalorder %s121, %s122
      %p131 = scmp.eq.s32.totalorder %s22, 0
      %p132 = por %p130, %p131
      %p133 = scmp.ne.s32.totalorder %s121, %s122
      %p134 = scmp.eq.s32.totalorder %s23, 1
      %p135 = por %p133, %p134
      %p137 = scmp.ne.s32.totalorder %s122, %s136
      %p138 = scmp.eq.s32.totalorder %s23, 0
      %p139 = por %p137, %p138
      %s141 = sadd.s32 %s140, 1
      %p144 = scmp.eq.s32.totalorder %s17, 1
      %p145 = scmp.ne.s32.totalorder %s140, %s142
      %p146 = scmp.eq.s32.totalorder %s17, 0
      %p147 = por %p145, %p146
      %p148 = scmp.ne.s32.totalorder %s140, %s142
      %p149 = scmp.eq.s32.totalorder %s22, 1
      %p150 = por %p148, %p149
      %p151 = scmp.ne.s32.totalorder %s142, %s143
      %p152 = scmp.eq.s32.totalorder %s22, 0
      %p153 = por %p151, %p152
      %p154 = scmp.ne.s32.totalorder %s142, %s143
      %p155 = scmp.eq.s32.totalorder %s23, 1
      %p156 = por %p154, %p155
      %p158 = scmp.ne.s32.totalorder %s143, %s157
      %p159 = scmp.eq.s32.totalorder %s23, 0
      %p160 = por %p158, %p159
      %s162 = sadd.s32 %s161, 1
      %p165 = scmp.eq.s32.totalorder %s17, 1
      %p166 = scmp.ne.s32.totalorder %s161, %s163
      %p167 = scmp.eq.s32.totalorder %s17, 0
      %p168 = por %p166, %p167
      %p169 = scmp.ne.s32.totalorder %s161, %s163
      %p170 = scmp.eq.s32.totalorder %s22, 1
      %p171 = por %p169, %p170
      %p172 = scmp.ne.s32.totalorder %s163, %s164
      %p173 = scmp.eq.s32.totalorder %s22, 0
      %p174 = por %p172, %p173
      %p175 = scmp.ne.s32.totalorder %s163, %s164
      %p176 = scmp.eq.s32.totalorder %s23, 1
      %p177 = por %p175, %p176
      %p179 = scmp.ne.s32.totalorder %s164, %s178
      %p180 = scmp.eq.s32.totalorder %s23, 0
      %p181 = por %p179, %p180
      %s183 = sadd.s32 %s182, 1
      %p186 = scmp.eq.s32.totalorder %s17, 1
      %p187 = scmp.ne.s32.totalorder %s182, %s184
      %p188 = scmp.eq.s32.totalorder %s17, 0
      %p189 = por %p187, %p188
      %p190 = scmp.ne.s32.totalorder %s182, %s184
      %p191 = scmp.eq.s32.totalorder %s22, 1
      %p192 = por %p190, %p191
      %p193 = scmp.ne.s32.totalorder %s184, %s185
      %p194 = scmp.eq.s32.totalorder %s22, 0
      %p195 = por %p193, %p194
      %p196 = scmp.ne.s32.totalorder %s184, %s185
      %p197 = scmp.eq.s32.totalorder %s23, 1
      %p198 = por %p196, %p197
      %p200 = scmp.ne.s32.totalorder %s185, %s199
      %p201 = scmp.eq.s32.totalorder %s23, 0
      %p202 = por %p200, %p201
      %s203 = ssub.s32 %s17, %s24
      %p204 = scmp.eq.s32.totalorder %s203, 0
      %s206 = sadd.s32 %s205, 1
      %s207 = scalar_select %p204, %s205, %s206
      %p210 = pneg %p204
      %p211 = scmp.eq.s32.totalorder %s17, 1
      %p212 = por %p210, %p211
      %p213 = scmp.ne.s32.totalorder %s205, %s208
      %p214 = scmp.eq.s32.totalorder %s17, 0
      %p215 = por %p213, %p214
      %p216 = scmp.ne.s32.totalorder %s205, %s208
      %p217 = scmp.eq.s32.totalorder %s22, 1
      %p218 = por %p216, %p217
      %p219 = scmp.ne.s32.totalorder %s208, %s209
      %p220 = scmp.eq.s32.totalorder %s22, 0
      %p221 = por %p219, %p220
      %p222 = scmp.ne.s32.totalorder %s208, %s209
      %p223 = scmp.eq.s32.totalorder %s23, 1
      %p224 = por %p222, %p223
      %p226 = scmp.ne.s32.totalorder %s209, %s225
      %p227 = scmp.eq.s32.totalorder %s23, 0
      %p228 = por %p226, %p227
      %p229 = scmp.le.s32.totalorder 1, %s17
      %p230 = scmp.lt.s32.totalorder %s17, 3
      %p231 = pnand %p229, %p230
      %p232 = pneg %p231
      // Predicated region
      $region9: #{tpu_custom_call.1} parent=5 // pred_check
        _
      $region10: #{tpu_custom_call.1} parent=5 // pred_check_branch
        %234 = sbr.rel (%p231) target = $region12
      $region11: #{tpu_custom_call.1} parent=5 // pred_region
        %s235 = ssub.s32 %s17, 1
        // Predicated region
        $region13: #{tpu_custom_call.1} parent=11 // pred_check
          %p236 = pneg %p90
        $region14: #{tpu_custom_call.1} parent=11 // pred_check_branch
          %238 = sbr.rel (%p236) target = $region16
        $region15: #{tpu_custom_call.1} parent=11 // pred_region
          _
        $region16: #{tpu_custom_call.1} parent=11 // pred_fallthru
          _
        // Predicated region
        $region17: #{tpu_custom_call.1} parent=11 // pred_check
          %p239 = pneg %p111
        $region18: #{tpu_custom_call.1} parent=11 // pred_check_branch
          %241 = sbr.rel (%p239) target = $region20
        $region19: #{tpu_custom_call.1} parent=11 // pred_region
          _
        $region20: #{tpu_custom_call.1} parent=11 // pred_fallthru
          _
        // Predicated region
        $region21: #{tpu_custom_call.1} parent=11 // pred_check
          %p242 = pneg %p132
        $region22: #{tpu_custom_call.1} parent=11 // pred_check_branch
          %244 = sbr.rel (%p242) target = $region24
        $region23: #{tpu_custom_call.1} parent=11 // pred_region
          _
        $region24: #{tpu_custom_call.1} parent=11 // pred_fallthru
          _
        // Predicated region
        $region25: #{tpu_custom_call.1} parent=11 // pred_check
          %p245 = pneg %p153
        $region26: #{tpu_custom_call.1} parent=11 // pred_check_branch
          %247 = sbr.rel (%p245) target = $region28
        $region27: #{tpu_custom_call.1} parent=11 // pred_region
          _
        $region28: #{tpu_custom_call.1} parent=11 // pred_fallthru
          _
        // Predicated region
        $region29: #{tpu_custom_call.1} parent=11 // pred_check
          %p248 = pneg %p174
        $region30: #{tpu_custom_call.1} parent=11 // pred_check_branch
          %250 = sbr.rel (%p248) target = $region32
        $region31: #{tpu_custom_call.1} parent=11 // pred_region
          _
        $region32: #{tpu_custom_call.1} parent=11 // pred_fallthru
          _
        // Predicated region
        $region33: #{tpu_custom_call.1} parent=11 // pred_check
          %p251 = pneg %p195
        $region34: #{tpu_custom_call.1} parent=11 // pred_check_branch
          %253 = sbr.rel (%p251) target = $region36
        $region35: #{tpu_custom_call.1} parent=11 // pred_region
          _
        $region36: #{tpu_custom_call.1} parent=11 // pred_fallthru
          _
      $region12: #{tpu_custom_call.1} parent=5 // pred_fallthru
        _
      %p254 = scmp.lt.s32.totalorder %s17, 2
      // Predicated region
      $region37: #{tpu_custom_call.1} parent=5 // pred_check
        %p255 = pneg %p254
      $region38: #{tpu_custom_call.1} parent=5 // pred_check_branch
        %257 = sbr.rel (%p255) target = $region40
      $region39: #{tpu_custom_call.1} parent=5 // pred_region
        // Predicated region
        $region41: #{tpu_custom_call.1} parent=39 // pred_check
          %p258 = pneg %p37
        $region42: #{tpu_custom_call.1} parent=39 // pred_check_branch
          %260 = sbr.rel (%p258) target = $region44
        $region43: #{tpu_custom_call.1} parent=39 // pred_region
          %p261 = scmp.lt.s32.totalorder %s17, 1
          %s262 = scalar_select %p261, %s17, 1
          %s263 = smul.addr %s262, 2
          %s264 = smul.addr %s263, 8
          %s265 = scalar_lea.vmem %s0, %s264
        $region44: #{tpu_custom_call.1} parent=39 // pred_fallthru
          _
        // Predicated region
        $region45: #{tpu_custom_call.1} parent=39 // pred_check
          %p266 = pneg %p63
        $region46: #{tpu_custom_call.1} parent=39 // pred_check_branch
          %268 = sbr.rel (%p266) target = $region48
        $region47: #{tpu_custom_call.1} parent=39 // pred_region
          %p269 = scmp.lt.s32.totalorder %s17, 1
          %s270 = scalar_select %p269, %s17, 1
          %s271 = scalar_lea.vmem %s1, %s270
        $region48: #{tpu_custom_call.1} parent=39 // pred_fallthru
          _
      $region40: #{tpu_custom_call.1} parent=5 // pred_fallthru
        _
      %p272 = scmp.le.s32.totalorder 1, %s17
      %p273 = scmp.lt.s32.totalorder %s17, 3
      %p274 = pnand %p272, %p273
      %p275 = pneg %p274
      // Predicated region
      $region49: #{tpu_custom_call.1} parent=5 // pred_check
        _
      $region50: #{tpu_custom_call.1} parent=5 // pred_check_branch
        %277 = sbr.rel (%p274) target = $region52
      $region51: #{tpu_custom_call.1} parent=5 // pred_region
        %s278 = ssub.s32 %s17, 1
        %p279 = scmp.lt.s32.totalorder %s22, 1
        %s280 = scalar_select %p279, %s22, 1
        %s281 = smul.addr %s280, 2
        %s282 = smul.addr %s281, 8
        %s283 = scalar_lea.vmem %s0, %s282
        %p284 = pneg %p43
        %p285 = pneg %p40
        %p286 = scmp.lt.s32.totalorder %s22, 1
        %s287 = scalar_select %p286, %s22, 1
        %s288 = scalar_lea.vmem %s1, %s287
        %p289 = pneg %p69
        %p290 = pneg %p66
        %p291 = pneg %p90
        %p292 = pneg %p87
        %p293 = pneg %p111
        %p294 = pneg %p108
        %p295 = pneg %p132
        %p296 = pneg %p129
        %p297 = pneg %p153
        %p298 = pneg %p150
        %p299 = pneg %p174
        %p300 = pneg %p171
        %p301 = pneg %p195
        %p302 = pneg %p192
        %p303 = pneg %p221
        %p304 = pneg %p218
        %s305 = sand.u32 %s208, 1
        %s306 = scalar_lea.sflag [#allocation3], %s305
        %s307 = sand.u32 %s208, 1
        %s308 = smul.addr %s307, 16
        %s309 = scalar_lea.vmem [#allocation2], %s308
        %p310 = scmp.lt.s32.totalorder %s22, 1
        %s311 = scalar_select %p310, %s22, 1
        %s312 = smul.addr %s311, 2
        %s313 = smul.addr %s312, 8
        %s314 = scalar_lea.vmem %s0, %s313
        %p315 = scmp.lt.s32.totalorder %s22, 1
        %s316 = scalar_select %p315, %s22, 1
        %s317 = scalar_lea.vmem %s1, %s316
        %v319 = vld [vmem:[%s314] sm:$0xff]
        %v320 = vld [vmem:[%s314 + $0x8] sm:$0xff]
        %v321 = vpack.c.bf16 %v319, %v319
        %v322 = vpack.c.bf16 %v320, %v320
        %v323 = vld [vmem:[%s317] sm:$0x1]
        %v324 = vld [vmem:[%s2] sm:$0xf]
        %v325 = vld [vmem:[%s2 + $0x4] sm:$0xf]
        %v326 = vld [vmem:[%s2 + $0x8] sm:$0xf]
        %v327 = vld [vmem:[%s2 + $0xc] sm:$0xf]
        %v328 = vld [vmem:[%s2 + $0x10] sm:$0xf]
        %v329 = vld [vmem:[%s2 + $0x14] sm:$0xf]
        %v330 = vld [vmem:[%s2 + $0x18] sm:$0xf]
        %v331 = vld [vmem:[%s2 + $0x1c] sm:$0xf]
        %v332 = vld [vmem:[%s2 + $0x20] sm:$0xf]
        %v333 = vld [vmem:[%s2 + $0x24] sm:$0xf]
        %v334 = vld [vmem:[%s2 + $0x28] sm:$0xf]
        %v335 = vld [vmem:[%s2 + $0x2c] sm:$0xf]
        %v336 = vld [vmem:[%s2 + $0x30] sm:$0xf]
        %v337 = vld [vmem:[%s2 + $0x34] sm:$0xf]
        %v338 = vld [vmem:[%s2 + $0x38] sm:$0xf]
        %v339 = vld [vmem:[%s2 + $0x3c] sm:$0xf]
        %v340 = vld [vmem:[%s2 + $0x40] sm:$0xf]
        %v341 = vld [vmem:[%s2 + $0x44] sm:$0xf]
        %v342 = vld [vmem:[%s2 + $0x48] sm:$0xf]
        %v343 = vld [vmem:[%s2 + $0x4c] sm:$0xf]
        %v344 = vld [vmem:[%s2 + $0x50] sm:$0xf]
        %v345 = vld [vmem:[%s2 + $0x54] sm:$0xf]
        %v346 = vld [vmem:[%s2 + $0x58] sm:$0xf]
        %v347 = vld [vmem:[%s2 + $0x5c] sm:$0xf]
        %v348 = vld [vmem:[%s2 + $0x60] sm:$0xf]
        %v349 = vld [vmem:[%s2 + $0x64] sm:$0xf]
        %v350 = vld [vmem:[%s2 + $0x68] sm:$0xf]
        %v351 = vld [vmem:[%s2 + $0x6c] sm:$0xf]
        %v352 = vld [vmem:[%s2 + $0x70] sm:$0xf]
        %v353 = vld [vmem:[%s2 + $0x74] sm:$0xf]
        %v354 = vld [vmem:[%s2 + $0x78] sm:$0xf]
        %v355 = vld [vmem:[%s2 + $0x7c] sm:$0xf]
        %v388 = vunpack.c.l.b16 %v324
        %v389 = vunpack.c.l.b16 %v325
        %v390 = vunpack.c.l.b16 %v326
        %v391 = vunpack.c.l.b16 %v327
        %v392 = vunpack.c.l.b16 %v328
        %v393 = vunpack.c.l.b16 %v329
        %v394 = vunpack.c.l.b16 %v330
        %v395 = vunpack.c.l.b16 %v331
        %v396 = vunpack.c.l.b16 %v332
        %v397 = vunpack.c.l.b16 %v333
        %v398 = vunpack.c.l.b16 %v334
        %v399 = vunpack.c.l.b16 %v335
        %v400 = vunpack.c.l.b16 %v336
        %v401 = vunpack.c.l.b16 %v337
        %v402 = vunpack.c.l.b16 %v338
        %v403 = vunpack.c.l.b16 %v339
        %v404 = vunpack.c.l.b16 %v340
        %v405 = vunpack.c.l.b16 %v341
        %v406 = vunpack.c.l.b16 %v342
        %v407 = vunpack.c.l.b16 %v343
        %v408 = vunpack.c.l.b16 %v344
        %v409 = vunpack.c.l.b16 %v345
        %v410 = vunpack.c.l.b16 %v346
        %v411 = vunpack.c.l.b16 %v347
        %v412 = vunpack.c.l.b16 %v348
        %v413 = vunpack.c.l.b16 %v349
        %v414 = vunpack.c.l.b16 %v350
        %v415 = vunpack.c.l.b16 %v351
        %v416 = vunpack.c.l.b16 %v352
        %v417 = vunpack.c.l.b16 %v353
        %v418 = vunpack.c.l.b16 %v354
        %v419 = vunpack.c.l.b16 %v355
        %v420 = vpack.c.b16 %v389, %v388
        %v421 = vpack.c.b16 %v391, %v390
        %v422 = vpack.c.b16 %v393, %v392
        %v423 = vpack.c.b16 %v395, %v394
        %v424 = vpack.c.b16 %v397, %v396
        %v425 = vpack.c.b16 %v399, %v398
        %v426 = vpack.c.b16 %v401, %v400
        %v427 = vpack.c.b16 %v403, %v402
        %v428 = vpack.c.b16 %v405, %v404
        %v429 = vpack.c.b16 %v407, %v406
        %v430 = vpack.c.b16 %v409, %v408
        %v431 = vpack.c.b16 %v411, %v410
        %v432 = vpack.c.b16 %v413, %v412
        %v433 = vpack.c.b16 %v415, %v414
        %v434 = vpack.c.b16 %v417, %v416
        %v435 = vpack.c.b16 %v419, %v418
        %452 = vmatprep.subr.bf16.mxu0 0
        %453 = vmatpush1.bf16.msra.mxu0 %v427
        %454 = vmatprep.subr.bf16.mxu0 0
        %455 = vmatpush1.bf16.msra.mxu0 %v426
        %456 = vmatprep.subr.bf16.mxu0 0
        %457 = vmatpush1.bf16.msra.mxu0 %v425
        %458 = vmatprep.subr.bf16.mxu0 0
        %459 = vmatpush1.bf16.msra.mxu0 %v424
        %460 = vmatprep.subr.bf16.mxu0 0
        %461 = vmatpush1.bf16.msra.mxu0 %v423
        %462 = vmatprep.subr.bf16.mxu0 0
        %463 = vmatpush1.bf16.msra.mxu0 %v422
        %464 = vmatprep.subr.bf16.mxu0 0
        %465 = vmatpush1.bf16.msra.mxu0 %v421
        %466 = vmatprep.subr.bf16.mxu0 0
        %467 = vmatpush1.bf16.msra.mxu0 %v420
        %468 = vmatprep.subr.bf16.mxu0 0
        %469 = vmatpush2.bf16.msra.mxu0 %v435
        %470 = vmatprep.subr.bf16.mxu0 0
        %471 = vmatpush2.bf16.msra.mxu0 %v434
        %472 = vmatprep.subr.bf16.mxu0 0
        %473 = vmatpush2.bf16.msra.mxu0 %v433
        %474 = vmatprep.subr.bf16.mxu0 0
        %475 = vmatpush2.bf16.msra.mxu0 %v432
        %476 = vmatprep.subr.bf16.mxu0 0
        %477 = vmatpush2.bf16.msra.mxu0 %v431
        %478 = vmatprep.subr.bf16.mxu0 0
        %479 = vmatpush2.bf16.msra.mxu0 %v430
        %480 = vmatprep.subr.bf16.mxu0 0
        %481 = vmatpush2.bf16.msra.mxu0 %v429
        %482 = vmatprep.subr.bf16.mxu0 0
        %483 = vmatpush2.bf16.msra.mxu0 %v428
        %484 = vmatprep.mubr.bf16.mxu0 %v322
        %485 = vmatmul.mubr.bf16.gmra.mxu0 %v321
        %v486 = vpop.f32.mrf.mxu0
        %v487 = vadd.f32 0.0, %v486
        %v488 = vpop.f32.mrf.mxu0
        %v489 = vpop.f32.mrf.mxu0
        %v490 = vpop.f32.mrf.mxu0
        %491 = vdwg.mxu0
        %v492 = vld [vmem:[%s3] sm:$0xf]
        %v493 = vld [vmem:[%s3 + $0x4] sm:$0xf]
        %v494 = vld [vmem:[%s3 + $0x8] sm:$0xf]
        %v495 = vld [vmem:[%s3 + $0xc] sm:$0xf]
        %v496 = vld [vmem:[%s3 + $0x10] sm:$0xf]
        %v497 = vld [vmem:[%s3 + $0x14] sm:$0xf]
        %v498 = vld [vmem:[%s3 + $0x18] sm:$0xf]
        %v499 = vld [vmem:[%s3 + $0x1c] sm:$0xf]
        %v500 = vld [vmem:[%s3 + $0x20] sm:$0xf]
        %v501 = vld [vmem:[%s3 + $0x24] sm:$0xf]
        %v502 = vld [vmem:[%s3 + $0x28] sm:$0xf]
        %v503 = vld [vmem:[%s3 + $0x2c] sm:$0xf]
        %v504 = vld [vmem:[%s3 + $0x30] sm:$0xf]
        %v505 = vld [vmem:[%s3 + $0x34] sm:$0xf]
        %v506 = vld [vmem:[%s3 + $0x38] sm:$0xf]
        %v507 = vld [vmem:[%s3 + $0x3c] sm:$0xf]
        %v508 = vld [vmem:[%s3 + $0x40] sm:$0xf]
        %v509 = vld [vmem:[%s3 + $0x44] sm:$0xf]
        %v510 = vld [vmem:[%s3 + $0x48] sm:$0xf]
        %v511 = vld [vmem:[%s3 + $0x4c] sm:$0xf]
        %v512 = vld [vmem:[%s3 + $0x50] sm:$0xf]
        %v513 = vld [vmem:[%s3 + $0x54] sm:$0xf]
        %v514 = vld [vmem:[%s3 + $0x58] sm:$0xf]
        %v515 = vld [vmem:[%s3 + $0x5c] sm:$0xf]
        %v516 = vld [vmem:[%s3 + $0x60] sm:$0xf]
        %v517 = vld [vmem:[%s3 + $0x64] sm:$0xf]
        %v518 = vld [vmem:[%s3 + $0x68] sm:$0xf]
        %v519 = vld [vmem:[%s3 + $0x6c] sm:$0xf]
        %v520 = vld [vmem:[%s3 + $0x70] sm:$0xf]
        %v521 = vld [vmem:[%s3 + $0x74] sm:$0xf]
        %v522 = vld [vmem:[%s3 + $0x78] sm:$0xf]
        %v523 = vld [vmem:[%s3 + $0x7c] sm:$0xf]
        %v556 = vunpack.c.l.b16 %v492
        %v557 = vunpack.c.l.b16 %v493
        %v558 = vunpack.c.l.b16 %v494
        %v559 = vunpack.c.l.b16 %v495
        %v560 = vunpack.c.l.b16 %v496
        %v561 = vunpack.c.l.b16 %v497
        %v562 = vunpack.c.l.b16 %v498
        %v563 = vunpack.c.l.b16 %v499
        %v564 = vunpack.c.l.b16 %v500
        %v565 = vunpack.c.l.b16 %v501
        %v566 = vunpack.c.l.b16 %v502
        %v567 = vunpack.c.l.b16 %v503
        %v568 = vunpack.c.l.b16 %v504
        %v569 = vunpack.c.l.b16 %v505
        %v570 = vunpack.c.l.b16 %v506
        %v571 = vunpack.c.l.b16 %v507
        %v572 = vunpack.c.l.b16 %v508
        %v573 = vunpack.c.l.b16 %v509
        %v574 = vunpack.c.l.b16 %v510
        %v575 = vunpack.c.l.b16 %v511
        %v576 = vunpack.c.l.b16 %v512
        %v577 = vunpack.c.l.b16 %v513
        %v578 = vunpack.c.l.b16 %v514
        %v579 = vunpack.c.l.b16 %v515
        %v580 = vunpack.c.l.b16 %v516
        %v581 = vunpack.c.l.b16 %v517
        %v582 = vunpack.c.l.b16 %v518
        %v583 = vunpack.c.l.b16 %v519
        %v584 = vunpack.c.l.b16 %v520
        %v585 = vunpack.c.l.b16 %v521
        %v586 = vunpack.c.l.b16 %v522
        %v587 = vunpack.c.l.b16 %v523
        %v588 = vpack.c.b16 %v557, %v556
        %v589 = vpack.c.b16 %v559, %v558
        %v590 = vpack.c.b16 %v561, %v560
        %v591 = vpack.c.b16 %v563, %v562
        %v592 = vpack.c.b16 %v565, %v564
        %v593 = vpack.c.b16 %v567, %v566
        %v594 = vpack.c.b16 %v569, %v568
        %v595 = vpack.c.b16 %v571, %v570
        %v596 = vpack.c.b16 %v573, %v572
        %v597 = vpack.c.b16 %v575, %v574
        %v598 = vpack.c.b16 %v577, %v576
        %v599 = vpack.c.b16 %v579, %v578
        %v600 = vpack.c.b16 %v581, %v580
        %v601 = vpack.c.b16 %v583, %v582
        %v602 = vpack.c.b16 %v585, %v584
        %v603 = vpack.c.b16 %v587, %v586
        %620 = vmatprep.subr.bf16.mxu0 0
        %621 = vmatpush1.bf16.msra.mxu0 %v595
        %622 = vmatprep.subr.bf16.mxu0 0
        %623 = vmatpush1.bf16.msra.mxu0 %v594
        %624 = vmatprep.subr.bf16.mxu0 0
        %625 = vmatpush1.bf16.msra.mxu0 %v593
        %626 = vmatprep.subr.bf16.mxu0 0
        %627 = vmatpush1.bf16.msra.mxu0 %v592
        %628 = vmatprep.subr.bf16.mxu0 0
        %629 = vmatpush1.bf16.msra.mxu0 %v591
        %630 = vmatprep.subr.bf16.mxu0 0
        %631 = vmatpush1.bf16.msra.mxu0 %v590
        %632 = vmatprep.subr.bf16.mxu0 0
        %633 = vmatpush1.bf16.msra.mxu0 %v589
        %634 = vmatprep.subr.bf16.mxu0 0
        %635 = vmatpush1.bf16.msra.mxu0 %v588
        %636 = vmatprep.subr.bf16.mxu0 0
        %637 = vmatpush2.bf16.msra.mxu0 %v603
        %638 = vmatprep.subr.bf16.mxu0 0
        %639 = vmatpush2.bf16.msra.mxu0 %v602
        %640 = vmatprep.subr.bf16.mxu0 0
        %641 = vmatpush2.bf16.msra.mxu0 %v601
        %642 = vmatprep.subr.bf16.mxu0 0
        %643 = vmatpush2.bf16.msra.mxu0 %v600
        %644 = vmatprep.subr.bf16.mxu0 0
        %645 = vmatpush2.bf16.msra.mxu0 %v599
        %646 = vmatprep.subr.bf16.mxu0 0
        %647 = vmatpush2.bf16.msra.mxu0 %v598
        %648 = vmatprep.subr.bf16.mxu0 0
        %649 = vmatpush2.bf16.msra.mxu0 %v597
        %650 = vmatprep.subr.bf16.mxu0 0
        %651 = vmatpush2.bf16.msra.mxu0 %v596
        %652 = vmatprep.mubr.bf16.mxu0 %v322
        %653 = vmatmul.mubr.bf16.gmra.mxu0 %v321
        %v654 = vpop.f32.mrf.mxu0
        %v655 = vadd.f32 0.0, %v654
        %v656 = vpop.f32.mrf.mxu0
        %v657 = vpop.f32.mrf.mxu0
        %v658 = vpop.f32.mrf.mxu0
        %659 = vdwg.mxu0
        %v660 = vld [vmem:[%s4] sm:$0xf]
        %v661 = vld [vmem:[%s4 + $0x4] sm:$0xf]
        %v662 = vld [vmem:[%s4 + $0x8] sm:$0xf]
        %v663 = vld [vmem:[%s4 + $0xc] sm:$0xf]
        %v664 = vld [vmem:[%s4 + $0x10] sm:$0xf]
        %v665 = vld [vmem:[%s4 + $0x14] sm:$0xf]
        %v666 = vld [vmem:[%s4 + $0x18] sm:$0xf]
        %v667 = vld [vmem:[%s4 + $0x1c] sm:$0xf]
        %v668 = vld [vmem:[%s4 + $0x20] sm:$0xf]
        %v669 = vld [vmem:[%s4 + $0x24] sm:$0xf]
        %v670 = vld [vmem:[%s4 + $0x28] sm:$0xf]
        %v671 = vld [vmem:[%s4 + $0x2c] sm:$0xf]
        %v672 = vld [vmem:[%s4 + $0x30] sm:$0xf]
        %v673 = vld [vmem:[%s4 + $0x34] sm:$0xf]
        %v674 = vld [vmem:[%s4 + $0x38] sm:$0xf]
        %v675 = vld [vmem:[%s4 + $0x3c] sm:$0xf]
        %v676 = vld [vmem:[%s4 + $0x40] sm:$0xf]
        %v677 = vld [vmem:[%s4 + $0x44] sm:$0xf]
        %v678 = vld [vmem:[%s4 + $0x48] sm:$0xf]
        %v679 = vld [vmem:[%s4 + $0x4c] sm:$0xf]
        %v680 = vld [vmem:[%s4 + $0x50] sm:$0xf]
        %v681 = vld [vmem:[%s4 + $0x54] sm:$0xf]
        %v682 = vld [vmem:[%s4 + $0x58] sm:$0xf]
        %v683 = vld [vmem:[%s4 + $0x5c] sm:$0xf]
        %v684 = vld [vmem:[%s4 + $0x60] sm:$0xf]
        %v685 = vld [vmem:[%s4 + $0x64] sm:$0xf]
        %v686 = vld [vmem:[%s4 + $0x68] sm:$0xf]
        %v687 = vld [vmem:[%s4 + $0x6c] sm:$0xf]
        %v688 = vld [vmem:[%s4 + $0x70] sm:$0xf]
        %v689 = vld [vmem:[%s4 + $0x74] sm:$0xf]
        %v690 = vld [vmem:[%s4 + $0x78] sm:$0xf]
        %v691 = vld [vmem:[%s4 + $0x7c] sm:$0xf]
        %v724 = vunpack.c.l.b16 %v660
        %v725 = vunpack.c.l.b16 %v661
        %v726 = vunpack.c.l.b16 %v662
        %v727 = vunpack.c.l.b16 %v663
        %v728 = vunpack.c.l.b16 %v664
        %v729 = vunpack.c.l.b16 %v665
        %v730 = vunpack.c.l.b16 %v666
        %v731 = vunpack.c.l.b16 %v667
        %v732 = vunpack.c.l.b16 %v668
        %v733 = vunpack.c.l.b16 %v669
        %v734 = vunpack.c.l.b16 %v670
        %v735 = vunpack.c.l.b16 %v671
        %v736 = vunpack.c.l.b16 %v672
        %v737 = vunpack.c.l.b16 %v673
        %v738 = vunpack.c.l.b16 %v674
        %v739 = vunpack.c.l.b16 %v675
        %v740 = vunpack.c.l.b16 %v676
        %v741 = vunpack.c.l.b16 %v677
        %v742 = vunpack.c.l.b16 %v678
        %v743 = vunpack.c.l.b16 %v679
        %v744 = vunpack.c.l.b16 %v680
        %v745 = vunpack.c.l.b16 %v681
        %v746 = vunpack.c.l.b16 %v682
        %v747 = vunpack.c.l.b16 %v683
        %v748 = vunpack.c.l.b16 %v684
        %v749 = vunpack.c.l.b16 %v685
        %v750 = vunpack.c.l.b16 %v686
        %v751 = vunpack.c.l.b16 %v687
        %v752 = vunpack.c.l.b16 %v688
        %v753 = vunpack.c.l.b16 %v689
        %v754 = vunpack.c.l.b16 %v690
        %v755 = vunpack.c.l.b16 %v691
        %v756 = vpack.c.b16 %v725, %v724
        %v757 = vpack.c.b16 %v727, %v726
        %v758 = vpack.c.b16 %v729, %v728
        %v759 = vpack.c.b16 %v731, %v730
        %v760 = vpack.c.b16 %v733, %v732
        %v761 = vpack.c.b16 %v735, %v734
        %v762 = vpack.c.b16 %v737, %v736
        %v763 = vpack.c.b16 %v739, %v738
        %v764 = vpack.c.b16 %v741, %v740
        %v765 = vpack.c.b16 %v743, %v742
        %v766 = vpack.c.b16 %v745, %v744
        %v767 = vpack.c.b16 %v747, %v746
        %v768 = vpack.c.b16 %v749, %v748
        %v769 = vpack.c.b16 %v751, %v750
        %v770 = vpack.c.b16 %v753, %v752
        %v771 = vpack.c.b16 %v755, %v754
        %788 = vmatprep.subr.bf16.mxu0 0
        %789 = vmatpush1.bf16.msra.mxu0 %v763
        %790 = vmatprep.subr.bf16.mxu0 0
        %791 = vmatpush1.bf16.msra.mxu0 %v762
        %792 = vmatprep.subr.bf16.mxu0 0
        %793 = vmatpush1.bf16.msra.mxu0 %v761
        %794 = vmatprep.subr.bf16.mxu0 0
        %795 = vmatpush1.bf16.msra.mxu0 %v760
        %796 = vmatprep.subr.bf16.mxu0 0
        %797 = vmatpush1.bf16.msra.mxu0 %v759
        %798 = vmatprep.subr.bf16.mxu0 0
        %799 = vmatpush1.bf16.msra.mxu0 %v758
        %800 = vmatprep.subr.bf16.mxu0 0
        %801 = vmatpush1.bf16.msra.mxu0 %v757
        %802 = vmatprep.subr.bf16.mxu0 0
        %803 = vmatpush1.bf16.msra.mxu0 %v756
        %804 = vmatprep.subr.bf16.mxu0 0
        %805 = vmatpush2.bf16.msra.mxu0 %v771
        %806 = vmatprep.subr.bf16.mxu0 0
        %807 = vmatpush2.bf16.msra.mxu0 %v770
        %808 = vmatprep.subr.bf16.mxu0 0
        %809 = vmatpush2.bf16.msra.mxu0 %v769
        %810 = vmatprep.subr.bf16.mxu0 0
        %811 = vmatpush2.bf16.msra.mxu0 %v768
        %812 = vmatprep.subr.bf16.mxu0 0
        %813 = vmatpush2.bf16.msra.mxu0 %v767
        %814 = vmatprep.subr.bf16.mxu0 0
        %815 = vmatpush2.bf16.msra.mxu0 %v766
        %816 = vmatprep.subr.bf16.mxu0 0
        %817 = vmatpush2.bf16.msra.mxu0 %v765
        %818 = vmatprep.subr.bf16.mxu0 0
        %819 = vmatpush2.bf16.msra.mxu0 %v764
        %820 = vmatprep.mubr.bf16.mxu0 %v322
        %821 = vmatmul.mubr.bf16.gmra.mxu0 %v321
        %v822 = vpop.f32.mrf.mxu0
        %v823 = vadd.f32 0.0, %v822
        %v824 = vpop.f32.mrf.mxu0
        %v825 = vpop.f32.mrf.mxu0
        %v826 = vpop.f32.mrf.mxu0
        %827 = vdwg.mxu0
        %v828 = vpack.c.bf16 %v487, %v487
        %v829 = vpack.c.bf16 %v655, %v655
        %vm830 = vcmask 261120
        %v832 = vsel %vm830, %v828, 0
        %v835 = vsel %vm830, %v829, 0
        %837 = vmatprep.subr.bf16.mxu0 0
        %838 = vmatpush1.bf16.xpose.msra.mxu0 0
        %839 = vmatprep.subr.bf16.mxu0 0
        %840 = vmatpush1.bf16.xpose.msra.mxu0 0
        %841 = vmatprep.subr.bf16.mxu0 0
        %842 = vmatpush1.bf16.xpose.msra.mxu0 0
        %843 = vmatprep.subr.bf16.mxu0 0
        %844 = vmatpush1.bf16.xpose.msra.mxu0 0
        %845 = vmatprep.subr.bf16.mxu0 0
        %846 = vmatpush1.bf16.xpose.msra.mxu0 0
        %847 = vmatprep.subr.bf16.mxu0 0
        %848 = vmatpush1.bf16.xpose.msra.mxu0 0
        %849 = vmatprep.subr.bf16.mxu0 0
        %850 = vmatpush1.bf16.xpose.msra.mxu0 0
        %851 = vmatprep.subr.bf16.mxu0 0
        %852 = vmatpush1.bf16.xpose.msra.mxu0 %v835
        %853 = vmatprep.subr.bf16.mxu0 0
        %854 = vmatpush2.bf16.xpose.msra.mxu0 0
        %855 = vmatprep.subr.bf16.mxu0 0
        %856 = vmatpush2.bf16.xpose.msra.mxu0 0
        %857 = vmatprep.subr.bf16.mxu0 0
        %858 = vmatpush2.bf16.xpose.msra.mxu0 0
        %859 = vmatprep.subr.bf16.mxu0 0
        %860 = vmatpush2.bf16.xpose.msra.mxu0 0
        %861 = vmatprep.subr.bf16.mxu0 0
        %862 = vmatpush2.bf16.xpose.msra.mxu0 0
        %863 = vmatprep.subr.bf16.mxu0 0
        %864 = vmatpush2.bf16.xpose.msra.mxu0 0
        %865 = vmatprep.subr.bf16.mxu0 0
        %866 = vmatpush2.bf16.xpose.msra.mxu0 0
        %867 = vmatprep.subr.bf16.mxu0 0
        %868 = vmatpush2.bf16.xpose.msra.mxu0 0
        %869 = vmatprep.mubr.bf16.mxu0 0
        %870 = vmatmul.mubr.bf16.gmra.mxu0 %v832
        %v871 = vpop.f32.mrf.mxu0
        %v872 = vadd.f32 0.0, %v871
        %v873 = vpop.f32.mrf.mxu0
        %v874 = vpop.f32.mrf.mxu0
        %v875 = vpop.f32.mrf.mxu0
        %876 = vdwg.mxu0
        %v877 = vmul.f32 %v872, 0.17677669
        %vm878 = vcmp.eq.f32.partialorder %v323, 0.0
        %v879 = vsel %vm878, 1, 0
        %v880 = vlaneseq
        %v881 = vshrl.u32 %v880, 7
        %v882 = vsub.s32 0, %v881
        %v883 = vrot.slane %v879, %v882
        %vm884 = vcmp.eq.s32.totalorder %v883, 1
        %v885 = vsel %vm884, -1e+09, %v877
        %vm886 = vcmask 64512
        %v887 = vsel %vm886, %v885, -inf
        %888 = vmax.xlane.f32.xlu0 %v887
        %v889 = vpop.xlane.xlu0 %888
        %v890 = vsub.f32 %v885, %v889
        %v891 = vmul.f32 %v890, 1.442695
        %v892 = vpow.pop %v891
        %v893 = vsel %vm886, %v892, 0.0
        %894 = vadd.xlane.f32.xlu0 %v893
        %v895 = vpop.xlane.xlu0 %894
        %v896 = vrcp.pop %v895
        %v897 = vmul.f32 %v892, %v896
        %v898 = vpack.c.bf16 %v897, %v897
        %v899 = vpack.c.bf16 %v823, %v823
        %v901 = vsel %vm886, %v898, 0
        %vm903 = vcmask 1043456
        %v905 = vsel %vm903, %v899, 0
        %907 = vmatprep.subr.bf16.mxu0 0
        %908 = vmatpush1.bf16.msra.mxu0 0
        %909 = vmatprep.subr.bf16.mxu0 0
        %910 = vmatpush1.bf16.msra.mxu0 0
        %911 = vmatprep.subr.bf16.mxu0 0
        %912 = vmatpush1.bf16.msra.mxu0 0
        %913 = vmatprep.subr.bf16.mxu0 0
        %914 = vmatpush1.bf16.msra.mxu0 0
        %915 = vmatprep.subr.bf16.mxu0 0
        %916 = vmatpush1.bf16.msra.mxu0 0
        %917 = vmatprep.subr.bf16.mxu0 0
        %918 = vmatpush1.bf16.msra.mxu0 0
        %919 = vmatprep.subr.bf16.mxu0 0
        %920 = vmatpush1.bf16.msra.mxu0 0
        %921 = vmatprep.subr.bf16.mxu0 0
        %922 = vmatpush1.bf16.msra.mxu0 %v905
        %923 = vmatprep.subr.bf16.mxu0 0
        %924 = vmatpush2.bf16.msra.mxu0 0
        %925 = vmatprep.subr.bf16.mxu0 0
        %926 = vmatpush2.bf16.msra.mxu0 0
        %927 = vmatprep.subr.bf16.mxu0 0
        %928 = vmatpush2.bf16.msra.mxu0 0
        %929 = vmatprep.subr.bf16.mxu0 0
        %930 = vmatpush2.bf16.msra.mxu0 0
        %931 = vmatprep.subr.bf16.mxu0 0
        %932 = vmatpush2.bf16.msra.mxu0 0
        %933 = vmatprep.subr.bf16.mxu0 0
        %934 = vmatpush2.bf16.msra.mxu0 0
        %935 = vmatprep.subr.bf16.mxu0 0
        %936 = vmatpush2.bf16.msra.mxu0 0
        %937 = vmatprep.subr.bf16.mxu0 0
        %938 = vmatpush2.bf16.msra.mxu0 0
        %939 = vmatprep.mubr.bf16.mxu0 0
        %940 = vmatmul.mubr.bf16.gmra.mxu0 %v901
        %v941 = vpop.f32.mrf.mxu0
        %v942 = vadd.f32 0.0, %v941
        %v943 = vpop.f32.mrf.mxu0
        %v944 = vpop.f32.mrf.mxu0
        %v945 = vpop.f32.mrf.mxu0
        %946 = vdwg.mxu0
        %v947 = vpack.c.bf16 %v942, %v942
        %v948 = vld [vmem:[%s5] sm:$0xff]
        %v949 = vld [vmem:[%s5 + $0x8] sm:$0xff]
        %v950 = vld [vmem:[%s5 + $0x10] sm:$0xff]
        %v951 = vld [vmem:[%s5 + $0x18] sm:$0xff]
        %s952 = scalar_lea.vmem %s2, 128
        %v953 = vld [vmem:[%s952] sm:$0xf]
        %v954 = vld [vmem:[%s952 + $0x4] sm:$0xf]
        %v955 = vld [vmem:[%s952 + $0x8] sm:$0xf]
        %v956 = vld [vmem:[%s952 + $0xc] sm:$0xf]
        %v957 = vld [vmem:[%s952 + $0x10] sm:$0xf]
        %v958 = vld [vmem:[%s952 + $0x14] sm:$0xf]
        %v959 = vld [vmem:[%s952 + $0x18] sm:$0xf]
        %v960 = vld [vmem:[%s952 + $0x1c] sm:$0xf]
        %v961 = vld [vmem:[%s952 + $0x20] sm:$0xf]
        %v962 = vld [vmem:[%s952 + $0x24] sm:$0xf]
        %v963 = vld [vmem:[%s952 + $0x28] sm:$0xf]
        %v964 = vld [vmem:[%s952 + $0x2c] sm:$0xf]
        %v965 = vld [vmem:[%s952 + $0x30] sm:$0xf]
        %v966 = vld [vmem:[%s952 + $0x34] sm:$0xf]
        %v967 = vld [vmem:[%s952 + $0x38] sm:$0xf]
        %v968 = vld [vmem:[%s952 + $0x3c] sm:$0xf]
        %v969 = vld [vmem:[%s952 + $0x40] sm:$0xf]
        %v970 = vld [vmem:[%s952 + $0x44] sm:$0xf]
        %v971 = vld [vmem:[%s952 + $0x48] sm:$0xf]
        %v972 = vld [vmem:[%s952 + $0x4c] sm:$0xf]
        %v973 = vld [vmem:[%s952 + $0x50] sm:$0xf]
        %v974 = vld [vmem:[%s952 + $0x54] sm:$0xf]
        %v975 = vld [vmem:[%s952 + $0x58] sm:$0xf]
        %v976 = vld [vmem:[%s952 + $0x5c] sm:$0xf]
        %v977 = vld [vmem:[%s952 + $0x60] sm:$0xf]
        %v978 = vld [vmem:[%s952 + $0x64] sm:$0xf]
        %v979 = vld [vmem:[%s952 + $0x68] sm:$0xf]
        %v980 = vld [vmem:[%s952 + $0x6c] sm:$0xf]
        %v981 = vld [vmem:[%s952 + $0x70] sm:$0xf]
        %v982 = vld [vmem:[%s952 + $0x74] sm:$0xf]
        %v983 = vld [vmem:[%s952 + $0x78] sm:$0xf]
        %v984 = vld [vmem:[%s952 + $0x7c] sm:$0xf]
        %v1017 = vunpack.c.l.b16 %v953
        %v1018 = vunpack.c.l.b16 %v954
        %v1019 = vunpack.c.l.b16 %v955
        %v1020 = vunpack.c.l.b16 %v956
        %v1021 = vunpack.c.l.b16 %v957
        %v1022 = vunpack.c.l.b16 %v958
        %v1023 = vunpack.c.l.b16 %v959
        %v1024 = vunpack.c.l.b16 %v960
        %v1025 = vunpack.c.l.b16 %v961
        %v1026 = vunpack.c.l.b16 %v962
        %v1027 = vunpack.c.l.b16 %v963
        %v1028 = vunpack.c.l.b16 %v964
        %v1029 = vunpack.c.l.b16 %v965
        %v1030 = vunpack.c.l.b16 %v966
        %v1031 = vunpack.c.l.b16 %v967
        %v1032 = vunpack.c.l.b16 %v968
        %v1033 = vunpack.c.l.b16 %v969
        %v1034 = vunpack.c.l.b16 %v970
        %v1035 = vunpack.c.l.b16 %v971
        %v1036 = vunpack.c.l.b16 %v972
        %v1037 = vunpack.c.l.b16 %v973
        %v1038 = vunpack.c.l.b16 %v974
        %v1039 = vunpack.c.l.b16 %v975
        %v1040 = vunpack.c.l.b16 %v976
        %v1041 = vunpack.c.l.b16 %v977
        %v1042 = vunpack.c.l.b16 %v978
        %v1043 = vunpack.c.l.b16 %v979
        %v1044 = vunpack.c.l.b16 %v980
        %v1045 = vunpack.c.l.b16 %v981
        %v1046 = vunpack.c.l.b16 %v982
        %v1047 = vunpack.c.l.b16 %v983
        %v1048 = vunpack.c.l.b16 %v984
        %v1049 = vpack.c.b16 %v1018, %v1017
        %v1050 = vpack.c.b16 %v1020, %v1019
        %v1051 = vpack.c.b16 %v1022, %v1021
        %v1052 = vpack.c.b16 %v1024, %v1023
        %v1053 = vpack.c.b16 %v1026, %v1025
        %v1054 = vpack.c.b16 %v1028, %v1027
        %v1055 = vpack.c.b16 %v1030, %v1029
        %v1056 = vpack.c.b16 %v1032, %v1031
        %v1057 = vpack.c.b16 %v1034, %v1033
        %v1058 = vpack.c.b16 %v1036, %v1035
        %v1059 = vpack.c.b16 %v1038, %v1037
        %v1060 = vpack.c.b16 %v1040, %v1039
        %v1061 = vpack.c.b16 %v1042, %v1041
        %v1062 = vpack.c.b16 %v1044, %v1043
        %v1063 = vpack.c.b16 %v1046, %v1045
        %v1064 = vpack.c.b16 %v1048, %v1047
        %1081 = vmatprep.subr.bf16.mxu0 0
        %1082 = vmatpush1.bf16.msra.mxu0 %v1056
        %1083 = vmatprep.subr.bf16.mxu0 0
        %1084 = vmatpush1.bf16.msra.mxu0 %v1055
        %1085 = vmatprep.subr.bf16.mxu0 0
        %1086 = vmatpush1.bf16.msra.mxu0 %v1054
        %1087 = vmatprep.subr.bf16.mxu0 0
        %1088 = vmatpush1.bf16.msra.mxu0 %v1053
        %1089 = vmatprep.subr.bf16.mxu0 0
        %1090 = vmatpush1.bf16.msra.mxu0 %v1052
        %1091 = vmatprep.subr.bf16.mxu0 0
        %1092 = vmatpush1.bf16.msra.mxu0 %v1051
        %1093 = vmatprep.subr.bf16.mxu0 0
        %1094 = vmatpush1.bf16.msra.mxu0 %v1050
        %1095 = vmatprep.subr.bf16.mxu0 0
        %1096 = vmatpush1.bf16.msra.mxu0 %v1049
        %1097 = vmatprep.subr.bf16.mxu0 0
        %1098 = vmatpush2.bf16.msra.mxu0 %v1064
        %1099 = vmatprep.subr.bf16.mxu0 0
        %1100 = vmatpush2.bf16.msra.mxu0 %v1063
        %1101 = vmatprep.subr.bf16.mxu0 0
        %1102 = vmatpush2.bf16.msra.mxu0 %v1062
        %1103 = vmatprep.subr.bf16.mxu0 0
        %1104 = vmatpush2.bf16.msra.mxu0 %v1061
        %1105 = vmatprep.subr.bf16.mxu0 0
        %1106 = vmatpush2.bf16.msra.mxu0 %v1060
        %1107 = vmatprep.subr.bf16.mxu0 0
        %1108 = vmatpush2.bf16.msra.mxu0 %v1059
        %1109 = vmatprep.subr.bf16.mxu0 0
        %1110 = vmatpush2.bf16.msra.mxu0 %v1058
        %1111 = vmatprep.subr.bf16.mxu0 0
        %1112 = vmatpush2.bf16.msra.mxu0 %v1057
        %1113 = vmatprep.mubr.bf16.mxu0 %v322
        %1114 = vmatmul.mubr.bf16.gmra.mxu0 %v321
        %v1115 = vpop.f32.mrf.mxu0
        %v1116 = vadd.f32 0.0, %v1115
        %v1117 = vpop.f32.mrf.mxu0
        %v1118 = vpop.f32.mrf.mxu0
        %v1119 = vpop.f32.mrf.mxu0
        %1120 = vdwg.mxu0
        %s1121 = scalar_lea.vmem %s3, 128
        %v1122 = vld [vmem:[%s1121] sm:$0xf]
        %v1123 = vld [vmem:[%s1121 + $0x4] sm:$0xf]
        %v1124 = vld [vmem:[%s1121 + $0x8] sm:$0xf]
        %v1125 = vld [vmem:[%s1121 + $0xc] sm:$0xf]
        %v1126 = vld [vmem:[%s1121 + $0x10] sm:$0xf]
        %v1127 = vld [vmem:[%s1121 + $0x14] sm:$0xf]
        %v1128 = vld [vmem:[%s1121 + $0x18] sm:$0xf]
        %v1129 = vld [vmem:[%s1121 + $0x1c] sm:$0xf]
        %v1130 = vld [vmem:[%s1121 + $0x20] sm:$0xf]
        %v1131 = vld [vmem:[%s1121 + $0x24] sm:$0xf]
        %v1132 = vld [vmem:[%s1121 + $0x28] sm:$0xf]
        %v1133 = vld [vmem:[%s1121 + $0x2c] sm:$0xf]
        %v1134 = vld [vmem:[%s1121 + $0x30] sm:$0xf]
        %v1135 = vld [vmem:[%s1121 + $0x34] sm:$0xf]
        %v1136 = vld [vmem:[%s1121 + $0x38] sm:$0xf]
        %v1137 = vld [vmem:[%s1121 + $0x3c] sm:$0xf]
        %v1138 = vld [vmem:[%s1121 + $0x40] sm:$0xf]
        %v1139 = vld [vmem:[%s1121 + $0x44] sm:$0xf]
        %v1140 = vld [vmem:[%s1121 + $0x48] sm:$0xf]
        %v1141 = vld [vmem:[%s1121 + $0x4c] sm:$0xf]
        %v1142 = vld [vmem:[%s1121 + $0x50] sm:$0xf]
        %v1143 = vld [vmem:[%s1121 + $0x54] sm:$0xf]
        %v1144 = vld [vmem:[%s1121 + $0x58] sm:$0xf]
        %v1145 = vld [vmem:[%s1121 + $0x5c] sm:$0xf]
        %v1146 = vld [vmem:[%s1121 + $0x60] sm:$0xf]
        %v1147 = vld [vmem:[%s1121 + $0x64] sm:$0xf]
        %v1148 = vld [vmem:[%s1121 + $0x68] sm:$0xf]
        %v1149 = vld [vmem:[%s1121 + $0x6c] sm:$0xf]
        %v1150 = vld [vmem:[%s1121 + $0x70] sm:$0xf]
        %v1151 = vld [vmem:[%s1121 + $0x74] sm:$0xf]
        %v1152 = vld [vmem:[%s1121 + $0x78] sm:$0xf]
        %v1153 = vld [vmem:[%s1121 + $0x7c] sm:$0xf]
        %v1186 = vunpack.c.l.b16 %v1122
        %v1187 = vunpack.c.l.b16 %v1123
        %v1188 = vunpack.c.l.b16 %v1124
        %v1189 = vunpack.c.l.b16 %v1125
        %v1190 = vunpack.c.l.b16 %v1126
        %v1191 = vunpack.c.l.b16 %v1127
        %v1192 = vunpack.c.l.b16 %v1128
        %v1193 = vunpack.c.l.b16 %v1129
        %v1194 = vunpack.c.l.b16 %v1130
        %v1195 = vunpack.c.l.b16 %v1131
        %v1196 = vunpack.c.l.b16 %v1132
        %v1197 = vunpack.c.l.b16 %v1133
        %v1198 = vunpack.c.l.b16 %v1134
        %v1199 = vunpack.c.l.b16 %v1135
        %v1200 = vunpack.c.l.b16 %v1136
        %v1201 = vunpack.c.l.b16 %v1137
        %v1202 = vunpack.c.l.b16 %v1138
        %v1203 = vunpack.c.l.b16 %v1139
        %v1204 = vunpack.c.l.b16 %v1140
        %v1205 = vunpack.c.l.b16 %v1141
        %v1206 = vunpack.c.l.b16 %v1142
        %v1207 = vunpack.c.l.b16 %v1143
        %v1208 = vunpack.c.l.b16 %v1144
        %v1209 = vunpack.c.l.b16 %v1145
        %v1210 = vunpack.c.l.b16 %v1146
        %v1211 = vunpack.c.l.b16 %v1147
        %v1212 = vunpack.c.l.b16 %v1148
        %v1213 = vunpack.c.l.b16 %v1149
        %v1214 = vunpack.c.l.b16 %v1150
        %v1215 = vunpack.c.l.b16 %v1151
        %v1216 = vunpack.c.l.b16 %v1152
        %v1217 = vunpack.c.l.b16 %v1153
        %v1218 = vpack.c.b16 %v1187, %v1186
        %v1219 = vpack.c.b16 %v1189, %v1188
        %v1220 = vpack.c.b16 %v1191, %v1190
        %v1221 = vpack.c.b16 %v1193, %v1192
        %v1222 = vpack.c.b16 %v1195, %v1194
        %v1223 = vpack.c.b16 %v1197, %v1196
        %v1224 = vpack.c.b16 %v1199, %v1198
        %v1225 = vpack.c.b16 %v1201, %v1200
        %v1226 = vpack.c.b16 %v1203, %v1202
        %v1227 = vpack.c.b16 %v1205, %v1204
        %v1228 = vpack.c.b16 %v1207, %v1206
        %v1229 = vpack.c.b16 %v1209, %v1208
        %v1230 = vpack.c.b16 %v1211, %v1210
        %v1231 = vpack.c.b16 %v1213, %v1212
        %v1232 = vpack.c.b16 %v1215, %v1214
        %v1233 = vpack.c.b16 %v1217, %v1216
        %1250 = vmatprep.subr.bf16.mxu0 0
        %1251 = vmatpush1.bf16.msra.mxu0 %v1225
        %1252 = vmatprep.subr.bf16.mxu0 0
        %1253 = vmatpush1.bf16.msra.mxu0 %v1224
        %1254 = vmatprep.subr.bf16.mxu0 0
        %1255 = vmatpush1.bf16.msra.mxu0 %v1223
        %1256 = vmatprep.subr.bf16.mxu0 0
        %1257 = vmatpush1.bf16.msra.mxu0 %v1222
        %1258 = vmatprep.subr.bf16.mxu0 0
        %1259 = vmatpush1.bf16.msra.mxu0 %v1221
        %1260 = vmatprep.subr.bf16.mxu0 0
        %1261 = vmatpush1.bf16.msra.mxu0 %v1220
        %1262 = vmatprep.subr.bf16.mxu0 0
        %1263 = vmatpush1.bf16.msra.mxu0 %v1219
        %1264 = vmatprep.subr.bf16.mxu0 0
        %1265 = vmatpush1.bf16.msra.mxu0 %v1218
        %1266 = vmatprep.subr.bf16.mxu0 0
        %1267 = vmatpush2.bf16.msra.mxu0 %v1233
        %1268 = vmatprep.subr.bf16.mxu0 0
        %1269 = vmatpush2.bf16.msra.mxu0 %v1232
        %1270 = vmatprep.subr.bf16.mxu0 0
        %1271 = vmatpush2.bf16.msra.mxu0 %v1231
        %1272 = vmatprep.subr.bf16.mxu0 0
        %1273 = vmatpush2.bf16.msra.mxu0 %v1230
        %1274 = vmatprep.subr.bf16.mxu0 0
        %1275 = vmatpush2.bf16.msra.mxu0 %v1229
        %1276 = vmatprep.subr.bf16.mxu0 0
        %1277 = vmatpush2.bf16.msra.mxu0 %v1228
        %1278 = vmatprep.subr.bf16.mxu0 0
        %1279 = vmatpush2.bf16.msra.mxu0 %v1227
        %1280 = vmatprep.subr.bf16.mxu0 0
        %1281 = vmatpush2.bf16.msra.mxu0 %v1226
        %1282 = vmatprep.mubr.bf16.mxu0 %v322
        %1283 = vmatmul.mubr.bf16.gmra.mxu0 %v321
        %v1284 = vpop.f32.mrf.mxu0
        %v1285 = vadd.f32 0.0, %v1284
        %v1286 = vpop.f32.mrf.mxu0
        %v1287 = vpop.f32.mrf.mxu0
        %v1288 = vpop.f32.mrf.mxu0
        %1289 = vdwg.mxu0
        %s1290 = scalar_lea.vmem %s4, 128
        %v1291 = vld [vmem:[%s1290] sm:$0xf]
        %v1292 = vld [vmem:[%s1290 + $0x4] sm:$0xf]
        %v1293 = vld [vmem:[%s1290 + $0x8] sm:$0xf]
        %v1294 = vld [vmem:[%s1290 + $0xc] sm:$0xf]
        %v1295 = vld [vmem:[%s1290 + $0x10] sm:$0xf]
        %v1296 = vld [vmem:[%s1290 + $0x14] sm:$0xf]
        %v1297 = vld [vmem:[%s1290 + $0x18] sm:$0xf]
        %v1298 = vld [vmem:[%s1290 + $0x1c] sm:$0xf]
        %v1299 = vld [vmem:[%s1290 + $0x20] sm:$0xf]
        %v1300 = vld [vmem:[%s1290 + $0x24] sm:$0xf]
        %v1301 = vld [vmem:[%s1290 + $0x28] sm:$0xf]
        %v1302 = vld [vmem:[%s1290 + $0x2c] sm:$0xf]
        %v1303 = vld [vmem:[%s1290 + $0x30] sm:$0xf]
        %v1304 = vld [vmem:[%s1290 + $0x34] sm:$0xf]
        %v1305 = vld [vmem:[%s1290 + $0x38] sm:$0xf]
        %v1306 = vld [vmem:[%s1290 + $0x3c] sm:$0xf]
        %v1307 = vld [vmem:[%s1290 + $0x40] sm:$0xf]
        %v1308 = vld [vmem:[%s1290 + $0x44] sm:$0xf]
        %v1309 = vld [vmem:[%s1290 + $0x48] sm:$0xf]
        %v1310 = vld [vmem:[%s1290 + $0x4c] sm:$0xf]
        %v1311 = vld [vmem:[%s1290 + $0x50] sm:$0xf]
        %v1312 = vld [vmem:[%s1290 + $0x54] sm:$0xf]
        %v1313 = vld [vmem:[%s1290 + $0x58] sm:$0xf]
        %v1314 = vld [vmem:[%s1290 + $0x5c] sm:$0xf]
        %v1315 = vld [vmem:[%s1290 + $0x60] sm:$0xf]
        %v1316 = vld [vmem:[%s1290 + $0x64] sm:$0xf]
        %v1317 = vld [vmem:[%s1290 + $0x68] sm:$0xf]
        %v1318 = vld [vmem:[%s1290 + $0x6c] sm:$0xf]
        %v1319 = vld [vmem:[%s1290 + $0x70] sm:$0xf]
        %v1320 = vld [vmem:[%s1290 + $0x74] sm:$0xf]
        %v1321 = vld [vmem:[%s1290 + $0x78] sm:$0xf]
        %v1322 = vld [vmem:[%s1290 + $0x7c] sm:$0xf]
        %v1355 = vunpack.c.l.b16 %v1291
        %v1356 = vunpack.c.l.b16 %v1292
        %v1357 = vunpack.c.l.b16 %v1293
        %v1358 = vunpack.c.l.b16 %v1294
        %v1359 = vunpack.c.l.b16 %v1295
        %v1360 = vunpack.c.l.b16 %v1296
        %v1361 = vunpack.c.l.b16 %v1297
        %v1362 = vunpack.c.l.b16 %v1298
        %v1363 = vunpack.c.l.b16 %v1299
        %v1364 = vunpack.c.l.b16 %v1300
        %v1365 = vunpack.c.l.b16 %v1301
        %v1366 = vunpack.c.l.b16 %v1302
        %v1367 = vunpack.c.l.b16 %v1303
        %v1368 = vunpack.c.l.b16 %v1304
        %v1369 = vunpack.c.l.b16 %v1305
        %v1370 = vunpack.c.l.b16 %v1306
        %v1371 = vunpack.c.l.b16 %v1307
        %v1372 = vunpack.c.l.b16 %v1308
        %v1373 = vunpack.c.l.b16 %v1309
        %v1374 = vunpack.c.l.b16 %v1310
        %v1375 = vunpack.c.l.b16 %v1311
        %v1376 = vunpack.c.l.b16 %v1312
        %v1377 = vunpack.c.l.b16 %v1313
        %v1378 = vunpack.c.l.b16 %v1314
        %v1379 = vunpack.c.l.b16 %v1315
        %v1380 = vunpack.c.l.b16 %v1316
        %v1381 = vunpack.c.l.b16 %v1317
        %v1382 = vunpack.c.l.b16 %v1318
        %v1383 = vunpack.c.l.b16 %v1319
        %v1384 = vunpack.c.l.b16 %v1320
        %v1385 = vunpack.c.l.b16 %v1321
        %v1386 = vunpack.c.l.b16 %v1322
        %v1387 = vpack.c.b16 %v1356, %v1355
        %v1388 = vpack.c.b16 %v1358, %v1357
        %v1389 = vpack.c.b16 %v1360, %v1359
        %v1390 = vpack.c.b16 %v1362, %v1361
        %v1391 = vpack.c.b16 %v1364, %v1363
        %v1392 = vpack.c.b16 %v1366, %v1365
        %v1393 = vpack.c.b16 %v1368, %v1367
        %v1394 = vpack.c.b16 %v1370, %v1369
        %v1395 = vpack.c.b16 %v1372, %v1371
        %v1396 = vpack.c.b16 %v1374, %v1373
        %v1397 = vpack.c.b16 %v1376, %v1375
        %v1398 = vpack.c.b16 %v1378, %v1377
        %v1399 = vpack.c.b16 %v1380, %v1379
        %v1400 = vpack.c.b16 %v1382, %v1381
        %v1401 = vpack.c.b16 %v1384, %v1383
        %v1402 = vpack.c.b16 %v1386, %v1385
        %1419 = vmatprep.subr.bf16.mxu0 0
        %1420 = vmatpush1.bf16.msra.mxu0 %v1394
        %1421 = vmatprep.subr.bf16.mxu0 0
        %1422 = vmatpush1.bf16.msra.mxu0 %v1393
        %1423 = vmatprep.subr.bf16.mxu0 0
        %1424 = vmatpush1.bf16.msra.mxu0 %v1392
        %1425 = vmatprep.subr.bf16.mxu0 0
        %1426 = vmatpush1.bf16.msra.mxu0 %v1391
        %1427 = vmatprep.subr.bf16.mxu0 0
        %1428 = vmatpush1.bf16.msra.mxu0 %v1390
        %1429 = vmatprep.subr.bf16.mxu0 0
        %1430 = vmatpush1.bf16.msra.mxu0 %v1389
        %1431 = vmatprep.subr.bf16.mxu0 0
        %1432 = vmatpush1.bf16.msra.mxu0 %v1388
        %1433 = vmatprep.subr.bf16.mxu0 0
        %1434 = vmatpush1.bf16.msra.mxu0 %v1387
        %1435 = vmatprep.subr.bf16.mxu0 0
        %1436 = vmatpush2.bf16.msra.mxu0 %v1402
        %1437 = vmatprep.subr.bf16.mxu0 0
        %1438 = vmatpush2.bf16.msra.mxu0 %v1401
        %1439 = vmatprep.subr.bf16.mxu0 0
        %1440 = vmatpush2.bf16.msra.mxu0 %v1400
        %1441 = vmatprep.subr.bf16.mxu0 0
        %1442 = vmatpush2.bf16.msra.mxu0 %v1399
        %1443 = vmatprep.subr.bf16.mxu0 0
        %1444 = vmatpush2.bf16.msra.mxu0 %v1398
        %1445 = vmatprep.subr.bf16.mxu0 0
        %1446 = vmatpush2.bf16.msra.mxu0 %v1397
        %1447 = vmatprep.subr.bf16.mxu0 0
        %1448 = vmatpush2.bf16.msra.mxu0 %v1396
        %1449 = vmatprep.subr.bf16.mxu0 0
        %1450 = vmatpush2.bf16.msra.mxu0 %v1395
        %1451 = vmatprep.mubr.bf16.mxu0 %v322
        %1452 = vmatmul.mubr.bf16.gmra.mxu0 %v321
        %v1453 = vpop.f32.mrf.mxu0
        %v1454 = vadd.f32 0.0, %v1453
        %v1455 = vpop.f32.mrf.mxu0
        %v1456 = vpop.f32.mrf.mxu0
        %v1457 = vpop.f32.mrf.mxu0
        %1458 = vdwg.mxu0
        %v1459 = vpack.c.bf16 %v1116, %v1116
        %v1460 = vpack.c.bf16 %v1285, %v1285
        %v1462 = vsel %vm830, %v1459, 0
        %v1465 = vsel %vm830, %v1460, 0
        %1467 = vmatprep.subr.bf16.mxu0 0
        %1468 = vmatpush1.bf16.xpose.msra.mxu0 0
        %1469 = vmatprep.subr.bf16.mxu0 0
        %1470 = vmatpush1.bf16.xpose.msra.mxu0 0
        %1471 = vmatprep.subr.bf16.mxu0 0
        %1472 = vmatpush1.bf16.xpose.msra.mxu0 0
        %1473 = vmatprep.subr.bf16.mxu0 0
        %1474 = vmatpush1.bf16.xpose.msra.mxu0 0
        %1475 = vmatprep.subr.bf16.mxu0 0
        %1476 = vmatpush1.bf16.xpose.msra.mxu0 0
        %1477 = vmatprep.subr.bf16.mxu0 0
        %1478 = vmatpush1.bf16.xpose.msra.mxu0 0
        %1479 = vmatprep.subr.bf16.mxu0 0
        %1480 = vmatpush1.bf16.xpose.msra.mxu0 0
        %1481 = vmatprep.subr.bf16.mxu0 0
        %1482 = vmatpush1.bf16.xpose.msra.mxu0 %v1465
        %1483 = vmatprep.subr.bf16.mxu0 0
        %1484 = vmatpush2.bf16.xpose.msra.mxu0 0
        %1485 = vmatprep.subr.bf16.mxu0 0
        %1486 = vmatpush2.bf16.xpose.msra.mxu0 0
        %1487 = vmatprep.subr.bf16.mxu0 0
        %1488 = vmatpush2.bf16.xpose.msra.mxu0 0
        %1489 = vmatprep.subr.bf16.mxu0 0
        %1490 = vmatpush2.bf16.xpose.msra.mxu0 0
        %1491 = vmatprep.subr.bf16.mxu0 0
        %1492 = vmatpush2.bf16.xpose.msra.mxu0 0
        %1493 = vmatprep.subr.bf16.mxu0 0
        %1494 = vmatpush2.bf16.xpose.msra.mxu0 0
        %1495 = vmatprep.subr.bf16.mxu0 0
        %1496 = vmatpush2.bf16.xpose.msra.mxu0 0
        %1497 = vmatprep.subr.bf16.mxu0 0
        %1498 = vmatpush2.bf16.xpose.msra.mxu0 0
        %1499 = vmatprep.mubr.bf16.mxu0 0
        %1500 = vmatmul.mubr.bf16.gmra.mxu0 %v1462
        %v1501 = vpop.f32.mrf.mxu0
        %v1502 = vadd.f32 0.0, %v1501
        %v1503 = vpop.f32.mrf.mxu0
        %v1504 = vpop.f32.mrf.mxu0
        %v1505 = vpop.f32.mrf.mxu0
        %1506 = vdwg.mxu0
        %v1507 = vmul.f32 %v1502, 0.17677669
        %v1508 = vsel %vm884, -1e+09, %v1507
        %v1509 = vsel %vm886, %v1508, -inf
        %1510 = vmax.xlane.f32.xlu0 %v1509
        %v1511 = vpop.xlane.xlu0 %1510
        %v1512 = vsub.f32 %v1508, %v1511
        %v1513 = vmul.f32 %v1512, 1.442695
        %v1514 = vpow.pop %v1513
        %v1515 = vsel %vm886, %v1514, 0.0
        %1516 = vadd.xlane.f32.xlu0 %v1515
        %v1517 = vpop.xlane.xlu0 %1516
        %v1518 = vrcp.pop %v1517
        %v1519 = vmul.f32 %v1514, %v1518
        %v1520 = vpack.c.bf16 %v1519, %v1519
        %v1521 = vpack.c.bf16 %v1454, %v1454
        %v1523 = vsel %vm886, %v1520, 0
        %v1526 = vsel %vm903, %v1521, 0
        %1528 = vmatprep.subr.bf16.mxu0 0
        %1529 = vmatpush1.bf16.msra.mxu0 0
        %1530 = vmatprep.subr.bf16.mxu0 0
        %1531 = vmatpush1.bf16.msra.mxu0 0
        %1532 = vmatprep.subr.bf16.mxu0 0
        %1533 = vmatpush1.bf16.msra.mxu0 0
        %1534 = vmatprep.subr.bf16.mxu0 0
        %1535 = vmatpush1.bf16.msra.mxu0 0
        %1536 = vmatprep.subr.bf16.mxu0 0
        %1537 = vmatpush1.bf16.msra.mxu0 0
        %1538 = vmatprep.subr.bf16.mxu0 0
        %1539 = vmatpush1.bf16.msra.mxu0 0
        %1540 = vmatprep.subr.bf16.mxu0 0
        %1541 = vmatpush1.bf16.msra.mxu0 0
        %1542 = vmatprep.subr.bf16.mxu0 0
        %1543 = vmatpush1.bf16.msra.mxu0 %v1526
        %1544 = vmatprep.subr.bf16.mxu0 0
        %1545 = vmatpush2.bf16.msra.mxu0 0
        %1546 = vmatprep.subr.bf16.mxu0 0
        %1547 = vmatpush2.bf16.msra.mxu0 0
        %1548 = vmatprep.subr.bf16.mxu0 0
        %1549 = vmatpush2.bf16.msra.mxu0 0
        %1550 = vmatprep.subr.bf16.mxu0 0
        %1551 = vmatpush2.bf16.msra.mxu0 0
        %1552 = vmatprep.subr.bf16.mxu0 0
        %1553 = vmatpush2.bf16.msra.mxu0 0
        %1554 = vmatprep.subr.bf16.mxu0 0
        %1555 = vmatpush2.bf16.msra.mxu0 0
        %1556 = vmatprep.subr.bf16.mxu0 0
        %1557 = vmatpush2.bf16.msra.mxu0 0
        %1558 = vmatprep.subr.bf16.mxu0 0
        %1559 = vmatpush2.bf16.msra.mxu0 0
        %1560 = vmatprep.mubr.bf16.mxu0 0
        %1561 = vmatmul.mubr.bf16.gmra.mxu0 %v1523
        %v1562 = vpop.f32.mrf.mxu0
        %v1563 = vadd.f32 0.0, %v1562
        %v1564 = vpop.f32.mrf.mxu0
        %v1565 = vpop.f32.mrf.mxu0
        %v1566 = vpop.f32.mrf.mxu0
        %1567 = vdwg.mxu0
        %v1568 = vpack.c.bf16 %v1563, %v1563
        %s1569 = scalar_lea.vmem %s5, 32
        %v1570 = vld [vmem:[%s1569] sm:$0xff]
        %v1571 = vld [vmem:[%s1569 + $0x8] sm:$0xff]
        %v1572 = vld [vmem:[%s1569 + $0x10] sm:$0xff]
        %v1573 = vld [vmem:[%s1569 + $0x18] sm:$0xff]
        %v1578 = vunpack.c.l.b16 %v1570
        %v1579 = vunpack.c.h.b16 %v1570
        %v1580 = vunpack.c.l.b16 %v1571
        %v1581 = vunpack.c.h.b16 %v1571
        %v1582 = vunpack.c.l.b16 %v1572
        %v1583 = vunpack.c.h.b16 %v1572
        %v1584 = vunpack.c.l.b16 %v1573
        %v1585 = vunpack.c.h.b16 %v1573
        %v1586 = vpack.c.b16 %v1580, %v1578
        %v1587 = vpack.c.b16 %v1581, %v1579
        %v1588 = vpack.c.b16 %v1584, %v1582
        %v1589 = vpack.c.b16 %v1585, %v1583
        %v1595 = vsel %vm830, %v1568, 0
        %1597 = vmatprep.subr.bf16.mxu0 0
        %1598 = vmatpush1.bf16.msra.mxu0 0
        %1599 = vmatprep.subr.bf16.mxu0 0
        %1600 = vmatpush1.bf16.msra.mxu0 0
        %1601 = vmatprep.subr.bf16.mxu0 0
        %1602 = vmatpush1.bf16.msra.mxu0 0
        %1603 = vmatprep.subr.bf16.mxu0 0
        %1604 = vmatpush1.bf16.msra.mxu0 0
        %1605 = vmatprep.subr.bf16.mxu0 0
        %1606 = vmatpush1.bf16.msra.mxu0 0
        %1607 = vmatprep.subr.bf16.mxu0 0
        %1608 = vmatpush1.bf16.msra.mxu0 0
        %1609 = vmatprep.subr.bf16.mxu0 %v1589
        %1610 = vmatpush1.bf16.msra.mxu0 %v1588
        %1611 = vmatprep.subr.bf16.mxu0 %v1587
        %1612 = vmatpush1.bf16.msra.mxu0 %v1586
        %1613 = vmatprep.subr.bf16.mxu0 0
        %1614 = vmatpush2.bf16.msra.mxu0 0
        %1615 = vmatprep.subr.bf16.mxu0 0
        %1616 = vmatpush2.bf16.msra.mxu0 0
        %1617 = vmatprep.subr.bf16.mxu0 0
        %1618 = vmatpush2.bf16.msra.mxu0 0
        %1619 = vmatprep.subr.bf16.mxu0 0
        %1620 = vmatpush2.bf16.msra.mxu0 0
        %1621 = vmatprep.subr.bf16.mxu0 0
        %1622 = vmatpush2.bf16.msra.mxu0 0
        %1623 = vmatprep.subr.bf16.mxu0 0
        %1624 = vmatpush2.bf16.msra.mxu0 0
        %1625 = vmatprep.subr.bf16.mxu0 0
        %1626 = vmatpush2.bf16.msra.mxu0 0
        %1627 = vmatprep.subr.bf16.mxu0 0
        %1628 = vmatpush2.bf16.msra.mxu0 0
        %1629 = vmatprep.mubr.bf16.mxu0 0
        %1630 = vmatmul.mubr.bf16.gmra.mxu0 %v1595
        %v1631 = vpop.f32.mrf.mxu0
        %v1632 = vadd.f32 0.0, %v1631
        %v1633 = vpop.f32.mrf.mxu0
        %v1634 = vadd.f32 0.0, %v1633
        %v1635 = vpop.f32.mrf.mxu0
        %v1636 = vpop.f32.mrf.mxu0
        %1637 = vdwg.mxu0
        %v1642 = vunpack.c.l.b16 %v948
        %v1643 = vunpack.c.h.b16 %v948
        %v1644 = vunpack.c.l.b16 %v949
        %v1645 = vunpack.c.h.b16 %v949
        %v1646 = vunpack.c.l.b16 %v950
        %v1647 = vunpack.c.h.b16 %v950
        %v1648 = vunpack.c.l.b16 %v951
        %v1649 = vunpack.c.h.b16 %v951
        %v1650 = vpack.c.b16 %v1644, %v1642
        %v1651 = vpack.c.b16 %v1645, %v1643
        %v1652 = vpack.c.b16 %v1648, %v1646
        %v1653 = vpack.c.b16 %v1649, %v1647
        %v1659 = vsel %vm830, %v947, 0
        %1661 = vmatprep.subr.bf16.mxu0 0
        %1662 = vmatpush1.bf16.msra.mxu0 0
        %1663 = vmatprep.subr.bf16.mxu0 0
        %1664 = vmatpush1.bf16.msra.mxu0 0
        %1665 = vmatprep.subr.bf16.mxu0 0
        %1666 = vmatpush1.bf16.msra.mxu0 0
        %1667 = vmatprep.subr.bf16.mxu0 0
        %1668 = vmatpush1.bf16.msra.mxu0 0
        %1669 = vmatprep.subr.bf16.mxu0 0
        %1670 = vmatpush1.bf16.msra.mxu0 0
        %1671 = vmatprep.subr.bf16.mxu0 0
        %1672 = vmatpush1.bf16.msra.mxu0 0
        %1673 = vmatprep.subr.bf16.mxu0 %v1653
        %1674 = vmatpush1.bf16.msra.mxu0 %v1652
        %1675 = vmatprep.subr.bf16.mxu0 %v1651
        %1676 = vmatpush1.bf16.msra.mxu0 %v1650
        %1677 = vmatprep.subr.bf16.mxu0 0
        %1678 = vmatpush2.bf16.msra.mxu0 0
        %1679 = vmatprep.subr.bf16.mxu0 0
        %1680 = vmatpush2.bf16.msra.mxu0 0
        %1681 = vmatprep.subr.bf16.mxu0 0
        %1682 = vmatpush2.bf16.msra.mxu0 0
        %1683 = vmatprep.subr.bf16.mxu0 0
        %1684 = vmatpush2.bf16.msra.mxu0 0
        %1685 = vmatprep.subr.bf16.mxu0 0
        %1686 = vmatpush2.bf16.msra.mxu0 0
        %1687 = vmatprep.subr.bf16.mxu0 0
        %1688 = vmatpush2.bf16.msra.mxu0 0
        %1689 = vmatprep.subr.bf16.mxu0 0
        %1690 = vmatpush2.bf16.msra.mxu0 0
        %1691 = vmatprep.subr.bf16.mxu0 0
        %1692 = vmatpush2.bf16.msra.mxu0 0
        %1693 = vmatprep.mubr.bf16.mxu0 0
        %1694 = vmatmul.mubr.bf16.gmra.mxu0 %v1659
        %v1695 = vpop.f32.mrf.mxu0
        %v1696 = vadd.f32 %v1632, %v1695
        %v1697 = vpop.f32.mrf.mxu0
        %v1698 = vadd.f32 %v1634, %v1697
        %v1699 = vpop.f32.mrf.mxu0
        %v1700 = vpop.f32.mrf.mxu0
        %1701 = vdwg.mxu0
        %s1702 = scalar_lea.vmem %s2, 256
        %v1703 = vld [vmem:[%s1702] sm:$0xf]
        %v1704 = vld [vmem:[%s1702 + $0x4] sm:$0xf]
        %v1705 = vld [vmem:[%s1702 + $0x8] sm:$0xf]
        %v1706 = vld [vmem:[%s1702 + $0xc] sm:$0xf]
        %v1707 = vld [vmem:[%s1702 + $0x10] sm:$0xf]
        %v1708 = vld [vmem:[%s1702 + $0x14] sm:$0xf]
        %v1709 = vld [vmem:[%s1702 + $0x18] sm:$0xf]
        %v1710 = vld [vmem:[%s1702 + $0x1c] sm:$0xf]
        %v1711 = vld [vmem:[%s1702 + $0x20] sm:$0xf]
        %v1712 = vld [vmem:[%s1702 + $0x24] sm:$0xf]
        %v1713 = vld [vmem:[%s1702 + $0x28] sm:$0xf]
        %v1714 = vld [vmem:[%s1702 + $0x2c] sm:$0xf]
        %v1715 = vld [vmem:[%s1702 + $0x30] sm:$0xf]
        %v1716 = vld [vmem:[%s1702 + $0x34] sm:$0xf]
        %v1717 = vld [vmem:[%s1702 + $0x38] sm:$0xf]
        %v1718 = vld [vmem:[%s1702 + $0x3c] sm:$0xf]
        %v1719 = vld [vmem:[%s1702 + $0x40] sm:$0xf]
        %v1720 = vld [vmem:[%s1702 + $0x44] sm:$0xf]
        %v1721 = vld [vmem:[%s1702 + $0x48] sm:$0xf]
        %v1722 = vld [vmem:[%s1702 + $0x4c] sm:$0xf]
        %v1723 = vld [vmem:[%s1702 + $0x50] sm:$0xf]
        %v1724 = vld [vmem:[%s1702 + $0x54] sm:$0xf]
        %v1725 = vld [vmem:[%s1702 + $0x58] sm:$0xf]
        %v1726 = vld [vmem:[%s1702 + $0x5c] sm:$0xf]
        %v1727 = vld [vmem:[%s1702 + $0x60] sm:$0xf]
        %v1728 = vld [vmem:[%s1702 + $0x64] sm:$0xf]
        %v1729 = vld [vmem:[%s1702 + $0x68] sm:$0xf]
        %v1730 = vld [vmem:[%s1702 + $0x6c] sm:$0xf]
        %v1731 = vld [vmem:[%s1702 + $0x70] sm:$0xf]
        %v1732 = vld [vmem:[%s1702 + $0x74] sm:$0xf]
        %v1733 = vld [vmem:[%s1702 + $0x78] sm:$0xf]
        %v1734 = vld [vmem:[%s1702 + $0x7c] sm:$0xf]
        %v1767 = vunpack.c.l.b16 %v1703
        %v1768 = vunpack.c.l.b16 %v1704
        %v1769 = vunpack.c.l.b16 %v1705
        %v1770 = vunpack.c.l.b16 %v1706
        %v1771 = vunpack.c.l.b16 %v1707
        %v1772 = vunpack.c.l.b16 %v1708
        %v1773 = vunpack.c.l.b16 %v1709
        %v1774 = vunpack.c.l.b16 %v1710
        %v1775 = vunpack.c.l.b16 %v1711
        %v1776 = vunpack.c.l.b16 %v1712
        %v1777 = vunpack.c.l.b16 %v1713
        %v1778 = vunpack.c.l.b16 %v1714
        %v1779 = vunpack.c.l.b16 %v1715
        %v1780 = vunpack.c.l.b16 %v1716
        %v1781 = vunpack.c.l.b16 %v1717
        %v1782 = vunpack.c.l.b16 %v1718
        %v1783 = vunpack.c.l.b16 %v1719
        %v1784 = vunpack.c.l.b16 %v1720
        %v1785 = vunpack.c.l.b16 %v1721
        %v1786 = vunpack.c.l.b16 %v1722
        %v1787 = vunpack.c.l.b16 %v1723
        %v1788 = vunpack.c.l.b16 %v1724
        %v1789 = vunpack.c.l.b16 %v1725
        %v1790 = vunpack.c.l.b16 %v1726
        %v1791 = vunpack.c.l.b16 %v1727
        %v1792 = vunpack.c.l.b16 %v1728
        %v1793 = vunpack.c.l.b16 %v1729
        %v1794 = vunpack.c.l.b16 %v1730
        %v1795 = vunpack.c.l.b16 %v1731
        %v1796 = vunpack.c.l.b16 %v1732
        %v1797 = vunpack.c.l.b16 %v1733
        %v1798 = vunpack.c.l.b16 %v1734
        %v1799 = vpack.c.b16 %v1768, %v1767
        %v1800 = vpack.c.b16 %v1770, %v1769
        %v1801 = vpack.c.b16 %v1772, %v1771
        %v1802 = vpack.c.b16 %v1774, %v1773
        %v1803 = vpack.c.b16 %v1776, %v1775
        %v1804 = vpack.c.b16 %v1778, %v1777
        %v1805 = vpack.c.b16 %v1780, %v1779
        %v1806 = vpack.c.b16 %v1782, %v1781
        %v1807 = vpack.c.b16 %v1784, %v1783
        %v1808 = vpack.c.b16 %v1786, %v1785
        %v1809 = vpack.c.b16 %v1788, %v1787
        %v1810 = vpack.c.b16 %v1790, %v1789
        %v1811 = vpack.c.b16 %v1792, %v1791
        %v1812 = vpack.c.b16 %v1794, %v1793
        %v1813 = vpack.c.b16 %v1796, %v1795
        %v1814 = vpack.c.b16 %v1798, %v1797
        %1831 = vmatprep.subr.bf16.mxu0 0
        %1832 = vmatpush1.bf16.msra.mxu0 %v1806
        %1833 = vmatprep.subr.bf16.mxu0 0
        %1834 = vmatpush1.bf16.msra.mxu0 %v1805
        %1835 = vmatprep.subr.bf16.mxu0 0
        %1836 = vmatpush1.bf16.msra.mxu0 %v1804
        %1837 = vmatprep.subr.bf16.mxu0 0
        %1838 = vmatpush1.bf16.msra.mxu0 %v1803
        %1839 = vmatprep.subr.bf16.mxu0 0
        %1840 = vmatpush1.bf16.msra.mxu0 %v1802
        %1841 = vmatprep.subr.bf16.mxu0 0
        %1842 = vmatpush1.bf16.msra.mxu0 %v1801
        %1843 = vmatprep.subr.bf16.mxu0 0
        %1844 = vmatpush1.bf16.msra.mxu0 %v1800
        %1845 = vmatprep.subr.bf16.mxu0 0
        %1846 = vmatpush1.bf16.msra.mxu0 %v1799
        %1847 = vmatprep.subr.bf16.mxu0 0
        %1848 = vmatpush2.bf16.msra.mxu0 %v1814
        %1849 = vmatprep.subr.bf16.mxu0 0
        %1850 = vmatpush2.bf16.msra.mxu0 %v1813
        %1851 = vmatprep.subr.bf16.mxu0 0
        %1852 = vmatpush2.bf16.msra.mxu0 %v1812
        %1853 = vmatprep.subr.bf16.mxu0 0
        %1854 = vmatpush2.bf16.msra.mxu0 %v1811
        %1855 = vmatprep.subr.bf16.mxu0 0
        %1856 = vmatpush2.bf16.msra.mxu0 %v1810
        %1857 = vmatprep.subr.bf16.mxu0 0
        %1858 = vmatpush2.bf16.msra.mxu0 %v1809
        %1859 = vmatprep.subr.bf16.mxu0 0
        %1860 = vmatpush2.bf16.msra.mxu0 %v1808
        %1861 = vmatprep.subr.bf16.mxu0 0
        %1862 = vmatpush2.bf16.msra.mxu0 %v1807
        %1863 = vmatprep.mubr.bf16.mxu0 %v322
        %1864 = vmatmul.mubr.bf16.gmra.mxu0 %v321
        %v1865 = vpop.f32.mrf.mxu0
        %v1866 = vadd.f32 0.0, %v1865
        %v1867 = vpop.f32.mrf.mxu0
        %v1868 = vpop.f32.mrf.mxu0
        %v1869 = vpop.f32.mrf.mxu0
        %1870 = vdwg.mxu0
        %s1871 = scalar_lea.vmem %s3, 256
        %v1872 = vld [vmem:[%s1871] sm:$0xf]
        %v1873 = vld [vmem:[%s1871 + $0x4] sm:$0xf]
        %v1874 = vld [vmem:[%s1871 + $0x8] sm:$0xf]
        %v1875 = vld [vmem:[%s1871 + $0xc] sm:$0xf]
        %v1876 = vld [vmem:[%s1871 + $0x10] sm:$0xf]
        %v1877 = vld [vmem:[%s1871 + $0x14] sm:$0xf]
        %v1878 = vld [vmem:[%s1871 + $0x18] sm:$0xf]
        %v1879 = vld [vmem:[%s1871 + $0x1c] sm:$0xf]
        %v1880 = vld [vmem:[%s1871 + $0x20] sm:$0xf]
        %v1881 = vld [vmem:[%s1871 + $0x24] sm:$0xf]
        %v1882 = vld [vmem:[%s1871 + $0x28] sm:$0xf]
        %v1883 = vld [vmem:[%s1871 + $0x2c] sm:$0xf]
        %v1884 = vld [vmem:[%s1871 + $0x30] sm:$0xf]
        %v1885 = vld [vmem:[%s1871 + $0x34] sm:$0xf]
        %v1886 = vld [vmem:[%s1871 + $0x38] sm:$0xf]
        %v1887 = vld [vmem:[%s1871 + $0x3c] sm:$0xf]
        %v1888 = vld [vmem:[%s1871 + $0x40] sm:$0xf]
        %v1889 = vld [vmem:[%s1871 + $0x44] sm:$0xf]
        %v1890 = vld [vmem:[%s1871 + $0x48] sm:$0xf]
        %v1891 = vld [vmem:[%s1871 + $0x4c] sm:$0xf]
        %v1892 = vld [vmem:[%s1871 + $0x50] sm:$0xf]
        %v1893 = vld [vmem:[%s1871 + $0x54] sm:$0xf]
        %v1894 = vld [vmem:[%s1871 + $0x58] sm:$0xf]
        %v1895 = vld [vmem:[%s1871 + $0x5c] sm:$0xf]
        %v1896 = vld [vmem:[%s1871 + $0x60] sm:$0xf]
        %v1897 = vld [vmem:[%s1871 + $0x64] sm:$0xf]
        %v1898 = vld [vmem:[%s1871 + $0x68] sm:$0xf]
        %v1899 = vld [vmem:[%s1871 + $0x6c] sm:$0xf]
        %v1900 = vld [vmem:[%s1871 + $0x70] sm:$0xf]
        %v1901 = vld [vmem:[%s1871 + $0x74] sm:$0xf]
        %v1902 = vld [vmem:[%s1871 + $0x78] sm:$0xf]
        %v1903 = vld [vmem:[%s1871 + $0x7c] sm:$0xf]
        %v1936 = vunpack.c.l.b16 %v1872
        %v1937 = vunpack.c.l.b16 %v1873
        %v1938 = vunpack.c.l.b16 %v1874
        %v1939 = vunpack.c.l.b16 %v1875
        %v1940 = vunpack.c.l.b16 %v1876
        %v1941 = vunpack.c.l.b16 %v1877
        %v1942 = vunpack.c.l.b16 %v1878
        %v1943 = vunpack.c.l.b16 %v1879
        %v1944 = vunpack.c.l.b16 %v1880
        %v1945 = vunpack.c.l.b16 %v1881
        %v1946 = vunpack.c.l.b16 %v1882
        %v1947 = vunpack.c.l.b16 %v1883
        %v1948 = vunpack.c.l.b16 %v1884
        %v1949 = vunpack.c.l.b16 %v1885
        %v1950 = vunpack.c.l.b16 %v1886
        %v1951 = vunpack.c.l.b16 %v1887
        %v1952 = vunpack.c.l.b16 %v1888
        %v1953 = vunpack.c.l.b16 %v1889
        %v1954 = vunpack.c.l.b16 %v1890
        %v1955 = vunpack.c.l.b16 %v1891
        %v1956 = vunpack.c.l.b16 %v1892
        %v1957 = vunpack.c.l.b16 %v1893
        %v1958 = vunpack.c.l.b16 %v1894
        %v1959 = vunpack.c.l.b16 %v1895
        %v1960 = vunpack.c.l.b16 %v1896
        %v1961 = vunpack.c.l.b16 %v1897
        %v1962 = vunpack.c.l.b16 %v1898
        %v1963 = vunpack.c.l.b16 %v1899
        %v1964 = vunpack.c.l.b16 %v1900
        %v1965 = vunpack.c.l.b16 %v1901
        %v1966 = vunpack.c.l.b16 %v1902
        %v1967 = vunpack.c.l.b16 %v1903
        %v1968 = vpack.c.b16 %v1937, %v1936
        %v1969 = vpack.c.b16 %v1939, %v1938
        %v1970 = vpack.c.b16 %v1941, %v1940
        %v1971 = vpack.c.b16 %v1943, %v1942
        %v1972 = vpack.c.b16 %v1945, %v1944
        %v1973 = vpack.c.b16 %v1947, %v1946
        %v1974 = vpack.c.b16 %v1949, %v1948
        %v1975 = vpack.c.b16 %v1951, %v1950
        %v1976 = vpack.c.b16 %v1953, %v1952
        %v1977 = vpack.c.b16 %v1955, %v1954
        %v1978 = vpack.c.b16 %v1957, %v1956
        %v1979 = vpack.c.b16 %v1959, %v1958
        %v1980 = vpack.c.b16 %v1961, %v1960
        %v1981 = vpack.c.b16 %v1963, %v1962
        %v1982 = vpack.c.b16 %v1965, %v1964
        %v1983 = vpack.c.b16 %v1967, %v1966
        %2000 = vmatprep.subr.bf16.mxu0 0
        %2001 = vmatpush1.bf16.msra.mxu0 %v1975
        %2002 = vmatprep.subr.bf16.mxu0 0
        %2003 = vmatpush1.bf16.msra.mxu0 %v1974
        %2004 = vmatprep.subr.bf16.mxu0 0
        %2005 = vmatpush1.bf16.msra.mxu0 %v1973
        %2006 = vmatprep.subr.bf16.mxu0 0
        %2007 = vmatpush1.bf16.msra.mxu0 %v1972
        %2008 = vmatprep.subr.bf16.mxu0 0
        %2009 = vmatpush1.bf16.msra.mxu0 %v1971
        %2010 = vmatprep.subr.bf16.mxu0 0
        %2011 = vmatpush1.bf16.msra.mxu0 %v1970
        %2012 = vmatprep.subr.bf16.mxu0 0
        %2013 = vmatpush1.bf16.msra.mxu0 %v1969
        %2014 = vmatprep.subr.bf16.mxu0 0
        %2015 = vmatpush1.bf16.msra.mxu0 %v1968
        %2016 = vmatprep.subr.bf16.mxu0 0
        %2017 = vmatpush2.bf16.msra.mxu0 %v1983
        %2018 = vmatprep.subr.bf16.mxu0 0
        %2019 = vmatpush2.bf16.msra.mxu0 %v1982
        %2020 = vmatprep.subr.bf16.mxu0 0
        %2021 = vmatpush2.bf16.msra.mxu0 %v1981
        %2022 = vmatprep.subr.bf16.mxu0 0
        %2023 = vmatpush2.bf16.msra.mxu0 %v1980
        %2024 = vmatprep.subr.bf16.mxu0 0
        %2025 = vmatpush2.bf16.msra.mxu0 %v1979
        %2026 = vmatprep.subr.bf16.mxu0 0
        %2027 = vmatpush2.bf16.msra.mxu0 %v1978
        %2028 = vmatprep.subr.bf16.mxu0 0
        %2029 = vmatpush2.bf16.msra.mxu0 %v1977
        %2030 = vmatprep.subr.bf16.mxu0 0
        %2031 = vmatpush2.bf16.msra.mxu0 %v1976
        %2032 = vmatprep.mubr.bf16.mxu0 %v322
        %2033 = vmatmul.mubr.bf16.gmra.mxu0 %v321
        %v2034 = vpop.f32.mrf.mxu0
        %v2035 = vadd.f32 0.0, %v2034
        %v2036 = vpop.f32.mrf.mxu0
        %v2037 = vpop.f32.mrf.mxu0
        %v2038 = vpop.f32.mrf.mxu0
        %2039 = vdwg.mxu0
        %s2040 = scalar_lea.vmem %s4, 256
        %v2041 = vld [vmem:[%s2040] sm:$0xf]
        %v2042 = vld [vmem:[%s2040 + $0x4] sm:$0xf]
        %v2043 = vld [vmem:[%s2040 + $0x8] sm:$0xf]
        %v2044 = vld [vmem:[%s2040 + $0xc] sm:$0xf]
        %v2045 = vld [vmem:[%s2040 + $0x10] sm:$0xf]
        %v2046 = vld [vmem:[%s2040 + $0x14] sm:$0xf]
        %v2047 = vld [vmem:[%s2040 + $0x18] sm:$0xf]
        %v2048 = vld [vmem:[%s2040 + $0x1c] sm:$0xf]
        %v2049 = vld [vmem:[%s2040 + $0x20] sm:$0xf]
        %v2050 = vld [vmem:[%s2040 + $0x24] sm:$0xf]
        %v2051 = vld [vmem:[%s2040 + $0x28] sm:$0xf]
        %v2052 = vld [vmem:[%s2040 + $0x2c] sm:$0xf]
        %v2053 = vld [vmem:[%s2040 + $0x30] sm:$0xf]
        %v2054 = vld [vmem:[%s2040 + $0x34] sm:$0xf]
        %v2055 = vld [vmem:[%s2040 + $0x38] sm:$0xf]
        %v2056 = vld [vmem:[%s2040 + $0x3c] sm:$0xf]
        %v2057 = vld [vmem:[%s2040 + $0x40] sm:$0xf]
        %v2058 = vld [vmem:[%s2040 + $0x44] sm:$0xf]
        %v2059 = vld [vmem:[%s2040 + $0x48] sm:$0xf]
        %v2060 = vld [vmem:[%s2040 + $0x4c] sm:$0xf]
        %v2061 = vld [vmem:[%s2040 + $0x50] sm:$0xf]
        %v2062 = vld [vmem:[%s2040 + $0x54] sm:$0xf]
        %v2063 = vld [vmem:[%s2040 + $0x58] sm:$0xf]
        %v2064 = vld [vmem:[%s2040 + $0x5c] sm:$0xf]
        %v2065 = vld [vmem:[%s2040 + $0x60] sm:$0xf]
        %v2066 = vld [vmem:[%s2040 + $0x64] sm:$0xf]
        %v2067 = vld [vmem:[%s2040 + $0x68] sm:$0xf]
        %v2068 = vld [vmem:[%s2040 + $0x6c] sm:$0xf]
        %v2069 = vld [vmem:[%s2040 + $0x70] sm:$0xf]
        %v2070 = vld [vmem:[%s2040 + $0x74] sm:$0xf]
        %v2071 = vld [vmem:[%s2040 + $0x78] sm:$0xf]
        %v2072 = vld [vmem:[%s2040 + $0x7c] sm:$0xf]
        %v2105 = vunpack.c.l.b16 %v2041
        %v2106 = vunpack.c.l.b16 %v2042
        %v2107 = vunpack.c.l.b16 %v2043
        %v2108 = vunpack.c.l.b16 %v2044
        %v2109 = vunpack.c.l.b16 %v2045
        %v2110 = vunpack.c.l.b16 %v2046
        %v2111 = vunpack.c.l.b16 %v2047
        %v2112 = vunpack.c.l.b16 %v2048
        %v2113 = vunpack.c.l.b16 %v2049
        %v2114 = vunpack.c.l.b16 %v2050
        %v2115 = vunpack.c.l.b16 %v2051
        %v2116 = vunpack.c.l.b16 %v2052
        %v2117 = vunpack.c.l.b16 %v2053
        %v2118 = vunpack.c.l.b16 %v2054
        %v2119 = vunpack.c.l.b16 %v2055
        %v2120 = vunpack.c.l.b16 %v2056
        %v2121 = vunpack.c.l.b16 %v2057
        %v2122 = vunpack.c.l.b16 %v2058
        %v2123 = vunpack.c.l.b16 %v2059
        %v2124 = vunpack.c.l.b16 %v2060
        %v2125 = vunpack.c.l.b16 %v2061
        %v2126 = vunpack.c.l.b16 %v2062
        %v2127 = vunpack.c.l.b16 %v2063
        %v2128 = vunpack.c.l.b16 %v2064
        %v2129 = vunpack.c.l.b16 %v2065
        %v2130 = vunpack.c.l.b16 %v2066
        %v2131 = vunpack.c.l.b16 %v2067
        %v2132 = vunpack.c.l.b16 %v2068
        %v2133 = vunpack.c.l.b16 %v2069
        %v2134 = vunpack.c.l.b16 %v2070
        %v2135 = vunpack.c.l.b16 %v2071
        %v2136 = vunpack.c.l.b16 %v2072
        %v2137 = vpack.c.b16 %v2106, %v2105
        %v2138 = vpack.c.b16 %v2108, %v2107
        %v2139 = vpack.c.b16 %v2110, %v2109
        %v2140 = vpack.c.b16 %v2112, %v2111
        %v2141 = vpack.c.b16 %v2114, %v2113
        %v2142 = vpack.c.b16 %v2116, %v2115
        %v2143 = vpack.c.b16 %v2118, %v2117
        %v2144 = vpack.c.b16 %v2120, %v2119
        %v2145 = vpack.c.b16 %v2122, %v2121
        %v2146 = vpack.c.b16 %v2124, %v2123
        %v2147 = vpack.c.b16 %v2126, %v2125
        %v2148 = vpack.c.b16 %v2128, %v2127
        %v2149 = vpack.c.b16 %v2130, %v2129
        %v2150 = vpack.c.b16 %v2132, %v2131
        %v2151 = vpack.c.b16 %v2134, %v2133
        %v2152 = vpack.c.b16 %v2136, %v2135
        %2169 = vmatprep.subr.bf16.mxu0 0
        %2170 = vmatpush1.bf16.msra.mxu0 %v2144
        %2171 = vmatprep.subr.bf16.mxu0 0
        %2172 = vmatpush1.bf16.msra.mxu0 %v2143
        %2173 = vmatprep.subr.bf16.mxu0 0
        %2174 = vmatpush1.bf16.msra.mxu0 %v2142
        %2175 = vmatprep.subr.bf16.mxu0 0
        %2176 = vmatpush1.bf16.msra.mxu0 %v2141
        %2177 = vmatprep.subr.bf16.mxu0 0
        %2178 = vmatpush1.bf16.msra.mxu0 %v2140
        %2179 = vmatprep.subr.bf16.mxu0 0
        %2180 = vmatpush1.bf16.msra.mxu0 %v2139
        %2181 = vmatprep.subr.bf16.mxu0 0
        %2182 = vmatpush1.bf16.msra.mxu0 %v2138
        %2183 = vmatprep.subr.bf16.mxu0 0
        %2184 = vmatpush1.bf16.msra.mxu0 %v2137
        %2185 = vmatprep.subr.bf16.mxu0 0
        %2186 = vmatpush2.bf16.msra.mxu0 %v2152
        %2187 = vmatprep.subr.bf16.mxu0 0
        %2188 = vmatpush2.bf16.msra.mxu0 %v2151
        %2189 = vmatprep.subr.bf16.mxu0 0
        %2190 = vmatpush2.bf16.msra.mxu0 %v2150
        %2191 = vmatprep.subr.bf16.mxu0 0
        %2192 = vmatpush2.bf16.msra.mxu0 %v2149
        %2193 = vmatprep.subr.bf16.mxu0 0
        %2194 = vmatpush2.bf16.msra.mxu0 %v2148
        %2195 = vmatprep.subr.bf16.mxu0 0
        %2196 = vmatpush2.bf16.msra.mxu0 %v2147
        %2197 = vmatprep.subr.bf16.mxu0 0
        %2198 = vmatpush2.bf16.msra.mxu0 %v2146
        %2199 = vmatprep.subr.bf16.mxu0 0
        %2200 = vmatpush2.bf16.msra.mxu0 %v2145
        %2201 = vmatprep.mubr.bf16.mxu0 %v322
        %2202 = vmatmul.mubr.bf16.gmra.mxu0 %v321
        %v2203 = vpop.f32.mrf.mxu0
        %v2204 = vadd.f32 0.0, %v2203
        %v2205 = vpop.f32.mrf.mxu0
        %v2206 = vpop.f32.mrf.mxu0
        %v2207 = vpop.f32.mrf.mxu0
        %2208 = vdwg.mxu0
        %v2209 = vpack.c.bf16 %v1866, %v1866
        %v2210 = vpack.c.bf16 %v2035, %v2035
        %v2212 = vsel %vm830, %v2209, 0
        %v2215 = vsel %vm830, %v2210, 0
        %2217 = vmatprep.subr.bf16.mxu0 0
        %2218 = vmatpush1.bf16.xpose.msra.mxu0 0
        %2219 = vmatprep.subr.bf16.mxu0 0
        %2220 = vmatpush1.bf16.xpose.msra.mxu0 0
        %2221 = vmatprep.subr.bf16.mxu0 0
        %2222 = vmatpush1.bf16.xpose.msra.mxu0 0
        %2223 = vmatprep.subr.bf16.mxu0 0
        %2224 = vmatpush1.bf16.xpose.msra.mxu0 0
        %2225 = vmatprep.subr.bf16.mxu0 0
        %2226 = vmatpush1.bf16.xpose.msra.mxu0 0
        %2227 = vmatprep.subr.bf16.mxu0 0
        %2228 = vmatpush1.bf16.xpose.msra.mxu0 0
        %2229 = vmatprep.subr.bf16.mxu0 0
        %2230 = vmatpush1.bf16.xpose.msra.mxu0 0
        %2231 = vmatprep.subr.bf16.mxu0 0
        %2232 = vmatpush1.bf16.xpose.msra.mxu0 %v2215
        %2233 = vmatprep.subr.bf16.mxu0 0
        %2234 = vmatpush2.bf16.xpose.msra.mxu0 0
        %2235 = vmatprep.subr.bf16.mxu0 0
        %2236 = vmatpush2.bf16.xpose.msra.mxu0 0
        %2237 = vmatprep.subr.bf16.mxu0 0
        %2238 = vmatpush2.bf16.xpose.msra.mxu0 0
        %2239 = vmatprep.subr.bf16.mxu0 0
        %2240 = vmatpush2.bf16.xpose.msra.mxu0 0
        %2241 = vmatprep.subr.bf16.mxu0 0
        %2242 = vmatpush2.bf16.xpose.msra.mxu0 0
        %2243 = vmatprep.subr.bf16.mxu0 0
        %2244 = vmatpush2.bf16.xpose.msra.mxu0 0
        %2245 = vmatprep.subr.bf16.mxu0 0
        %2246 = vmatpush2.bf16.xpose.msra.mxu0 0
        %2247 = vmatprep.subr.bf16.mxu0 0
        %2248 = vmatpush2.bf16.xpose.msra.mxu0 0
        %2249 = vmatprep.mubr.bf16.mxu0 0
        %2250 = vmatmul.mubr.bf16.gmra.mxu0 %v2212
        %v2251 = vpop.f32.mrf.mxu0
        %v2252 = vadd.f32 0.0, %v2251
        %v2253 = vpop.f32.mrf.mxu0
        %v2254 = vpop.f32.mrf.mxu0
        %v2255 = vpop.f32.mrf.mxu0
        %2256 = vdwg.mxu0
        %v2257 = vmul.f32 %v2252, 0.17677669
        %v2258 = vsel %vm884, -1e+09, %v2257
        %v2259 = vsel %vm886, %v2258, -inf
        %2260 = vmax.xlane.f32.xlu0 %v2259
        %v2261 = vpop.xlane.xlu0 %2260
        %v2262 = vsub.f32 %v2258, %v2261
        %v2263 = vmul.f32 %v2262, 1.442695
        %v2264 = vpow.pop %v2263
        %v2265 = vsel %vm886, %v2264, 0.0
        %2266 = vadd.xlane.f32.xlu0 %v2265
        %v2267 = vpop.xlane.xlu0 %2266
        %v2268 = vrcp.pop %v2267
        %v2269 = vmul.f32 %v2264, %v2268
        %v2270 = vpack.c.bf16 %v2269, %v2269
        %v2271 = vpack.c.bf16 %v2204, %v2204
        %v2273 = vsel %vm886, %v2270, 0
        %v2276 = vsel %vm903, %v2271, 0
        %2278 = vmatprep.subr.bf16.mxu0 0
        %2279 = vmatpush1.bf16.msra.mxu0 0
        %2280 = vmatprep.subr.bf16.mxu0 0
        %2281 = vmatpush1.bf16.msra.mxu0 0
        %2282 = vmatprep.subr.bf16.mxu0 0
        %2283 = vmatpush1.bf16.msra.mxu0 0
        %2284 = vmatprep.subr.bf16.mxu0 0
        %2285 = vmatpush1.bf16.msra.mxu0 0
        %2286 = vmatprep.subr.bf16.mxu0 0
        %2287 = vmatpush1.bf16.msra.mxu0 0
        %2288 = vmatprep.subr.bf16.mxu0 0
        %2289 = vmatpush1.bf16.msra.mxu0 0
        %2290 = vmatprep.subr.bf16.mxu0 0
        %2291 = vmatpush1.bf16.msra.mxu0 0
        %2292 = vmatprep.subr.bf16.mxu0 0
        %2293 = vmatpush1.bf16.msra.mxu0 %v2276
        %2294 = vmatprep.subr.bf16.mxu0 0
        %2295 = vmatpush2.bf16.msra.mxu0 0
        %2296 = vmatprep.subr.bf16.mxu0 0
        %2297 = vmatpush2.bf16.msra.mxu0 0
        %2298 = vmatprep.subr.bf16.mxu0 0
        %2299 = vmatpush2.bf16.msra.mxu0 0
        %2300 = vmatprep.subr.bf16.mxu0 0
        %2301 = vmatpush2.bf16.msra.mxu0 0
        %2302 = vmatprep.subr.bf16.mxu0 0
        %2303 = vmatpush2.bf16.msra.mxu0 0
        %2304 = vmatprep.subr.bf16.mxu0 0
        %2305 = vmatpush2.bf16.msra.mxu0 0
        %2306 = vmatprep.subr.bf16.mxu0 0
        %2307 = vmatpush2.bf16.msra.mxu0 0
        %2308 = vmatprep.subr.bf16.mxu0 0
        %2309 = vmatpush2.bf16.msra.mxu0 0
        %2310 = vmatprep.mubr.bf16.mxu0 0
        %2311 = vmatmul.mubr.bf16.gmra.mxu0 %v2273
        %v2312 = vpop.f32.mrf.mxu0
        %v2313 = vadd.f32 0.0, %v2312
        %v2314 = vpop.f32.mrf.mxu0
        %v2315 = vpop.f32.mrf.mxu0
        %v2316 = vpop.f32.mrf.mxu0
        %2317 = vdwg.mxu0
        %v2318 = vpack.c.bf16 %v2313, %v2313
        %s2319 = scalar_lea.vmem %s5, 64
        %v2320 = vld [vmem:[%s2319] sm:$0xff]
        %v2321 = vld [vmem:[%s2319 + $0x8] sm:$0xff]
        %v2322 = vld [vmem:[%s2319 + $0x10] sm:$0xff]
        %v2323 = vld [vmem:[%s2319 + $0x18] sm:$0xff]
        %v2328 = vunpack.c.l.b16 %v2320
        %v2329 = vunpack.c.h.b16 %v2320
        %v2330 = vunpack.c.l.b16 %v2321
        %v2331 = vunpack.c.h.b16 %v2321
        %v2332 = vunpack.c.l.b16 %v2322
        %v2333 = vunpack.c.h.b16 %v2322
        %v2334 = vunpack.c.l.b16 %v2323
        %v2335 = vunpack.c.h.b16 %v2323
        %v2336 = vpack.c.b16 %v2330, %v2328
        %v2337 = vpack.c.b16 %v2331, %v2329
        %v2338 = vpack.c.b16 %v2334, %v2332
        %v2339 = vpack.c.b16 %v2335, %v2333
        %v2345 = vsel %vm830, %v2318, 0
        %2347 = vmatprep.subr.bf16.mxu0 0
        %2348 = vmatpush1.bf16.msra.mxu0 0
        %2349 = vmatprep.subr.bf16.mxu0 0
        %2350 = vmatpush1.bf16.msra.mxu0 0
        %2351 = vmatprep.subr.bf16.mxu0 0
        %2352 = vmatpush1.bf16.msra.mxu0 0
        %2353 = vmatprep.subr.bf16.mxu0 0
        %2354 = vmatpush1.bf16.msra.mxu0 0
        %2355 = vmatprep.subr.bf16.mxu0 0
        %2356 = vmatpush1.bf16.msra.mxu0 0
        %2357 = vmatprep.subr.bf16.mxu0 0
        %2358 = vmatpush1.bf16.msra.mxu0 0
        %2359 = vmatprep.subr.bf16.mxu0 %v2339
        %2360 = vmatpush1.bf16.msra.mxu0 %v2338
        %2361 = vmatprep.subr.bf16.mxu0 %v2337
        %2362 = vmatpush1.bf16.msra.mxu0 %v2336
        %2363 = vmatprep.subr.bf16.mxu0 0
        %2364 = vmatpush2.bf16.msra.mxu0 0
        %2365 = vmatprep.subr.bf16.mxu0 0
        %2366 = vmatpush2.bf16.msra.mxu0 0
        %2367 = vmatprep.subr.bf16.mxu0 0
        %2368 = vmatpush2.bf16.msra.mxu0 0
        %2369 = vmatprep.subr.bf16.mxu0 0
        %2370 = vmatpush2.bf16.msra.mxu0 0
        %2371 = vmatprep.subr.bf16.mxu0 0
        %2372 = vmatpush2.bf16.msra.mxu0 0
        %2373 = vmatprep.subr.bf16.mxu0 0
        %2374 = vmatpush2.bf16.msra.mxu0 0
        %2375 = vmatprep.subr.bf16.mxu0 0
        %2376 = vmatpush2.bf16.msra.mxu0 0
        %2377 = vmatprep.subr.bf16.mxu0 0
        %2378 = vmatpush2.bf16.msra.mxu0 0
        %2379 = vmatprep.mubr.bf16.mxu0 0
        %2380 = vmatmul.mubr.bf16.gmra.mxu0 %v2345
        %v2381 = vpop.f32.mrf.mxu0
        %v2382 = vadd.f32 0.0, %v2381
        %v2383 = vpop.f32.mrf.mxu0
        %v2384 = vadd.f32 0.0, %v2383
        %v2385 = vpop.f32.mrf.mxu0
        %v2386 = vpop.f32.mrf.mxu0
        %2387 = vdwg.mxu0
        %v2388 = vadd.f32 %v1696, %v2382
        %v2389 = vadd.f32 %v1698, %v2384
        %s2390 = scalar_lea.vmem %s2, 384
        %v2391 = vld [vmem:[%s2390] sm:$0xf]
        %v2392 = vld [vmem:[%s2390 + $0x4] sm:$0xf]
        %v2393 = vld [vmem:[%s2390 + $0x8] sm:$0xf]
        %v2394 = vld [vmem:[%s2390 + $0xc] sm:$0xf]
        %v2395 = vld [vmem:[%s2390 + $0x10] sm:$0xf]
        %v2396 = vld [vmem:[%s2390 + $0x14] sm:$0xf]
        %v2397 = vld [vmem:[%s2390 + $0x18] sm:$0xf]
        %v2398 = vld [vmem:[%s2390 + $0x1c] sm:$0xf]
        %v2399 = vld [vmem:[%s2390 + $0x20] sm:$0xf]
        %v2400 = vld [vmem:[%s2390 + $0x24] sm:$0xf]
        %v2401 = vld [vmem:[%s2390 + $0x28] sm:$0xf]
        %v2402 = vld [vmem:[%s2390 + $0x2c] sm:$0xf]
        %v2403 = vld [vmem:[%s2390 + $0x30] sm:$0xf]
        %v2404 = vld [vmem:[%s2390 + $0x34] sm:$0xf]
        %v2405 = vld [vmem:[%s2390 + $0x38] sm:$0xf]
        %v2406 = vld [vmem:[%s2390 + $0x3c] sm:$0xf]
        %v2407 = vld [vmem:[%s2390 + $0x40] sm:$0xf]
        %v2408 = vld [vmem:[%s2390 + $0x44] sm:$0xf]
        %v2409 = vld [vmem:[%s2390 + $0x48] sm:$0xf]
        %v2410 = vld [vmem:[%s2390 + $0x4c] sm:$0xf]
        %v2411 = vld [vmem:[%s2390 + $0x50] sm:$0xf]
        %v2412 = vld [vmem:[%s2390 + $0x54] sm:$0xf]
        %v2413 = vld [vmem:[%s2390 + $0x58] sm:$0xf]
        %v2414 = vld [vmem:[%s2390 + $0x5c] sm:$0xf]
        %v2415 = vld [vmem:[%s2390 + $0x60] sm:$0xf]
        %v2416 = vld [vmem:[%s2390 + $0x64] sm:$0xf]
        %v2417 = vld [vmem:[%s2390 + $0x68] sm:$0xf]
        %v2418 = vld [vmem:[%s2390 + $0x6c] sm:$0xf]
        %v2419 = vld [vmem:[%s2390 + $0x70] sm:$0xf]
        %v2420 = vld [vmem:[%s2390 + $0x74] sm:$0xf]
        %v2421 = vld [vmem:[%s2390 + $0x78] sm:$0xf]
        %v2422 = vld [vmem:[%s2390 + $0x7c] sm:$0xf]
        %v2455 = vunpack.c.l.b16 %v2391
        %v2456 = vunpack.c.l.b16 %v2392
        %v2457 = vunpack.c.l.b16 %v2393
        %v2458 = vunpack.c.l.b16 %v2394
        %v2459 = vunpack.c.l.b16 %v2395
        %v2460 = vunpack.c.l.b16 %v2396
        %v2461 = vunpack.c.l.b16 %v2397
        %v2462 = vunpack.c.l.b16 %v2398
        %v2463 = vunpack.c.l.b16 %v2399
        %v2464 = vunpack.c.l.b16 %v2400
        %v2465 = vunpack.c.l.b16 %v2401
        %v2466 = vunpack.c.l.b16 %v2402
        %v2467 = vunpack.c.l.b16 %v2403
        %v2468 = vunpack.c.l.b16 %v2404
        %v2469 = vunpack.c.l.b16 %v2405
        %v2470 = vunpack.c.l.b16 %v2406
        %v2471 = vunpack.c.l.b16 %v2407
        %v2472 = vunpack.c.l.b16 %v2408
        %v2473 = vunpack.c.l.b16 %v2409
        %v2474 = vunpack.c.l.b16 %v2410
        %v2475 = vunpack.c.l.b16 %v2411
        %v2476 = vunpack.c.l.b16 %v2412
        %v2477 = vunpack.c.l.b16 %v2413
        %v2478 = vunpack.c.l.b16 %v2414
        %v2479 = vunpack.c.l.b16 %v2415
        %v2480 = vunpack.c.l.b16 %v2416
        %v2481 = vunpack.c.l.b16 %v2417
        %v2482 = vunpack.c.l.b16 %v2418
        %v2483 = vunpack.c.l.b16 %v2419
        %v2484 = vunpack.c.l.b16 %v2420
        %v2485 = vunpack.c.l.b16 %v2421
        %v2486 = vunpack.c.l.b16 %v2422
        %v2487 = vpack.c.b16 %v2456, %v2455
        %v2488 = vpack.c.b16 %v2458, %v2457
        %v2489 = vpack.c.b16 %v2460, %v2459
        %v2490 = vpack.c.b16 %v2462, %v2461
        %v2491 = vpack.c.b16 %v2464, %v2463
        %v2492 = vpack.c.b16 %v2466, %v2465
        %v2493 = vpack.c.b16 %v2468, %v2467
        %v2494 = vpack.c.b16 %v2470, %v2469
        %v2495 = vpack.c.b16 %v2472, %v2471
        %v2496 = vpack.c.b16 %v2474, %v2473
        %v2497 = vpack.c.b16 %v2476, %v2475
        %v2498 = vpack.c.b16 %v2478, %v2477
        %v2499 = vpack.c.b16 %v2480, %v2479
        %v2500 = vpack.c.b16 %v2482, %v2481
        %v2501 = vpack.c.b16 %v2484, %v2483
        %v2502 = vpack.c.b16 %v2486, %v2485
        %2519 = vmatprep.subr.bf16.mxu0 0
        %2520 = vmatpush1.bf16.msra.mxu0 %v2494
        %2521 = vmatprep.subr.bf16.mxu0 0
        %2522 = vmatpush1.bf16.msra.mxu0 %v2493
        %2523 = vmatprep.subr.bf16.mxu0 0
        %2524 = vmatpush1.bf16.msra.mxu0 %v2492
        %2525 = vmatprep.subr.bf16.mxu0 0
        %2526 = vmatpush1.bf16.msra.mxu0 %v2491
        %2527 = vmatprep.subr.bf16.mxu0 0
        %2528 = vmatpush1.bf16.msra.mxu0 %v2490
        %2529 = vmatprep.subr.bf16.mxu0 0
        %2530 = vmatpush1.bf16.msra.mxu0 %v2489
        %2531 = vmatprep.subr.bf16.mxu0 0
        %2532 = vmatpush1.bf16.msra.mxu0 %v2488
        %2533 = vmatprep.subr.bf16.mxu0 0
        %2534 = vmatpush1.bf16.msra.mxu0 %v2487
        %2535 = vmatprep.subr.bf16.mxu0 0
        %2536 = vmatpush2.bf16.msra.mxu0 %v2502
        %2537 = vmatprep.subr.bf16.mxu0 0
        %2538 = vmatpush2.bf16.msra.mxu0 %v2501
        %2539 = vmatprep.subr.bf16.mxu0 0
        %2540 = vmatpush2.bf16.msra.mxu0 %v2500
        %2541 = vmatprep.subr.bf16.mxu0 0
        %2542 = vmatpush2.bf16.msra.mxu0 %v2499
        %2543 = vmatprep.subr.bf16.mxu0 0
        %2544 = vmatpush2.bf16.msra.mxu0 %v2498
        %2545 = vmatprep.subr.bf16.mxu0 0
        %2546 = vmatpush2.bf16.msra.mxu0 %v2497
        %2547 = vmatprep.subr.bf16.mxu0 0
        %2548 = vmatpush2.bf16.msra.mxu0 %v2496
        %2549 = vmatprep.subr.bf16.mxu0 0
        %2550 = vmatpush2.bf16.msra.mxu0 %v2495
        %2551 = vmatprep.mubr.bf16.mxu0 %v322
        %2552 = vmatmul.mubr.bf16.gmra.mxu0 %v321
        %v2553 = vpop.f32.mrf.mxu0
        %v2554 = vadd.f32 0.0, %v2553
        %v2555 = vpop.f32.mrf.mxu0
        %v2556 = vpop.f32.mrf.mxu0
        %v2557 = vpop.f32.mrf.mxu0
        %2558 = vdwg.mxu0
        %s2559 = scalar_lea.vmem %s3, 384
        %v2560 = vld [vmem:[%s2559] sm:$0xf]
        %v2561 = vld [vmem:[%s2559 + $0x4] sm:$0xf]
        %v2562 = vld [vmem:[%s2559 + $0x8] sm:$0xf]
        %v2563 = vld [vmem:[%s2559 + $0xc] sm:$0xf]
        %v2564 = vld [vmem:[%s2559 + $0x10] sm:$0xf]
        %v2565 = vld [vmem:[%s2559 + $0x14] sm:$0xf]
        %v2566 = vld [vmem:[%s2559 + $0x18] sm:$0xf]
        %v2567 = vld [vmem:[%s2559 + $0x1c] sm:$0xf]
        %v2568 = vld [vmem:[%s2559 + $0x20] sm:$0xf]
        %v2569 = vld [vmem:[%s2559 + $0x24] sm:$0xf]
        %v2570 = vld [vmem:[%s2559 + $0x28] sm:$0xf]
        %v2571 = vld [vmem:[%s2559 + $0x2c] sm:$0xf]
        %v2572 = vld [vmem:[%s2559 + $0x30] sm:$0xf]
        %v2573 = vld [vmem:[%s2559 + $0x34] sm:$0xf]
        %v2574 = vld [vmem:[%s2559 + $0x38] sm:$0xf]
        %v2575 = vld [vmem:[%s2559 + $0x3c] sm:$0xf]
        %v2576 = vld [vmem:[%s2559 + $0x40] sm:$0xf]
        %v2577 = vld [vmem:[%s2559 + $0x44] sm:$0xf]
        %v2578 = vld [vmem:[%s2559 + $0x48] sm:$0xf]
        %v2579 = vld [vmem:[%s2559 + $0x4c] sm:$0xf]
        %v2580 = vld [vmem:[%s2559 + $0x50] sm:$0xf]
        %v2581 = vld [vmem:[%s2559 + $0x54] sm:$0xf]
        %v2582 = vld [vmem:[%s2559 + $0x58] sm:$0xf]
        %v2583 = vld [vmem:[%s2559 + $0x5c] sm:$0xf]
        %v2584 = vld [vmem:[%s2559 + $0x60] sm:$0xf]
        %v2585 = vld [vmem:[%s2559 + $0x64] sm:$0xf]
        %v2586 = vld [vmem:[%s2559 + $0x68] sm:$0xf]
        %v2587 = vld [vmem:[%s2559 + $0x6c] sm:$0xf]
        %v2588 = vld [vmem:[%s2559 + $0x70] sm:$0xf]
        %v2589 = vld [vmem:[%s2559 + $0x74] sm:$0xf]
        %v2590 = vld [vmem:[%s2559 + $0x78] sm:$0xf]
        %v2591 = vld [vmem:[%s2559 + $0x7c] sm:$0xf]
        %v2624 = vunpack.c.l.b16 %v2560
        %v2625 = vunpack.c.l.b16 %v2561
        %v2626 = vunpack.c.l.b16 %v2562
        %v2627 = vunpack.c.l.b16 %v2563
        %v2628 = vunpack.c.l.b16 %v2564
        %v2629 = vunpack.c.l.b16 %v2565
        %v2630 = vunpack.c.l.b16 %v2566
        %v2631 = vunpack.c.l.b16 %v2567
        %v2632 = vunpack.c.l.b16 %v2568
        %v2633 = vunpack.c.l.b16 %v2569
        %v2634 = vunpack.c.l.b16 %v2570
        %v2635 = vunpack.c.l.b16 %v2571
        %v2636 = vunpack.c.l.b16 %v2572
        %v2637 = vunpack.c.l.b16 %v2573
        %v2638 = vunpack.c.l.b16 %v2574
        %v2639 = vunpack.c.l.b16 %v2575
        %v2640 = vunpack.c.l.b16 %v2576
        %v2641 = vunpack.c.l.b16 %v2577
        %v2642 = vunpack.c.l.b16 %v2578
        %v2643 = vunpack.c.l.b16 %v2579
        %v2644 = vunpack.c.l.b16 %v2580
        %v2645 = vunpack.c.l.b16 %v2581
        %v2646 = vunpack.c.l.b16 %v2582
        %v2647 = vunpack.c.l.b16 %v2583
        %v2648 = vunpack.c.l.b16 %v2584
        %v2649 = vunpack.c.l.b16 %v2585
        %v2650 = vunpack.c.l.b16 %v2586
        %v2651 = vunpack.c.l.b16 %v2587
        %v2652 = vunpack.c.l.b16 %v2588
        %v2653 = vunpack.c.l.b16 %v2589
        %v2654 = vunpack.c.l.b16 %v2590
        %v2655 = vunpack.c.l.b16 %v2591
        %v2656 = vpack.c.b16 %v2625, %v2624
        %v2657 = vpack.c.b16 %v2627, %v2626
        %v2658 = vpack.c.b16 %v2629, %v2628
        %v2659 = vpack.c.b16 %v2631, %v2630
        %v2660 = vpack.c.b16 %v2633, %v2632
        %v2661 = vpack.c.b16 %v2635, %v2634
        %v2662 = vpack.c.b16 %v2637, %v2636
        %v2663 = vpack.c.b16 %v2639, %v2638
        %v2664 = vpack.c.b16 %v2641, %v2640
        %v2665 = vpack.c.b16 %v2643, %v2642
        %v2666 = vpack.c.b16 %v2645, %v2644
        %v2667 = vpack.c.b16 %v2647, %v2646
        %v2668 = vpack.c.b16 %v2649, %v2648
        %v2669 = vpack.c.b16 %v2651, %v2650
        %v2670 = vpack.c.b16 %v2653, %v2652
        %v2671 = vpack.c.b16 %v2655, %v2654
        %2688 = vmatprep.subr.bf16.mxu0 0
        %2689 = vmatpush1.bf16.msra.mxu0 %v2663
        %2690 = vmatprep.subr.bf16.mxu0 0
        %2691 = vmatpush1.bf16.msra.mxu0 %v2662
        %2692 = vmatprep.subr.bf16.mxu0 0
        %2693 = vmatpush1.bf16.msra.mxu0 %v2661
        %2694 = vmatprep.subr.bf16.mxu0 0
        %2695 = vmatpush1.bf16.msra.mxu0 %v2660
        %2696 = vmatprep.subr.bf16.mxu0 0
        %2697 = vmatpush1.bf16.msra.mxu0 %v2659
        %2698 = vmatprep.subr.bf16.mxu0 0
        %2699 = vmatpush1.bf16.msra.mxu0 %v2658
        %2700 = vmatprep.subr.bf16.mxu0 0
        %2701 = vmatpush1.bf16.msra.mxu0 %v2657
        %2702 = vmatprep.subr.bf16.mxu0 0
        %2703 = vmatpush1.bf16.msra.mxu0 %v2656
        %2704 = vmatprep.subr.bf16.mxu0 0
        %2705 = vmatpush2.bf16.msra.mxu0 %v2671
        %2706 = vmatprep.subr.bf16.mxu0 0
        %2707 = vmatpush2.bf16.msra.mxu0 %v2670
        %2708 = vmatprep.subr.bf16.mxu0 0
        %2709 = vmatpush2.bf16.msra.mxu0 %v2669
        %2710 = vmatprep.subr.bf16.mxu0 0
        %2711 = vmatpush2.bf16.msra.mxu0 %v2668
        %2712 = vmatprep.subr.bf16.mxu0 0
        %2713 = vmatpush2.bf16.msra.mxu0 %v2667
        %2714 = vmatprep.subr.bf16.mxu0 0
        %2715 = vmatpush2.bf16.msra.mxu0 %v2666
        %2716 = vmatprep.subr.bf16.mxu0 0
        %2717 = vmatpush2.bf16.msra.mxu0 %v2665
        %2718 = vmatprep.subr.bf16.mxu0 0
        %2719 = vmatpush2.bf16.msra.mxu0 %v2664
        %2720 = vmatprep.mubr.bf16.mxu0 %v322
        %2721 = vmatmul.mubr.bf16.gmra.mxu0 %v321
        %v2722 = vpop.f32.mrf.mxu0
        %v2723 = vadd.f32 0.0, %v2722
        %v2724 = vpop.f32.mrf.mxu0
        %v2725 = vpop.f32.mrf.mxu0
        %v2726 = vpop.f32.mrf.mxu0
        %2727 = vdwg.mxu0
        %s2728 = scalar_lea.vmem %s4, 384
        %v2729 = vld [vmem:[%s2728] sm:$0xf]
        %v2730 = vld [vmem:[%s2728 + $0x4] sm:$0xf]
        %v2731 = vld [vmem:[%s2728 + $0x8] sm:$0xf]
        %v2732 = vld [vmem:[%s2728 + $0xc] sm:$0xf]
        %v2733 = vld [vmem:[%s2728 + $0x10] sm:$0xf]
        %v2734 = vld [vmem:[%s2728 + $0x14] sm:$0xf]
        %v2735 = vld [vmem:[%s2728 + $0x18] sm:$0xf]
        %v2736 = vld [vmem:[%s2728 + $0x1c] sm:$0xf]
        %v2737 = vld [vmem:[%s2728 + $0x20] sm:$0xf]
        %v2738 = vld [vmem:[%s2728 + $0x24] sm:$0xf]
        %v2739 = vld [vmem:[%s2728 + $0x28] sm:$0xf]
        %v2740 = vld [vmem:[%s2728 + $0x2c] sm:$0xf]
        %v2741 = vld [vmem:[%s2728 + $0x30] sm:$0xf]
        %v2742 = vld [vmem:[%s2728 + $0x34] sm:$0xf]
        %v2743 = vld [vmem:[%s2728 + $0x38] sm:$0xf]
        %v2744 = vld [vmem:[%s2728 + $0x3c] sm:$0xf]
        %v2745 = vld [vmem:[%s2728 + $0x40] sm:$0xf]
        %v2746 = vld [vmem:[%s2728 + $0x44] sm:$0xf]
        %v2747 = vld [vmem:[%s2728 + $0x48] sm:$0xf]
        %v2748 = vld [vmem:[%s2728 + $0x4c] sm:$0xf]
        %v2749 = vld [vmem:[%s2728 + $0x50] sm:$0xf]
        %v2750 = vld [vmem:[%s2728 + $0x54] sm:$0xf]
        %v2751 = vld [vmem:[%s2728 + $0x58] sm:$0xf]
        %v2752 = vld [vmem:[%s2728 + $0x5c] sm:$0xf]
        %v2753 = vld [vmem:[%s2728 + $0x60] sm:$0xf]
        %v2754 = vld [vmem:[%s2728 + $0x64] sm:$0xf]
        %v2755 = vld [vmem:[%s2728 + $0x68] sm:$0xf]
        %v2756 = vld [vmem:[%s2728 + $0x6c] sm:$0xf]
        %v2757 = vld [vmem:[%s2728 + $0x70] sm:$0xf]
        %v2758 = vld [vmem:[%s2728 + $0x74] sm:$0xf]
        %v2759 = vld [vmem:[%s2728 + $0x78] sm:$0xf]
        %v2760 = vld [vmem:[%s2728 + $0x7c] sm:$0xf]
        %v2793 = vunpack.c.l.b16 %v2729
        %v2794 = vunpack.c.l.b16 %v2730
        %v2795 = vunpack.c.l.b16 %v2731
        %v2796 = vunpack.c.l.b16 %v2732
        %v2797 = vunpack.c.l.b16 %v2733
        %v2798 = vunpack.c.l.b16 %v2734
        %v2799 = vunpack.c.l.b16 %v2735
        %v2800 = vunpack.c.l.b16 %v2736
        %v2801 = vunpack.c.l.b16 %v2737
        %v2802 = vunpack.c.l.b16 %v2738
        %v2803 = vunpack.c.l.b16 %v2739
        %v2804 = vunpack.c.l.b16 %v2740
        %v2805 = vunpack.c.l.b16 %v2741
        %v2806 = vunpack.c.l.b16 %v2742
        %v2807 = vunpack.c.l.b16 %v2743
        %v2808 = vunpack.c.l.b16 %v2744
        %v2809 = vunpack.c.l.b16 %v2745
        %v2810 = vunpack.c.l.b16 %v2746
        %v2811 = vunpack.c.l.b16 %v2747
        %v2812 = vunpack.c.l.b16 %v2748
        %v2813 = vunpack.c.l.b16 %v2749
        %v2814 = vunpack.c.l.b16 %v2750
        %v2815 = vunpack.c.l.b16 %v2751
        %v2816 = vunpack.c.l.b16 %v2752
        %v2817 = vunpack.c.l.b16 %v2753
        %v2818 = vunpack.c.l.b16 %v2754
        %v2819 = vunpack.c.l.b16 %v2755
        %v2820 = vunpack.c.l.b16 %v2756
        %v2821 = vunpack.c.l.b16 %v2757
        %v2822 = vunpack.c.l.b16 %v2758
        %v2823 = vunpack.c.l.b16 %v2759
        %v2824 = vunpack.c.l.b16 %v2760
        %v2825 = vpack.c.b16 %v2794, %v2793
        %v2826 = vpack.c.b16 %v2796, %v2795
        %v2827 = vpack.c.b16 %v2798, %v2797
        %v2828 = vpack.c.b16 %v2800, %v2799
        %v2829 = vpack.c.b16 %v2802, %v2801
        %v2830 = vpack.c.b16 %v2804, %v2803
        %v2831 = vpack.c.b16 %v2806, %v2805
        %v2832 = vpack.c.b16 %v2808, %v2807
        %v2833 = vpack.c.b16 %v2810, %v2809
        %v2834 = vpack.c.b16 %v2812, %v2811
        %v2835 = vpack.c.b16 %v2814, %v2813
        %v2836 = vpack.c.b16 %v2816, %v2815
        %v2837 = vpack.c.b16 %v2818, %v2817
        %v2838 = vpack.c.b16 %v2820, %v2819
        %v2839 = vpack.c.b16 %v2822, %v2821
        %v2840 = vpack.c.b16 %v2824, %v2823
        %2857 = vmatprep.subr.bf16.mxu0 0
        %2858 = vmatpush1.bf16.msra.mxu0 %v2832
        %2859 = vmatprep.subr.bf16.mxu0 0
        %2860 = vmatpush1.bf16.msra.mxu0 %v2831
        %2861 = vmatprep.subr.bf16.mxu0 0
        %2862 = vmatpush1.bf16.msra.mxu0 %v2830
        %2863 = vmatprep.subr.bf16.mxu0 0
        %2864 = vmatpush1.bf16.msra.mxu0 %v2829
        %2865 = vmatprep.subr.bf16.mxu0 0
        %2866 = vmatpush1.bf16.msra.mxu0 %v2828
        %2867 = vmatprep.subr.bf16.mxu0 0
        %2868 = vmatpush1.bf16.msra.mxu0 %v2827
        %2869 = vmatprep.subr.bf16.mxu0 0
        %2870 = vmatpush1.bf16.msra.mxu0 %v2826
        %2871 = vmatprep.subr.bf16.mxu0 0
        %2872 = vmatpush1.bf16.msra.mxu0 %v2825
        %2873 = vmatprep.subr.bf16.mxu0 0
        %2874 = vmatpush2.bf16.msra.mxu0 %v2840
        %2875 = vmatprep.subr.bf16.mxu0 0
        %2876 = vmatpush2.bf16.msra.mxu0 %v2839
        %2877 = vmatprep.subr.bf16.mxu0 0
        %2878 = vmatpush2.bf16.msra.mxu0 %v2838
        %2879 = vmatprep.subr.bf16.mxu0 0
        %2880 = vmatpush2.bf16.msra.mxu0 %v2837
        %2881 = vmatprep.subr.bf16.mxu0 0
        %2882 = vmatpush2.bf16.msra.mxu0 %v2836
        %2883 = vmatprep.subr.bf16.mxu0 0
        %2884 = vmatpush2.bf16.msra.mxu0 %v2835
        %2885 = vmatprep.subr.bf16.mxu0 0
        %2886 = vmatpush2.bf16.msra.mxu0 %v2834
        %2887 = vmatprep.subr.bf16.mxu0 0
        %2888 = vmatpush2.bf16.msra.mxu0 %v2833
        %2889 = vmatprep.mubr.bf16.mxu0 %v322
        %2890 = vmatmul.mubr.bf16.gmra.mxu0 %v321
        %v2891 = vpop.f32.mrf.mxu0
        %v2892 = vadd.f32 0.0, %v2891
        %v2893 = vpop.f32.mrf.mxu0
        %v2894 = vpop.f32.mrf.mxu0
        %v2895 = vpop.f32.mrf.mxu0
        %2896 = vdwg.mxu0
        %v2897 = vpack.c.bf16 %v2554, %v2554
        %v2898 = vpack.c.bf16 %v2723, %v2723
        %v2900 = vsel %vm830, %v2897, 0
        %v2903 = vsel %vm830, %v2898, 0
        %2905 = vmatprep.subr.bf16.mxu0 0
        %2906 = vmatpush1.bf16.xpose.msra.mxu0 0
        %2907 = vmatprep.subr.bf16.mxu0 0
        %2908 = vmatpush1.bf16.xpose.msra.mxu0 0
        %2909 = vmatprep.subr.bf16.mxu0 0
        %2910 = vmatpush1.bf16.xpose.msra.mxu0 0
        %2911 = vmatprep.subr.bf16.mxu0 0
        %2912 = vmatpush1.bf16.xpose.msra.mxu0 0
        %2913 = vmatprep.subr.bf16.mxu0 0
        %2914 = vmatpush1.bf16.xpose.msra.mxu0 0
        %2915 = vmatprep.subr.bf16.mxu0 0
        %2916 = vmatpush1.bf16.xpose.msra.mxu0 0
        %2917 = vmatprep.subr.bf16.mxu0 0
        %2918 = vmatpush1.bf16.xpose.msra.mxu0 0
        %2919 = vmatprep.subr.bf16.mxu0 0
        %2920 = vmatpush1.bf16.xpose.msra.mxu0 %v2903
        %2921 = vmatprep.subr.bf16.mxu0 0
        %2922 = vmatpush2.bf16.xpose.msra.mxu0 0
        %2923 = vmatprep.subr.bf16.mxu0 0
        %2924 = vmatpush2.bf16.xpose.msra.mxu0 0
        %2925 = vmatprep.subr.bf16.mxu0 0
        %2926 = vmatpush2.bf16.xpose.msra.mxu0 0
        %2927 = vmatprep.subr.bf16.mxu0 0
        %2928 = vmatpush2.bf16.xpose.msra.mxu0 0
        %2929 = vmatprep.subr.bf16.mxu0 0
        %2930 = vmatpush2.bf16.xpose.msra.mxu0 0
        %2931 = vmatprep.subr.bf16.mxu0 0
        %2932 = vmatpush2.bf16.xpose.msra.mxu0 0
        %2933 = vmatprep.subr.bf16.mxu0 0
        %2934 = vmatpush2.bf16.xpose.msra.mxu0 0
        %2935 = vmatprep.subr.bf16.mxu0 0
        %2936 = vmatpush2.bf16.xpose.msra.mxu0 0
        %2937 = vmatprep.mubr.bf16.mxu0 0
        %2938 = vmatmul.mubr.bf16.gmra.mxu0 %v2900
        %v2939 = vpop.f32.mrf.mxu0
        %v2940 = vadd.f32 0.0, %v2939
        %v2941 = vpop.f32.mrf.mxu0
        %v2942 = vpop.f32.mrf.mxu0
        %v2943 = vpop.f32.mrf.mxu0
        %2944 = vdwg.mxu0
        %v2945 = vmul.f32 %v2940, 0.17677669
        %v2946 = vsel %vm884, -1e+09, %v2945
        %v2947 = vsel %vm886, %v2946, -inf
        %2948 = vmax.xlane.f32.xlu0 %v2947
        %v2949 = vpop.xlane.xlu0 %2948
        %v2950 = vsub.f32 %v2946, %v2949
        %v2951 = vmul.f32 %v2950, 1.442695
        %v2952 = vpow.pop %v2951
        %v2953 = vsel %vm886, %v2952, 0.0
        %2954 = vadd.xlane.f32.xlu0 %v2953
        %v2955 = vpop.xlane.xlu0 %2954
        %v2956 = vrcp.pop %v2955
        %v2957 = vmul.f32 %v2952, %v2956
        %v2958 = vpack.c.bf16 %v2957, %v2957
        %v2959 = vpack.c.bf16 %v2892, %v2892
        %v2961 = vsel %vm886, %v2958, 0
        %v2964 = vsel %vm903, %v2959, 0
        %2966 = vmatprep.subr.bf16.mxu0 0
        %2967 = vmatpush1.bf16.msra.mxu0 0
        %2968 = vmatprep.subr.bf16.mxu0 0
        %2969 = vmatpush1.bf16.msra.mxu0 0
        %2970 = vmatprep.subr.bf16.mxu0 0
        %2971 = vmatpush1.bf16.msra.mxu0 0
        %2972 = vmatprep.subr.bf16.mxu0 0
        %2973 = vmatpush1.bf16.msra.mxu0 0
        %2974 = vmatprep.subr.bf16.mxu0 0
        %2975 = vmatpush1.bf16.msra.mxu0 0
        %2976 = vmatprep.subr.bf16.mxu0 0
        %2977 = vmatpush1.bf16.msra.mxu0 0
        %2978 = vmatprep.subr.bf16.mxu0 0
        %2979 = vmatpush1.bf16.msra.mxu0 0
        %2980 = vmatprep.subr.bf16.mxu0 0
        %2981 = vmatpush1.bf16.msra.mxu0 %v2964
        %2982 = vmatprep.subr.bf16.mxu0 0
        %2983 = vmatpush2.bf16.msra.mxu0 0
        %2984 = vmatprep.subr.bf16.mxu0 0
        %2985 = vmatpush2.bf16.msra.mxu0 0
        %2986 = vmatprep.subr.bf16.mxu0 0
        %2987 = vmatpush2.bf16.msra.mxu0 0
        %2988 = vmatprep.subr.bf16.mxu0 0
        %2989 = vmatpush2.bf16.msra.mxu0 0
        %2990 = vmatprep.subr.bf16.mxu0 0
        %2991 = vmatpush2.bf16.msra.mxu0 0
        %2992 = vmatprep.subr.bf16.mxu0 0
        %2993 = vmatpush2.bf16.msra.mxu0 0
        %2994 = vmatprep.subr.bf16.mxu0 0
        %2995 = vmatpush2.bf16.msra.mxu0 0
        %2996 = vmatprep.subr.bf16.mxu0 0
        %2997 = vmatpush2.bf16.msra.mxu0 0
        %2998 = vmatprep.mubr.bf16.mxu0 0
        %2999 = vmatmul.mubr.bf16.gmra.mxu0 %v2961
        %v3000 = vpop.f32.mrf.mxu0
        %v3001 = vadd.f32 0.0, %v3000
        %v3002 = vpop.f32.mrf.mxu0
        %v3003 = vpop.f32.mrf.mxu0
        %v3004 = vpop.f32.mrf.mxu0
        %3005 = vdwg.mxu0
        %v3006 = vpack.c.bf16 %v3001, %v3001
        %s3007 = scalar_lea.vmem %s5, 96
        %v3008 = vld [vmem:[%s3007] sm:$0xff]
        %v3009 = vld [vmem:[%s3007 + $0x8] sm:$0xff]
        %v3010 = vld [vmem:[%s3007 + $0x10] sm:$0xff]
        %v3011 = vld [vmem:[%s3007 + $0x18] sm:$0xff]
        %v3016 = vunpack.c.l.b16 %v3008
        %v3017 = vunpack.c.h.b16 %v3008
        %v3018 = vunpack.c.l.b16 %v3009
        %v3019 = vunpack.c.h.b16 %v3009
        %v3020 = vunpack.c.l.b16 %v3010
        %v3021 = vunpack.c.h.b16 %v3010
        %v3022 = vunpack.c.l.b16 %v3011
        %v3023 = vunpack.c.h.b16 %v3011
        %v3024 = vpack.c.b16 %v3018, %v3016
        %v3025 = vpack.c.b16 %v3019, %v3017
        %v3026 = vpack.c.b16 %v3022, %v3020
        %v3027 = vpack.c.b16 %v3023, %v3021
        %v3033 = vsel %vm830, %v3006, 0
        %3035 = vmatprep.subr.bf16.mxu0 0
        %3036 = vmatpush1.bf16.msra.mxu0 0
        %3037 = vmatprep.subr.bf16.mxu0 0
        %3038 = vmatpush1.bf16.msra.mxu0 0
        %3039 = vmatprep.subr.bf16.mxu0 0
        %3040 = vmatpush1.bf16.msra.mxu0 0
        %3041 = vmatprep.subr.bf16.mxu0 0
        %3042 = vmatpush1.bf16.msra.mxu0 0
        %3043 = vmatprep.subr.bf16.mxu0 0
        %3044 = vmatpush1.bf16.msra.mxu0 0
        %3045 = vmatprep.subr.bf16.mxu0 0
        %3046 = vmatpush1.bf16.msra.mxu0 0
        %3047 = vmatprep.subr.bf16.mxu0 %v3027
        %3048 = vmatpush1.bf16.msra.mxu0 %v3026
        %3049 = vmatprep.subr.bf16.mxu0 %v3025
        %3050 = vmatpush1.bf16.msra.mxu0 %v3024
        %3051 = vmatprep.subr.bf16.mxu0 0
        %3052 = vmatpush2.bf16.msra.mxu0 0
        %3053 = vmatprep.subr.bf16.mxu0 0
        %3054 = vmatpush2.bf16.msra.mxu0 0
        %3055 = vmatprep.subr.bf16.mxu0 0
        %3056 = vmatpush2.bf16.msra.mxu0 0
        %3057 = vmatprep.subr.bf16.mxu0 0
        %3058 = vmatpush2.bf16.msra.mxu0 0
        %3059 = vmatprep.subr.bf16.mxu0 0
        %3060 = vmatpush2.bf16.msra.mxu0 0
        %3061 = vmatprep.subr.bf16.mxu0 0
        %3062 = vmatpush2.bf16.msra.mxu0 0
        %3063 = vmatprep.subr.bf16.mxu0 0
        %3064 = vmatpush2.bf16.msra.mxu0 0
        %3065 = vmatprep.subr.bf16.mxu0 0
        %3066 = vmatpush2.bf16.msra.mxu0 0
        %3067 = vmatprep.mubr.bf16.mxu0 0
        %3068 = vmatmul.mubr.bf16.gmra.mxu0 %v3033
        %v3069 = vpop.f32.mrf.mxu0
        %v3070 = vadd.f32 0.0, %v3069
        %v3071 = vpop.f32.mrf.mxu0
        %v3072 = vadd.f32 0.0, %v3071
        %v3073 = vpop.f32.mrf.mxu0
        %v3074 = vpop.f32.mrf.mxu0
        %3075 = vdwg.mxu0
        %v3076 = vadd.f32 %v2388, %v3070
        %v3077 = vadd.f32 %v2389, %v3072
        %v3078 = vadd.f32 %v319, %v3076
        %v3079 = vadd.f32 %v320, %v3077
        %v3080 = vadd.f32 %v3078, %v3079
        %3081 = vadd.xlane.f32.xlu0 %v3080
        %v3082 = vpop.xlane.xlu0 %3081
        %v3083 = vrcp.pop 256.0
        %v3084 = vmul.f32 %v3082, %v3083
        %v3085 = vsub.f32 %v3078, %v3084
        %v3086 = vsub.f32 %v3079, %v3084
        %v3087 = vmul.f32 %v3085, %v3085
        %v3088 = vmul.f32 %v3086, %v3086
        %v3089 = vadd.f32 %v3087, %v3088
        %3090 = vadd.xlane.f32.xlu0 %v3089
        %v3091 = vpop.xlane.xlu0 %3090
        %v3092 = vmul.f32 %v3091, %v3083
        %v3093 = vadd.f32 %v3092, 1e-05
        %v3094 = vrsqrt.pop %v3093
        %v3095 = vmul.f32 %v3085, %v3094
        %v3096 = vmul.f32 %v3086, %v3094
        %v3097 = vld [vmem:[%s6] sm:$0x3]
        %v3099 = vlaneseq
        %v3100 = vshrl.u32 %v3099, 7
        %v3101 = vsub.s32 0, %v3100
        %v3102 = vrot.slane %v3097, %v3101
        %v3103 = vlaneseq
        %v3104 = vshrl.u32 %v3103, 7
        %v3105 = vsub.s32 1, %v3104
        %v3106 = vrot.slane %v3097, %v3105
        %v3109 = vmul.f32 %v3095, %v3102
        %v3110 = vmul.f32 %v3096, %v3106
        %v3111 = vld [vmem:[%s7] sm:$0x3]
        %v3113 = vlaneseq
        %v3114 = vshrl.u32 %v3113, 7
        %v3115 = vsub.s32 0, %v3114
        %v3116 = vrot.slane %v3111, %v3115
        %v3117 = vlaneseq
        %v3118 = vshrl.u32 %v3117, 7
        %v3119 = vsub.s32 1, %v3118
        %v3120 = vrot.slane %v3111, %v3119
        %v3123 = vadd.f32 %v3109, %v3116
        %v3124 = vadd.f32 %v3110, %v3120
        %3125 = vst [vmem:[%s309] sm:$0xff] %v3123
        %3126 = vst [vmem:[%s309 + $0x8] sm:$0xff] %v3124
        %s3127 = sand.u32 %s208, 1
        %s3128 = scalar_lea.sflag [#allocation3], %s3127
        %s3129 = sand.u32 %s208, 1
        %s3130 = smul.addr %s3129, 16
        %s3131 = scalar_lea.vmem [#allocation2], %s3130
        // Predicated region
        $region53: #{tpu_custom_call.1} parent=51 // pred_check
          %p3132 = pneg %p218
        $region54: #{tpu_custom_call.1} parent=51 // pred_check_branch
          %3134 = sbr.rel (%p3132) target = $region56
        $region55: #{tpu_custom_call.1} parent=51 // pred_region
          %s3136 = ssub.s32 256, 256
          %3137 = vsyncadd %s3128, %s3136
          %s3138 = smul.addr %s22, 2
          %s3139 = smul.addr %s3138, 128
          %s3140 = scalar_lea.hbm %s8, %s3139
          %s3142 = sshll.u32 %s3131, 4
          %s3143 = int_to_ptr.vmem [resolvable:$true] %s3142
          %3145 = dma.vmem_to_hbm [thread:$0]  %s3143, 256, %s3140, %s3128
        $region56: #{tpu_custom_call.1} parent=51 // pred_fallthru
          _
      $region52: #{tpu_custom_call.1} parent=5 // pred_fallthru
        _
      %p3146 = scmp.le.s32.totalorder 2, %s17
      // Predicated region
      $region57: #{tpu_custom_call.1} parent=5 // pred_check
        %p3147 = pneg %p3146
      $region58: #{tpu_custom_call.1} parent=5 // pred_check_branch
        %3149 = sbr.rel (%p3147) target = $region60
      $region59: #{tpu_custom_call.1} parent=5 // pred_region
        %s3150 = ssub.s32 %s17, 2
        // Predicated region
        $region61: #{tpu_custom_call.1} parent=59 // pred_check
          %p3151 = pneg %p224
        $region62: #{tpu_custom_call.1} parent=59 // pred_check_branch
          %3153 = sbr.rel (%p3151) target = $region64
        $region63: #{tpu_custom_call.1} parent=59 // pred_region
          %s3154 = sand.u32 %s209, 1
          %s3155 = scalar_lea.sflag [#allocation3], %s3154
          %s3156 = sand.u32 %s209, 1
          %s3157 = smul.addr %s3156, 16
          %s3158 = scalar_lea.vmem [#allocation2], %s3157
          %3159 = dma.done %s3155, 256
        $region64: #{tpu_custom_call.1} parent=59 // pred_fallthru
          _
      $region60: #{tpu_custom_call.1} parent=5 // pred_fallthru
        _
    $region6: #{tpu_custom_call.1} parent=1 // loop_footer
      %s21 = sadd.s32 1, %s17
    $region7: #{tpu_custom_call.1} parent=1 // loop_footer_branch
      %16 = sbr.rel target = $region3
    $region8: #{tpu_custom_call.1} parent=1 // loop_exit
      _
    %3160 = vsyncpa [#allocation3], 1
    %s3161 = scalar_lea.sflag [#allocation3], 1
    %3162 = vsyncpa %s3161, 1

</llo_original>
